<compile_context>
chip_gen: v7x
topology: tpu7x:2x2x1
jax: 0.10.0
libtpu: 0.0.40
codegen_flags: <defaults>
</compile_context>

<pallas_src>
import functools
import math

import jax
import jax.numpy as jnp
from jax.experimental import pallas as pl
from jax.experimental.pallas import tpu as pltpu

# ---- model hyper-parameters (small, consistent with the module) -------------
D_MODEL = 32
D_INNER = 64
N_HEAD = 4
D_K = D_MODEL // N_HEAD
EPS = 1e-6
NEG_INF = -1e9


# ------------------------------ in-kernel helpers -----------------------------
def _layer_norm(x, gamma, beta):
    # PyTorch nn.LayerNorm over last dim (biased variance), eps=1e-6.
    mean = jnp.mean(x, axis=-1, keepdims=True)
    var = jnp.mean(jnp.square(x - mean), axis=-1, keepdims=True)
    return (x - mean) * jax.lax.rsqrt(var + EPS) * gamma + beta


def _attend(q2d, k2d, v2d, wo, residual2d, gamma, beta, mzero, B, Lq, Lk):
    """One multi-head attention block on batch-flattened activations.

    q2d: (B*Lq, D); k2d/v2d: (B*Lk, D); wo: (D, D); mzero: (B,Lq,Lk) bool or None.
    Per-head lane slices feed batched matmuls; the output projection is applied
    per head and accumulated -> no head concatenation, no transposes.
    """
    scale = 1.0 / math.sqrt(D_K)
    out2d = jnp.zeros((B * Lq, D_MODEL), jnp.float32)
    for h in range(N_HEAD):                      # static, unrolled (N_HEAD=4)
        sl = slice(h * D_K, (h + 1) * D_K)
        qh = q2d[:, sl].reshape(B, Lq, D_K)
        kh = k2d[:, sl].reshape(B, Lk, D_K)
        vh = v2d[:, sl].reshape(B, Lk, D_K)
        # contract last dims of q and k directly (no explicit kh.T)
        s = jnp.einsum("bqd,bkd->bqk", qh, kh,
                       preferred_element_type=jnp.float32) * scale
        if mzero is not None:
            s = jnp.where(mzero, NEG_INF, s)     # masked_fill(mask == 0, -1e9)
        s = s - jnp.max(s, axis=-1, keepdims=True)
        p = jnp.exp(s)
        p = p * pl.reciprocal(jnp.sum(p, axis=-1, keepdims=True), approx=True)
        ctx = jnp.einsum("bqk,bkd->bqd", p, vh,
                         preferred_element_type=jnp.float32)
        # per-head slice of the output projection; accumulate (== concat @ Wo)
        out2d = out2d + jnp.dot(ctx.reshape(B * Lq, D_K), wo[sl, :],
                                preferred_element_type=jnp.float32)
    return _layer_norm(out2d + residual2d, gamma, beta)


# --------------------------------- fused kernel --------------------------------
def _decoder_layer_kernel(*refs, B, Ld, Le, n_blocks, self_mask_flags,
                          has_enc_mask):
    it = iter(refs)
    dec_ref = next(it)                                   # (B*Ld, D)
    enc_ref = next(it)                                   # (B*Le, D)
    smask_ref = next(it) if any(self_mask_flags) else None   # (nb, B, Ld, Ld)
    emask_ref = next(it) if has_enc_mask else None            # (B, Ld, Le)
    wqkv_ref = next(it)                                  # (D, pad128(nb*3*D))
    wo_self_ref = next(it)                               # (nb, D, D)
    ln_sg_ref = next(it)                                 # (nb, 1, D)
    ln_sb_ref = next(it)                                 # (nb, 1, D)
    wqc_ref = next(it)                                   # (D, D)
    wkvc_ref = next(it)                                  # (D, pad128(2*D))
    woc_ref = next(it)                                   # (D, D)
    ln_cg_ref = next(it)                                 # (1, D)
    ln_cb_ref = next(it)                                 # (1, D)
    w1_ref = next(it)                                    # (D, D_inner)
    b1_ref = next(it)                                    # (1, D_inner)
    w2_ref = next(it)                                    # (D_inner, D)
    b2_ref = next(it)                                    # (1, D)
    ln_fg_ref = next(it)                                 # (1, D)
    ln_fb_ref = next(it)                                 # (1, D)
    o_ref = next(it)                                     # (B*Ld, D)

    dec2d = dec_ref[...]
    enc2d = enc_ref[...]

    # ---- self attention block(s): one fused QKV projection for all blocks ----
    qkv = jnp.dot(dec2d, wqkv_ref[...], preferred_element_type=jnp.float32)
    block_outs = []
    for i in range(n_blocks):                            # static (1 or 4)
        base = i * 3 * D_MODEL
        q2d = qkv[:, base:base + D_MODEL]
        k2d = qkv[:, base + D_MODEL:base + 2 * D_MODEL]
        v2d = qkv[:, base + 2 * D_MODEL:base + 3 * D_MODEL]
        mzero = (smask_ref[i] == 0.0) if self_mask_flags[i] else None
        block_outs.append(
            _attend(q2d, k2d, v2d, wo_self_ref[i], dec2d,
                    ln_sg_ref[i], ln_sb_ref[i], mzero, B, Ld, Ld))
    if n_blocks == 4:
        # block order is (local, category, id, self);
        # PyTorch sums category + id + local + self.
        x = block_outs[1] + block_outs[2] + block_outs[0] + block_outs[3]
    else:
        x = block_outs[0]

    # ---- cross attention (Q from decoder stream, K/V from encoder) -----------
    qc = jnp.dot(x, wqc_ref[...], preferred_element_type=jnp.float32)
    kvc = jnp.dot(enc2d, wkvc_ref[...], preferred_element_type=jnp.float32)
    kc = kvc[:, :D_MODEL]
    vc = kvc[:, D_MODEL:2 * D_MODEL]
    mzero_c = (emask_ref[...] == 0.0) if has_enc_mask else None
    x = _attend(qc, kc, vc, woc_ref[...], x, ln_cg_ref[...], ln_cb_ref[...],
                mzero_c, B, Ld, Le)

    # ---- position-wise feed forward -------------------------------------------
    h1 = jnp.dot(x, w1_ref[...], preferred_element_type=jnp.float32) + b1_ref[...]
    h1 = jnp.maximum(h1, 0.0)
    y = jnp.dot(h1, w2_ref[...], preferred_element_type=jnp.float32) + b2_ref[...]
    y = _layer_norm(y + x, ln_fg_ref[...], ln_fb_ref[...])

    o_ref[...] = y
    # TODO(synk): dropout layers are identity (eval mode); on a v7x target one
    # could additionally shard batch / attention blocks over the 2 TensorCores
    # with a parallel grid axis, omitted here since the layer is launch-bound.


# ----------------------------- wrapper / packing -------------------------------
def _pad_lanes(w, mult=128):
    """Zero-pad the last dim of a weight up to a multiple of `mult` lanes."""
    pad = (-w.shape[-1]) % mult
    if pad:
        w = jnp.concatenate(
            [w, jnp.zeros(w.shape[:-1] + (pad,), w.dtype)], axis=-1)
    return w


def pack_decoder_layer_params(params, use_additional_global_attn):
    """One-time restructuring of per-module weights into fused kernel operands."""
    if use_additional_global_attn:
        block_names = ("local_attn", "category_attn", "id_attn", "self_attn")
    else:
        block_names = ("self_attn",)
    blocks = [params[n] for n in block_names]
    w_qkv = jnp.concatenate(
        [jnp.concatenate([b["wq"], b["wk"], b["wv"]], axis=1) for b in blocks],
        axis=1)                                           # (D, nb*3*D)
    c = params["cross_attn"]
    f = params["pos_ffn"]
    return {
        "n_blocks": len(blocks),
        "w_qkv_self": _pad_lanes(w_qkv),
        "wo_self": jnp.stack([b["wo"] for b in blocks]),   # (nb, D, D)
        "ln_self_g": jnp.stack([b["ln_g"] for b in blocks]),
        "ln_self_b": jnp.stack([b["ln_b"] for b in blocks]),
        "wq_cross": c["wq"],
        "wkv_cross": _pad_lanes(jnp.concatenate([c["wk"], c["wv"]], axis=1)),
        "wo_cross": c["wo"],
        "ln_cross_g": c["ln_g"], "ln_cross_b": c["ln_b"],
        "w1": f["w1"], "b1": f["b1"], "w2": f["w2"], "b2": f["b2"],
        "ln_ffn_g": f["ln_g"], "ln_ffn_b": f["ln_b"],
    }


def decoder_layer(enc_output, dec_input, packed,
                  enc_mask=None, dec_mask=None, local_mask=None,
                  category_mask=None, id_mask=None,
                  use_additional_global_attn=False):
    B, Ld, D = dec_input.shape
    Le = enc_output.shape[1]
    assert D == D_MODEL
    n_blocks = packed["n_blocks"]

    if use_additional_global_attn:
        assert n_blocks == 4
        mask_list = [local_mask, category_mask, id_mask, dec_mask]
    else:
        assert n_blocks == 1
        mask_list = [dec_mask]
    self_mask_flags = tuple(m is not None for m in mask_list)
    has_enc_mask = enc_mask is not None

    inputs = [dec_input.reshape(B * Ld, D).astype(jnp.float32),
              enc_output.reshape(B * Le, D).astype(jnp.float32)]
    if any(self_mask_flags):
        ones = jnp.ones((B, Ld, Ld), jnp.float32)
        inputs.append(jnp.stack(
            [m.astype(jnp.float32) if m is not None else ones
             for m in mask_list]))
    if has_enc_mask:
        inputs.append(enc_mask.astype(jnp.float32))
    inputs += [packed["w_qkv_self"], packed["wo_self"],
               packed["ln_self_g"], packed["ln_self_b"],
               packed["wq_cross"], packed["wkv_cross"], packed["wo_cross"],
               packed["ln_cross_g"], packed["ln_cross_b"],
               packed["w1"], packed["b1"], packed["w2"], packed["b2"],
               packed["ln_ffn_g"], packed["ln_ffn_b"]]

    kern = functools.partial(
        _decoder_layer_kernel, B=B, Ld=Ld, Le=Le, n_blocks=n_blocks,
        self_mask_flags=self_mask_flags, has_enc_mask=has_enc_mask)

    out2d = pl.pallas_call(
        kern,
        out_shape=jax.ShapeDtypeStruct((B * Ld, D), jnp.float32),
        compiler_params=pltpu.CompilerParams(
            vmem_limit_bytes=32 * 1024 * 1024),
    )(*inputs)
    return out2d.reshape(B, Ld, D)


# ----------------------------- parameter init ----------------------------------
def init_attn_params(key, d_model):
    ks = jax.random.split(key, 4)
    s = 1.0 / (d_model ** 0.5)
    return {
        "wq": jax.random.normal(ks[0], (d_model, d_model), jnp.float32) * s,
        "wk": jax.random.normal(ks[1], (d_model, d_model), jnp.float32) * s,
        "wv": jax.random.normal(ks[2], (d_model, d_model), jnp.float32) * s,
        "wo": jax.random.normal(ks[3], (d_model, d_model), jnp.float32) * s,
        "ln_g": jnp.ones((1, d_model), jnp.float32),
        "ln_b": jnp.zeros((1, d_model), jnp.float32),
    }


def init_ffn_params(key, d_model, d_inner):
    k1, k2 = jax.random.split(key)
    return {
        "w1": jax.random.normal(k1, (d_model, d_inner), jnp.float32) / (d_model ** 0.5),
        "b1": jnp.zeros((1, d_inner), jnp.float32),
        "w2": jax.random.normal(k2, (d_inner, d_model), jnp.float32) / (d_inner ** 0.5),
        "b2": jnp.zeros((1, d_model), jnp.float32),
        "ln_g": jnp.ones((1, d_model), jnp.float32),
        "ln_b": jnp.zeros((1, d_model), jnp.float32),
    }


def init_decoder_layer_params(key, d_model, d_inner):
    ks = jax.random.split(key, 6)
    return {
        "local_attn": init_attn_params(ks[0], d_model),
        "category_attn": init_attn_params(ks[1], d_model),
        "id_attn": init_attn_params(ks[2], d_model),
        "self_attn": init_attn_params(ks[3], d_model),
        "cross_attn": init_attn_params(ks[4], d_model),
        "pos_ffn": init_ffn_params(ks[5], d_model, d_inner),
    }


# ---------------------------------- main ----------------------------------------
if __name__ == "__main__":
    B, LQ, LK = 2, 8, 8  # batch, decoder seq len, encoder seq len

    key = jax.random.PRNGKey(0)
    k_enc, k_dec, k_par = jax.random.split(key, 3)
    enc_output = jax.random.normal(k_enc, (B, LK, D_MODEL), jnp.float32)
    dec_input = jax.random.normal(k_dec, (B, LQ, D_MODEL), jnp.float32)
    params = init_decoder_layer_params(k_par, D_MODEL, D_INNER)

    # causal decoder self-attention mask; full encoder mask
    dec_mask = jnp.tril(jnp.ones((LQ, LQ), jnp.float32))[None].repeat(B, axis=0)
    enc_mask = jnp.ones((B, LQ, LK), jnp.float32)

    # default path (single self-attn); enc_mask=None exercises the static
    # mask-skip path for the cross attention.
    packed1 = pack_decoder_layer_params(params, use_additional_global_attn=False)
    out = decoder_layer(enc_output, dec_input, packed1,
                        enc_mask=None, dec_mask=dec_mask,
                        use_additional_global_attn=False)
    out = jax.block_until_ready(out)
    assert out.shape == (B, LQ, D_MODEL)
    assert bool(jnp.all(jnp.isfinite(out)))

    # additional-global-attention path (4 fused self-attn blocks + masked cross)
    packed4 = pack_decoder_layer_params(params, use_additional_global_attn=True)
    out2 = decoder_layer(enc_output, dec_input, packed4,
                         enc_mask=enc_mask, dec_mask=dec_mask,
                         local_mask=dec_mask, category_mask=dec_mask,
                         id_mask=dec_mask,
                         use_additional_global_attn=True)
    out2 = jax.block_until_ready(out2)
    assert out2.shape == (B, LQ, D_MODEL)
    assert bool(jnp.all(jnp.isfinite(out2)))

    print("KERNEL_OK")
</pallas_src>

<mosaic_0001>
module attributes {stable_mosaic.version = 11 : i64} {
  func.func @_decoder_layer_kernel(%arg0: memref<16x32xf32, #tpu.memory_space<vmem>>, %arg1: memref<16x32xf32, #tpu.memory_space<vmem>>, %arg2: memref<1x2x8x8xf32, #tpu.memory_space<vmem>>, %arg3: memref<32x128xf32, #tpu.memory_space<vmem>>, %arg4: memref<1x32x32xf32, #tpu.memory_space<vmem>>, %arg5: memref<1x1x32xf32, #tpu.memory_space<vmem>>, %arg6: memref<1x1x32xf32, #tpu.memory_space<vmem>>, %arg7: memref<32x32xf32, #tpu.memory_space<vmem>>, %arg8: memref<32x128xf32, #tpu.memory_space<vmem>>, %arg9: memref<32x32xf32, #tpu.memory_space<vmem>>, %arg10: memref<1x32xf32, #tpu.memory_space<vmem>>, %arg11: memref<1x32xf32, #tpu.memory_space<vmem>>, %arg12: memref<32x64xf32, #tpu.memory_space<vmem>>, %arg13: memref<1x64xf32, #tpu.memory_space<vmem>>, %arg14: memref<64x32xf32, #tpu.memory_space<vmem>>, %arg15: memref<1x32xf32, #tpu.memory_space<vmem>>, %arg16: memref<1x32xf32, #tpu.memory_space<vmem>>, %arg17: memref<1x32xf32, #tpu.memory_space<vmem>>, %arg18: memref<16x32xf32, #tpu.memory_space<vmem>>) attributes {dimension_semantics = [], scalar_prefetch = 0 : i64, scratch_operands = 0 : i64, tpu.core_type = #tpu.core_type<tc>} {
    %c0 = arith.constant 0 : index
    %c0_0 = arith.constant 0 : index
    %0 = vector.load %arg0[%c0, %c0_0] : memref<16x32xf32, #tpu.memory_space<vmem>>, vector<16x32xf32>
    %c0_1 = arith.constant 0 : index
    %c0_2 = arith.constant 0 : index
    %1 = vector.load %arg1[%c0_1, %c0_2] : memref<16x32xf32, #tpu.memory_space<vmem>>, vector<16x32xf32>
    %c0_3 = arith.constant 0 : index
    %c0_4 = arith.constant 0 : index
    %2 = vector.load %arg3[%c0_3, %c0_4] : memref<32x128xf32, #tpu.memory_space<vmem>>, vector<32x128xf32>
    %cst = arith.constant dense<0.000000e+00> : vector<16x128xf32>
    %3 = tpu.matmul %0, %2, %cst {dimension_numbers = #tpu.dot_dimension_numbers<[1], [0], [0], [1], [0, 0, 1, 1], [], []>} : vector<16x32xf32>, vector<32x128xf32>, vector<16x128xf32> -> vector<16x128xf32>
    %4 = vector.extract_strided_slice %3 {offsets = [0, 0], sizes = [16, 32], strides = [1, 1]} : vector<16x128xf32> to vector<16x32xf32>
    %5 = vector.extract_strided_slice %3 {offsets = [0, 32], sizes = [16, 32], strides = [1, 1]} : vector<16x128xf32> to vector<16x32xf32>
    %6 = vector.extract_strided_slice %3 {offsets = [0, 64], sizes = [16, 32], strides = [1, 1]} : vector<16x128xf32> to vector<16x32xf32>
    %c0_5 = arith.constant 0 : index
    %c0_6 = arith.constant 0 : index
    %c0_7 = arith.constant 0 : index
    %c0_8 = arith.constant 0 : index
    %7 = vector.load %arg2[%c0_5, %c0_6, %c0_7, %c0_8] : memref<1x2x8x8xf32, #tpu.memory_space<vmem>>, vector<1x2x8x8xf32>
    %8 = vector.shape_cast %7 : vector<1x2x8x8xf32> to vector<2x8x8xf32>
    %cst_9 = arith.constant 0.000000e+00 : f32
    %9 = vector.broadcast %cst_9 : f32 to vector<2x8x8xf32>
    %10 = arith.cmpf oeq, %8, %9 : vector<2x8x8xf32>
    %c0_10 = arith.constant 0 : index
    %c0_11 = arith.constant 0 : index
    %c0_12 = arith.constant 0 : index
    %11 = vector.load %arg4[%c0_10, %c0_11, %c0_12] : memref<1x32x32xf32, #tpu.memory_space<vmem>>, vector<1x32x32xf32>
    %12 = vector.shape_cast %11 : vector<1x32x32xf32> to vector<32x32xf32>
    %c0_13 = arith.constant 0 : index
    %c0_14 = arith.constant 0 : index
    %c0_15 = arith.constant 0 : index
    %13 = vector.load %arg5[%c0_13, %c0_14, %c0_15] : memref<1x1x32xf32, #tpu.memory_space<vmem>>, vector<1x1x32xf32>
    %14 = vector.shape_cast %13 : vector<1x1x32xf32> to vector<1x32xf32>
    %c0_16 = arith.constant 0 : index
    %c0_17 = arith.constant 0 : index
    %c0_18 = arith.constant 0 : index
    %15 = vector.load %arg6[%c0_16, %c0_17, %c0_18] : memref<1x1x32xf32, #tpu.memory_space<vmem>>, vector<1x1x32xf32>
    %16 = vector.shape_cast %15 : vector<1x1x32xf32> to vector<1x32xf32>
    %cst_19 = arith.constant 0.000000e+00 : f32
    %17 = vector.broadcast %cst_19 : f32 to vector<16x32xf32>
    %18 = vector.extract_strided_slice %4 {offsets = [0, 0], sizes = [16, 8], strides = [1, 1]} : vector<16x32xf32> to vector<16x8xf32>
    %19 = vector.shape_cast %18 : vector<16x8xf32> to vector<2x8x8xf32>
    %20 = vector.extract_strided_slice %5 {offsets = [0, 0], sizes = [16, 8], strides = [1, 1]} : vector<16x32xf32> to vector<16x8xf32>
    %21 = vector.shape_cast %20 : vector<16x8xf32> to vector<2x8x8xf32>
    %22 = vector.extract_strided_slice %6 {offsets = [0, 0], sizes = [16, 8], strides = [1, 1]} : vector<16x32xf32> to vector<16x8xf32>
    %23 = vector.shape_cast %22 : vector<16x8xf32> to vector<2x8x8xf32>
    "tpu.trace_start"() <{level = 10 : i32, message = "bqd,bkd->bqk"}> : () -> ()
    %cst_20 = arith.constant dense<0.000000e+00> : vector<2x8x8xf32>
    %24 = tpu.matmul %19, %21, %cst_20 {dimension_numbers = #tpu.dot_dimension_numbers<[2], [2], [1], [1], [0, 0, 0, 1, 1, 1], [0], [0]>} : vector<2x8x8xf32>, vector<2x8x8xf32>, vector<2x8x8xf32> -> vector<2x8x8xf32>
    "tpu.trace_stop"() : () -> ()
    %cst_21 = arith.constant 0.353553385 : f32
    %25 = vector.broadcast %cst_21 : f32 to vector<2x8x8xf32>
    %26 = arith.mulf %24, %25 : vector<2x8x8xf32>
    %cst_22 = arith.constant -1.000000e+09 : f32
    %27 = vector.broadcast %cst_22 : f32 to vector<2x8x8xf32>
    %28 = arith.select %10, %27, %26 : vector<2x8x8xi1>, vector<2x8x8xf32>
    %cst_23 = arith.constant dense<0xFF800000> : vector<2x8xf32>
    %29 = vector.multi_reduction <maximumf>, %28, %cst_23 [2] : vector<2x8x8xf32> to vector<2x8xf32>
    %30 = vector.shape_cast %29 : vector<2x8xf32> to vector<2x8x1xf32>
    %31 = vector.broadcast %30 : vector<2x8x1xf32> to vector<2x8x8xf32>
    %32 = arith.subf %28, %31 : vector<2x8x8xf32>
    %33 = math.exp %32 : vector<2x8x8xf32>
    %cst_24 = arith.constant dense<0.000000e+00> : vector<2x8xf32>
    %34 = vector.multi_reduction <add>, %33, %cst_24 [2] : vector<2x8x8xf32> to vector<2x8xf32>
    %35 = vector.shape_cast %34 : vector<2x8xf32> to vector<2x8x1xf32>
    %36 = tpu.reciprocal %35 {approx = true} : vector<2x8x1xf32> -> vector<2x8x1xf32>
    %37 = vector.broadcast %36 : vector<2x8x1xf32> to vector<2x8x8xf32>
    %38 = arith.mulf %33, %37 : vector<2x8x8xf32>
    "tpu.trace_start"() <{level = 10 : i32, message = "bqk,bkd->bqd"}> : () -> ()
    %cst_25 = arith.constant dense<0.000000e+00> : vector<2x8x8xf32>
    %39 = tpu.matmul %38, %23, %cst_25 {dimension_numbers = #tpu.dot_dimension_numbers<[2], [1], [1], [2], [0, 0, 0, 1, 1, 2], [0], [0]>} : vector<2x8x8xf32>, vector<2x8x8xf32>, vector<2x8x8xf32> -> vector<2x8x8xf32>
    "tpu.trace_stop"() : () -> ()
    %40 = vector.shape_cast %39 : vector<2x8x8xf32> to vector<16x8xf32>
    %41 = vector.extract_strided_slice %12 {offsets = [0, 0], sizes = [8, 32], strides = [1, 1]} : vector<32x32xf32> to vector<8x32xf32>
    %cst_26 = arith.constant dense<0.000000e+00> : vector<16x32xf32>
    %42 = tpu.matmul %40, %41, %cst_26 {dimension_numbers = #tpu.dot_dimension_numbers<[1], [0], [0], [1], [0, 0, 1, 1], [], []>} : vector<16x8xf32>, vector<8x32xf32>, vector<16x32xf32> -> vector<16x32xf32>
    %43 = arith.addf %17, %42 : vector<16x32xf32>
    %44 = vector.extract_strided_slice %4 {offsets = [0, 8], sizes = [16, 8], strides = [1, 1]} : vector<16x32xf32> to vector<16x8xf32>
    %45 = vector.shape_cast %44 : vector<16x8xf32> to vector<2x8x8xf32>
    %46 = vector.extract_strided_slice %5 {offsets = [0, 8], sizes = [16, 8], strides = [1, 1]} : vector<16x32xf32> to vector<16x8xf32>
    %47 = vector.shape_cast %46 : vector<16x8xf32> to vector<2x8x8xf32>
    %48 = vector.extract_strided_slice %6 {offsets = [0, 8], sizes = [16, 8], strides = [1, 1]} : vector<16x32xf32> to vector<16x8xf32>
    %49 = vector.shape_cast %48 : vector<16x8xf32> to vector<2x8x8xf32>
    "tpu.trace_start"() <{level = 10 : i32, message = "bqd,bkd->bqk"}> : () -> ()
    %cst_27 = arith.constant dense<0.000000e+00> : vector<2x8x8xf32>
    %50 = tpu.matmul %45, %47, %cst_27 {dimension_numbers = #tpu.dot_dimension_numbers<[2], [2], [1], [1], [0, 0, 0, 1, 1, 1], [0], [0]>} : vector<2x8x8xf32>, vector<2x8x8xf32>, vector<2x8x8xf32> -> vector<2x8x8xf32>
    "tpu.trace_stop"() : () -> ()
    %cst_28 = arith.constant 0.353553385 : f32
    %51 = vector.broadcast %cst_28 : f32 to vector<2x8x8xf32>
    %52 = arith.mulf %50, %51 : vector<2x8x8xf32>
    %cst_29 = arith.constant -1.000000e+09 : f32
    %53 = vector.broadcast %cst_29 : f32 to vector<2x8x8xf32>
    %54 = arith.select %10, %53, %52 : vector<2x8x8xi1>, vector<2x8x8xf32>
    %cst_30 = arith.constant dense<0xFF800000> : vector<2x8xf32>
    %55 = vector.multi_reduction <maximumf>, %54, %cst_30 [2] : vector<2x8x8xf32> to vector<2x8xf32>
    %56 = vector.shape_cast %55 : vector<2x8xf32> to vector<2x8x1xf32>
    %57 = vector.broadcast %56 : vector<2x8x1xf32> to vector<2x8x8xf32>
    %58 = arith.subf %54, %57 : vector<2x8x8xf32>
    %59 = math.exp %58 : vector<2x8x8xf32>
    %cst_31 = arith.constant dense<0.000000e+00> : vector<2x8xf32>
    %60 = vector.multi_reduction <add>, %59, %cst_31 [2] : vector<2x8x8xf32> to vector<2x8xf32>
    %61 = vector.shape_cast %60 : vector<2x8xf32> to vector<2x8x1xf32>
    %62 = tpu.reciprocal %61 {approx = true} : vector<2x8x1xf32> -> vector<2x8x1xf32>
    %63 = vector.broadcast %62 : vector<2x8x1xf32> to vector<2x8x8xf32>
    %64 = arith.mulf %59, %63 : vector<2x8x8xf32>
    "tpu.trace_start"() <{level = 10 : i32, message = "bqk,bkd->bqd"}> : () -> ()
    %cst_32 = arith.constant dense<0.000000e+00> : vector<2x8x8xf32>
    %65 = tpu.matmul %64, %49, %cst_32 {dimension_numbers = #tpu.dot_dimension_numbers<[2], [1], [1], [2], [0, 0, 0, 1, 1, 2], [0], [0]>} : vector<2x8x8xf32>, vector<2x8x8xf32>, vector<2x8x8xf32> -> vector<2x8x8xf32>
    "tpu.trace_stop"() : () -> ()
    %66 = vector.shape_cast %65 : vector<2x8x8xf32> to vector<16x8xf32>
    %67 = vector.extract_strided_slice %12 {offsets = [8, 0], sizes = [8, 32], strides = [1, 1]} : vector<32x32xf32> to vector<8x32xf32>
    %cst_33 = arith.constant dense<0.000000e+00> : vector<16x32xf32>
    %68 = tpu.matmul %66, %67, %cst_33 {dimension_numbers = #tpu.dot_dimension_numbers<[1], [0], [0], [1], [0, 0, 1, 1], [], []>} : vector<16x8xf32>, vector<8x32xf32>, vector<16x32xf32> -> vector<16x32xf32>
    %69 = arith.addf %43, %68 : vector<16x32xf32>
    %70 = vector.extract_strided_slice %4 {offsets = [0, 16], sizes = [16, 8], strides = [1, 1]} : vector<16x32xf32> to vector<16x8xf32>
    %71 = vector.shape_cast %70 : vector<16x8xf32> to vector<2x8x8xf32>
    %72 = vector.extract_strided_slice %5 {offsets = [0, 16], sizes = [16, 8], strides = [1, 1]} : vector<16x32xf32> to vector<16x8xf32>
    %73 = vector.shape_cast %72 : vector<16x8xf32> to vector<2x8x8xf32>
    %74 = vector.extract_strided_slice %6 {offsets = [0, 16], sizes = [16, 8], strides = [1, 1]} : vector<16x32xf32> to vector<16x8xf32>
    %75 = vector.shape_cast %74 : vector<16x8xf32> to vector<2x8x8xf32>
    "tpu.trace_start"() <{level = 10 : i32, message = "bqd,bkd->bqk"}> : () -> ()
    %cst_34 = arith.constant dense<0.000000e+00> : vector<2x8x8xf32>
    %76 = tpu.matmul %71, %73, %cst_34 {dimension_numbers = #tpu.dot_dimension_numbers<[2], [2], [1], [1], [0, 0, 0, 1, 1, 1], [0], [0]>} : vector<2x8x8xf32>, vector<2x8x8xf32>, vector<2x8x8xf32> -> vector<2x8x8xf32>
    "tpu.trace_stop"() : () -> ()
    %cst_35 = arith.constant 0.353553385 : f32
    %77 = vector.broadcast %cst_35 : f32 to vector<2x8x8xf32>
    %78 = arith.mulf %76, %77 : vector<2x8x8xf32>
    %cst_36 = arith.constant -1.000000e+09 : f32
    %79 = vector.broadcast %cst_36 : f32 to vector<2x8x8xf32>
    %80 = arith.select %10, %79, %78 : vector<2x8x8xi1>, vector<2x8x8xf32>
    %cst_37 = arith.constant dense<0xFF800000> : vector<2x8xf32>
    %81 = vector.multi_reduction <maximumf>, %80, %cst_37 [2] : vector<2x8x8xf32> to vector<2x8xf32>
    %82 = vector.shape_cast %81 : vector<2x8xf32> to vector<2x8x1xf32>
    %83 = vector.broadcast %82 : vector<2x8x1xf32> to vector<2x8x8xf32>
    %84 = arith.subf %80, %83 : vector<2x8x8xf32>
    %85 = math.exp %84 : vector<2x8x8xf32>
    %cst_38 = arith.constant dense<0.000000e+00> : vector<2x8xf32>
    %86 = vector.multi_reduction <add>, %85, %cst_38 [2] : vector<2x8x8xf32> to vector<2x8xf32>
    %87 = vector.shape_cast %86 : vector<2x8xf32> to vector<2x8x1xf32>
    %88 = tpu.reciprocal %87 {approx = true} : vector<2x8x1xf32> -> vector<2x8x1xf32>
    %89 = vector.broadcast %88 : vector<2x8x1xf32> to vector<2x8x8xf32>
    %90 = arith.mulf %85, %89 : vector<2x8x8xf32>
    "tpu.trace_start"() <{level = 10 : i32, message = "bqk,bkd->bqd"}> : () -> ()
    %cst_39 = arith.constant dense<0.000000e+00> : vector<2x8x8xf32>
    %91 = tpu.matmul %90, %75, %cst_39 {dimension_numbers = #tpu.dot_dimension_numbers<[2], [1], [1], [2], [0, 0, 0, 1, 1, 2], [0], [0]>} : vector<2x8x8xf32>, vector<2x8x8xf32>, vector<2x8x8xf32> -> vector<2x8x8xf32>
    "tpu.trace_stop"() : () -> ()
    %92 = vector.shape_cast %91 : vector<2x8x8xf32> to vector<16x8xf32>
    %93 = vector.extract_strided_slice %12 {offsets = [16, 0], sizes = [8, 32], strides = [1, 1]} : vector<32x32xf32> to vector<8x32xf32>
    %cst_40 = arith.constant dense<0.000000e+00> : vector<16x32xf32>
    %94 = tpu.matmul %92, %93, %cst_40 {dimension_numbers = #tpu.dot_dimension_numbers<[1], [0], [0], [1], [0, 0, 1, 1], [], []>} : vector<16x8xf32>, vector<8x32xf32>, vector<16x32xf32> -> vector<16x32xf32>
    %95 = arith.addf %69, %94 : vector<16x32xf32>
    %96 = vector.extract_strided_slice %4 {offsets = [0, 24], sizes = [16, 8], strides = [1, 1]} : vector<16x32xf32> to vector<16x8xf32>
    %97 = vector.shape_cast %96 : vector<16x8xf32> to vector<2x8x8xf32>
    %98 = vector.extract_strided_slice %5 {offsets = [0, 24], sizes = [16, 8], strides = [1, 1]} : vector<16x32xf32> to vector<16x8xf32>
    %99 = vector.shape_cast %98 : vector<16x8xf32> to vector<2x8x8xf32>
    %100 = vector.extract_strided_slice %6 {offsets = [0, 24], sizes = [16, 8], strides = [1, 1]} : vector<16x32xf32> to vector<16x8xf32>
    %101 = vector.shape_cast %100 : vector<16x8xf32> to vector<2x8x8xf32>
    "tpu.trace_start"() <{level = 10 : i32, message = "bqd,bkd->bqk"}> : () -> ()
    %cst_41 = arith.constant dense<0.000000e+00> : vector<2x8x8xf32>
    %102 = tpu.matmul %97, %99, %cst_41 {dimension_numbers = #tpu.dot_dimension_numbers<[2], [2], [1], [1], [0, 0, 0, 1, 1, 1], [0], [0]>} : vector<2x8x8xf32>, vector<2x8x8xf32>, vector<2x8x8xf32> -> vector<2x8x8xf32>
    "tpu.trace_stop"() : () -> ()
    %cst_42 = arith.constant 0.353553385 : f32
    %103 = vector.broadcast %cst_42 : f32 to vector<2x8x8xf32>
    %104 = arith.mulf %102, %103 : vector<2x8x8xf32>
    %cst_43 = arith.constant -1.000000e+09 : f32
    %105 = vector.broadcast %cst_43 : f32 to vector<2x8x8xf32>
    %106 = arith.select %10, %105, %104 : vector<2x8x8xi1>, vector<2x8x8xf32>
    %cst_44 = arith.constant dense<0xFF800000> : vector<2x8xf32>
    %107 = vector.multi_reduction <maximumf>, %106, %cst_44 [2] : vector<2x8x8xf32> to vector<2x8xf32>
    %108 = vector.shape_cast %107 : vector<2x8xf32> to vector<2x8x1xf32>
    %109 = vector.broadcast %108 : vector<2x8x1xf32> to vector<2x8x8xf32>
    %110 = arith.subf %106, %109 : vector<2x8x8xf32>
    %111 = math.exp %110 : vector<2x8x8xf32>
    %cst_45 = arith.constant dense<0.000000e+00> : vector<2x8xf32>
    %112 = vector.multi_reduction <add>, %111, %cst_45 [2] : vector<2x8x8xf32> to vector<2x8xf32>
    %113 = vector.shape_cast %112 : vector<2x8xf32> to vector<2x8x1xf32>
    %114 = tpu.reciprocal %113 {approx = true} : vector<2x8x1xf32> -> vector<2x8x1xf32>
    %115 = vector.broadcast %114 : vector<2x8x1xf32> to vector<2x8x8xf32>
    %116 = arith.mulf %111, %115 : vector<2x8x8xf32>
    "tpu.trace_start"() <{level = 10 : i32, message = "bqk,bkd->bqd"}> : () -> ()
    %cst_46 = arith.constant dense<0.000000e+00> : vector<2x8x8xf32>
    %117 = tpu.matmul %116, %101, %cst_46 {dimension_numbers = #tpu.dot_dimension_numbers<[2], [1], [1], [2], [0, 0, 0, 1, 1, 2], [0], [0]>} : vector<2x8x8xf32>, vector<2x8x8xf32>, vector<2x8x8xf32> -> vector<2x8x8xf32>
    "tpu.trace_stop"() : () -> ()
    %118 = vector.shape_cast %117 : vector<2x8x8xf32> to vector<16x8xf32>
    %119 = vector.extract_strided_slice %12 {offsets = [24, 0], sizes = [8, 32], strides = [1, 1]} : vector<32x32xf32> to vector<8x32xf32>
    %cst_47 = arith.constant dense<0.000000e+00> : vector<16x32xf32>
    %120 = tpu.matmul %118, %119, %cst_47 {dimension_numbers = #tpu.dot_dimension_numbers<[1], [0], [0], [1], [0, 0, 1, 1], [], []>} : vector<16x8xf32>, vector<8x32xf32>, vector<16x32xf32> -> vector<16x32xf32>
    %121 = arith.addf %95, %120 : vector<16x32xf32>
    %122 = arith.addf %121, %0 : vector<16x32xf32>
    %cst_48 = arith.constant dense<0.000000e+00> : vector<16xf32>
    %123 = vector.multi_reduction <add>, %122, %cst_48 [1] : vector<16x32xf32> to vector<16xf32>
    %124 = vector.shape_cast %123 : vector<16xf32> to vector<16x1xf32>
    %cst_49 = arith.constant 3.200000e+01 : f32
    %125 = vector.broadcast %cst_49 : f32 to vector<16x1xf32>
    %126 = arith.divf %124, %125 : vector<16x1xf32>
    %127 = vector.broadcast %126 : vector<16x1xf32> to vector<16x32xf32>
    %128 = arith.subf %122, %127 : vector<16x32xf32>
    %129 = arith.mulf %128, %128 : vector<16x32xf32>
    %cst_50 = arith.constant dense<0.000000e+00> : vector<16xf32>
    %130 = vector.multi_reduction <add>, %129, %cst_50 [1] : vector<16x32xf32> to vector<16xf32>
    %131 = vector.shape_cast %130 : vector<16xf32> to vector<16x1xf32>
    %cst_51 = arith.constant 3.200000e+01 : f32
    %132 = vector.broadcast %cst_51 : f32 to vector<16x1xf32>
    %133 = arith.divf %131, %132 : vector<16x1xf32>
    %134 = vector.broadcast %126 : vector<16x1xf32> to vector<16x32xf32>
    %135 = arith.subf %122, %134 : vector<16x32xf32>
    %cst_52 = arith.constant 9.99999997E-7 : f32
    %136 = vector.broadcast %cst_52 : f32 to vector<16x1xf32>
    %137 = arith.addf %133, %136 : vector<16x1xf32>
    %138 = math.rsqrt %137 : vector<16x1xf32>
    %139 = vector.broadcast %138 : vector<16x1xf32> to vector<16x32xf32>
    %140 = arith.mulf %135, %139 : vector<16x32xf32>
    %141 = vector.broadcast %14 : vector<1x32xf32> to vector<16x32xf32>
    %142 = arith.mulf %140, %141 : vector<16x32xf32>
    %143 = vector.broadcast %16 : vector<1x32xf32> to vector<16x32xf32>
    %144 = arith.addf %142, %143 : vector<16x32xf32>
    %c0_53 = arith.constant 0 : index
    %c0_54 = arith.constant 0 : index
    %145 = vector.load %arg7[%c0_53, %c0_54] : memref<32x32xf32, #tpu.memory_space<vmem>>, vector<32x32xf32>
    %cst_55 = arith.constant dense<0.000000e+00> : vector<16x32xf32>
    %146 = tpu.matmul %144, %145, %cst_55 {dimension_numbers = #tpu.dot_dimension_numbers<[1], [0], [0], [1], [0, 0, 1, 1], [], []>} : vector<16x32xf32>, vector<32x32xf32>, vector<16x32xf32> -> vector<16x32xf32>
    %c0_56 = arith.constant 0 : index
    %c0_57 = arith.constant 0 : index
    %147 = vector.load %arg8[%c0_56, %c0_57] : memref<32x128xf32, #tpu.memory_space<vmem>>, vector<32x128xf32>
    %cst_58 = arith.constant dense<0.000000e+00> : vector<16x128xf32>
    %148 = tpu.matmul %1, %147, %cst_58 {dimension_numbers = #tpu.dot_dimension_numbers<[1], [0], [0], [1], [0, 0, 1, 1], [], []>} : vector<16x32xf32>, vector<32x128xf32>, vector<16x128xf32> -> vector<16x128xf32>
    %149 = vector.extract_strided_slice %148 {offsets = [0, 0], sizes = [16, 32], strides = [1, 1]} : vector<16x128xf32> to vector<16x32xf32>
    %150 = vector.extract_strided_slice %148 {offsets = [0, 32], sizes = [16, 32], strides = [1, 1]} : vector<16x128xf32> to vector<16x32xf32>
    %c0_59 = arith.constant 0 : index
    %c0_60 = arith.constant 0 : index
    %151 = vector.load %arg9[%c0_59, %c0_60] : memref<32x32xf32, #tpu.memory_space<vmem>>, vector<32x32xf32>
    %c0_61 = arith.constant 0 : index
    %c0_62 = arith.constant 0 : index
    %152 = vector.load %arg10[%c0_61, %c0_62] : memref<1x32xf32, #tpu.memory_space<vmem>>, vector<1x32xf32>
    %c0_63 = arith.constant 0 : index
    %c0_64 = arith.constant 0 : index
    %153 = vector.load %arg11[%c0_63, %c0_64] : memref<1x32xf32, #tpu.memory_space<vmem>>, vector<1x32xf32>
    %cst_65 = arith.constant 0.000000e+00 : f32
    %154 = vector.broadcast %cst_65 : f32 to vector<16x32xf32>
    %155 = vector.extract_strided_slice %146 {offsets = [0, 0], sizes = [16, 8], strides = [1, 1]} : vector<16x32xf32> to vector<16x8xf32>
    %156 = vector.shape_cast %155 : vector<16x8xf32> to vector<2x8x8xf32>
    %157 = vector.extract_strided_slice %149 {offsets = [0, 0], sizes = [16, 8], strides = [1, 1]} : vector<16x32xf32> to vector<16x8xf32>
    %158 = vector.shape_cast %157 : vector<16x8xf32> to vector<2x8x8xf32>
    %159 = vector.extract_strided_slice %150 {offsets = [0, 0], sizes = [16, 8], strides = [1, 1]} : vector<16x32xf32> to vector<16x8xf32>
    %160 = vector.shape_cast %159 : vector<16x8xf32> to vector<2x8x8xf32>
    "tpu.trace_start"() <{level = 10 : i32, message = "bqd,bkd->bqk"}> : () -> ()
    %cst_66 = arith.constant dense<0.000000e+00> : vector<2x8x8xf32>
    %161 = tpu.matmul %156, %158, %cst_66 {dimension_numbers = #tpu.dot_dimension_numbers<[2], [2], [1], [1], [0, 0, 0, 1, 1, 1], [0], [0]>} : vector<2x8x8xf32>, vector<2x8x8xf32>, vector<2x8x8xf32> -> vector<2x8x8xf32>
    "tpu.trace_stop"() : () -> ()
    %cst_67 = arith.constant 0.353553385 : f32
    %162 = vector.broadcast %cst_67 : f32 to vector<2x8x8xf32>
    %163 = arith.mulf %161, %162 : vector<2x8x8xf32>
    %cst_68 = arith.constant dense<0xFF800000> : vector<2x8xf32>
    %164 = vector.multi_reduction <maximumf>, %163, %cst_68 [2] : vector<2x8x8xf32> to vector<2x8xf32>
    %165 = vector.shape_cast %164 : vector<2x8xf32> to vector<2x8x1xf32>
    %166 = vector.broadcast %165 : vector<2x8x1xf32> to vector<2x8x8xf32>
    %167 = arith.subf %163, %166 : vector<2x8x8xf32>
    %168 = math.exp %167 : vector<2x8x8xf32>
    %cst_69 = arith.constant dense<0.000000e+00> : vector<2x8xf32>
    %169 = vector.multi_reduction <add>, %168, %cst_69 [2] : vector<2x8x8xf32> to vector<2x8xf32>
    %170 = vector.shape_cast %169 : vector<2x8xf32> to vector<2x8x1xf32>
    %171 = tpu.reciprocal %170 {approx = true} : vector<2x8x1xf32> -> vector<2x8x1xf32>
    %172 = vector.broadcast %171 : vector<2x8x1xf32> to vector<2x8x8xf32>
    %173 = arith.mulf %168, %172 : vector<2x8x8xf32>
    "tpu.trace_start"() <{level = 10 : i32, message = "bqk,bkd->bqd"}> : () -> ()
    %cst_70 = arith.constant dense<0.000000e+00> : vector<2x8x8xf32>
    %174 = tpu.matmul %173, %160, %cst_70 {dimension_numbers = #tpu.dot_dimension_numbers<[2], [1], [1], [2], [0, 0, 0, 1, 1, 2], [0], [0]>} : vector<2x8x8xf32>, vector<2x8x8xf32>, vector<2x8x8xf32> -> vector<2x8x8xf32>
    "tpu.trace_stop"() : () -> ()
    %175 = vector.shape_cast %174 : vector<2x8x8xf32> to vector<16x8xf32>
    %176 = vector.extract_strided_slice %151 {offsets = [0, 0], sizes = [8, 32], strides = [1, 1]} : vector<32x32xf32> to vector<8x32xf32>
    %cst_71 = arith.constant dense<0.000000e+00> : vector<16x32xf32>
    %177 = tpu.matmul %175, %176, %cst_71 {dimension_numbers = #tpu.dot_dimension_numbers<[1], [0], [0], [1], [0, 0, 1, 1], [], []>} : vector<16x8xf32>, vector<8x32xf32>, vector<16x32xf32> -> vector<16x32xf32>
    %178 = arith.addf %154, %177 : vector<16x32xf32>
    %179 = vector.extract_strided_slice %146 {offsets = [0, 8], sizes = [16, 8], strides = [1, 1]} : vector<16x32xf32> to vector<16x8xf32>
    %180 = vector.shape_cast %179 : vector<16x8xf32> to vector<2x8x8xf32>
    %181 = vector.extract_strided_slice %149 {offsets = [0, 8], sizes = [16, 8], strides = [1, 1]} : vector<16x32xf32> to vector<16x8xf32>
    %182 = vector.shape_cast %181 : vector<16x8xf32> to vector<2x8x8xf32>
    %183 = vector.extract_strided_slice %150 {offsets = [0, 8], sizes = [16, 8], strides = [1, 1]} : vector<16x32xf32> to vector<16x8xf32>
    %184 = vector.shape_cast %183 : vector<16x8xf32> to vector<2x8x8xf32>
    "tpu.trace_start"() <{level = 10 : i32, message = "bqd,bkd->bqk"}> : () -> ()
    %cst_72 = arith.constant dense<0.000000e+00> : vector<2x8x8xf32>
    %185 = tpu.matmul %180, %182, %cst_72 {dimension_numbers = #tpu.dot_dimension_numbers<[2], [2], [1], [1], [0, 0, 0, 1, 1, 1], [0], [0]>} : vector<2x8x8xf32>, vector<2x8x8xf32>, vector<2x8x8xf32> -> vector<2x8x8xf32>
    "tpu.trace_stop"() : () -> ()
    %cst_73 = arith.constant 0.353553385 : f32
    %186 = vector.broadcast %cst_73 : f32 to vector<2x8x8xf32>
    %187 = arith.mulf %185, %186 : vector<2x8x8xf32>
    %cst_74 = arith.constant dense<0xFF800000> : vector<2x8xf32>
    %188 = vector.multi_reduction <maximumf>, %187, %cst_74 [2] : vector<2x8x8xf32> to vector<2x8xf32>
    %189 = vector.shape_cast %188 : vector<2x8xf32> to vector<2x8x1xf32>
    %190 = vector.broadcast %189 : vector<2x8x1xf32> to vector<2x8x8xf32>
    %191 = arith.subf %187, %190 : vector<2x8x8xf32>
    %192 = math.exp %191 : vector<2x8x8xf32>
    %cst_75 = arith.constant dense<0.000000e+00> : vector<2x8xf32>
    %193 = vector.multi_reduction <add>, %192, %cst_75 [2] : vector<2x8x8xf32> to vector<2x8xf32>
    %194 = vector.shape_cast %193 : vector<2x8xf32> to vector<2x8x1xf32>
    %195 = tpu.reciprocal %194 {approx = true} : vector<2x8x1xf32> -> vector<2x8x1xf32>
    %196 = vector.broadcast %195 : vector<2x8x1xf32> to vector<2x8x8xf32>
    %197 = arith.mulf %192, %196 : vector<2x8x8xf32>
    "tpu.trace_start"() <{level = 10 : i32, message = "bqk,bkd->bqd"}> : () -> ()
    %cst_76 = arith.constant dense<0.000000e+00> : vector<2x8x8xf32>
    %198 = tpu.matmul %197, %184, %cst_76 {dimension_numbers = #tpu.dot_dimension_numbers<[2], [1], [1], [2], [0, 0, 0, 1, 1, 2], [0], [0]>} : vector<2x8x8xf32>, vector<2x8x8xf32>, vector<2x8x8xf32> -> vector<2x8x8xf32>
    "tpu.trace_stop"() : () -> ()
    %199 = vector.shape_cast %198 : vector<2x8x8xf32> to vector<16x8xf32>
    %200 = vector.extract_strided_slice %151 {offsets = [8, 0], sizes = [8, 32], strides = [1, 1]} : vector<32x32xf32> to vector<8x32xf32>
    %cst_77 = arith.constant dense<0.000000e+00> : vector<16x32xf32>
    %201 = tpu.matmul %199, %200, %cst_77 {dimension_numbers = #tpu.dot_dimension_numbers<[1], [0], [0], [1], [0, 0, 1, 1], [], []>} : vector<16x8xf32>, vector<8x32xf32>, vector<16x32xf32> -> vector<16x32xf32>
    %202 = arith.addf %178, %201 : vector<16x32xf32>
    %203 = vector.extract_strided_slice %146 {offsets = [0, 16], sizes = [16, 8], strides = [1, 1]} : vector<16x32xf32> to vector<16x8xf32>
    %204 = vector.shape_cast %203 : vector<16x8xf32> to vector<2x8x8xf32>
    %205 = vector.extract_strided_slice %149 {offsets = [0, 16], sizes = [16, 8], strides = [1, 1]} : vector<16x32xf32> to vector<16x8xf32>
    %206 = vector.shape_cast %205 : vector<16x8xf32> to vector<2x8x8xf32>
    %207 = vector.extract_strided_slice %150 {offsets = [0, 16], sizes = [16, 8], strides = [1, 1]} : vector<16x32xf32> to vector<16x8xf32>
    %208 = vector.shape_cast %207 : vector<16x8xf32> to vector<2x8x8xf32>
    "tpu.trace_start"() <{level = 10 : i32, message = "bqd,bkd->bqk"}> : () -> ()
    %cst_78 = arith.constant dense<0.000000e+00> : vector<2x8x8xf32>
    %209 = tpu.matmul %204, %206, %cst_78 {dimension_numbers = #tpu.dot_dimension_numbers<[2], [2], [1], [1], [0, 0, 0, 1, 1, 1], [0], [0]>} : vector<2x8x8xf32>, vector<2x8x8xf32>, vector<2x8x8xf32> -> vector<2x8x8xf32>
    "tpu.trace_stop"() : () -> ()
    %cst_79 = arith.constant 0.353553385 : f32
    %210 = vector.broadcast %cst_79 : f32 to vector<2x8x8xf32>
    %211 = arith.mulf %209, %210 : vector<2x8x8xf32>
    %cst_80 = arith.constant dense<0xFF800000> : vector<2x8xf32>
    %212 = vector.multi_reduction <maximumf>, %211, %cst_80 [2] : vector<2x8x8xf32> to vector<2x8xf32>
    %213 = vector.shape_cast %212 : vector<2x8xf32> to vector<2x8x1xf32>
    %214 = vector.broadcast %213 : vector<2x8x1xf32> to vector<2x8x8xf32>
    %215 = arith.subf %211, %214 : vector<2x8x8xf32>
    %216 = math.exp %215 : vector<2x8x8xf32>
    %cst_81 = arith.constant dense<0.000000e+00> : vector<2x8xf32>
    %217 = vector.multi_reduction <add>, %216, %cst_81 [2] : vector<2x8x8xf32> to vector<2x8xf32>
    %218 = vector.shape_cast %217 : vector<2x8xf32> to vector<2x8x1xf32>
    %219 = tpu.reciprocal %218 {approx = true} : vector<2x8x1xf32> -> vector<2x8x1xf32>
    %220 = vector.broadcast %219 : vector<2x8x1xf32> to vector<2x8x8xf32>
    %221 = arith.mulf %216, %220 : vector<2x8x8xf32>
    "tpu.trace_start"() <{level = 10 : i32, message = "bqk,bkd->bqd"}> : () -> ()
    %cst_82 = arith.constant dense<0.000000e+00> : vector<2x8x8xf32>
    %222 = tpu.matmul %221, %208, %cst_82 {dimension_numbers = #tpu.dot_dimension_numbers<[2], [1], [1], [2], [0, 0, 0, 1, 1, 2], [0], [0]>} : vector<2x8x8xf32>, vector<2x8x8xf32>, vector<2x8x8xf32> -> vector<2x8x8xf32>
    "tpu.trace_stop"() : () -> ()
    %223 = vector.shape_cast %222 : vector<2x8x8xf32> to vector<16x8xf32>
    %224 = vector.extract_strided_slice %151 {offsets = [16, 0], sizes = [8, 32], strides = [1, 1]} : vector<32x32xf32> to vector<8x32xf32>
    %cst_83 = arith.constant dense<0.000000e+00> : vector<16x32xf32>
    %225 = tpu.matmul %223, %224, %cst_83 {dimension_numbers = #tpu.dot_dimension_numbers<[1], [0], [0], [1], [0, 0, 1, 1], [], []>} : vector<16x8xf32>, vector<8x32xf32>, vector<16x32xf32> -> vector<16x32xf32>
    %226 = arith.addf %202, %225 : vector<16x32xf32>
    %227 = vector.extract_strided_slice %146 {offsets = [0, 24], sizes = [16, 8], strides = [1, 1]} : vector<16x32xf32> to vector<16x8xf32>
    %228 = vector.shape_cast %227 : vector<16x8xf32> to vector<2x8x8xf32>
    %229 = vector.extract_strided_slice %149 {offsets = [0, 24], sizes = [16, 8], strides = [1, 1]} : vector<16x32xf32> to vector<16x8xf32>
    %230 = vector.shape_cast %229 : vector<16x8xf32> to vector<2x8x8xf32>
    %231 = vector.extract_strided_slice %150 {offsets = [0, 24], sizes = [16, 8], strides = [1, 1]} : vector<16x32xf32> to vector<16x8xf32>
    %232 = vector.shape_cast %231 : vector<16x8xf32> to vector<2x8x8xf32>
    "tpu.trace_start"() <{level = 10 : i32, message = "bqd,bkd->bqk"}> : () -> ()
    %cst_84 = arith.constant dense<0.000000e+00> : vector<2x8x8xf32>
    %233 = tpu.matmul %228, %230, %cst_84 {dimension_numbers = #tpu.dot_dimension_numbers<[2], [2], [1], [1], [0, 0, 0, 1, 1, 1], [0], [0]>} : vector<2x8x8xf32>, vector<2x8x8xf32>, vector<2x8x8xf32> -> vector<2x8x8xf32>
    "tpu.trace_stop"() : () -> ()
    %cst_85 = arith.constant 0.353553385 : f32
    %234 = vector.broadcast %cst_85 : f32 to vector<2x8x8xf32>
    %235 = arith.mulf %233, %234 : vector<2x8x8xf32>
    %cst_86 = arith.constant dense<0xFF800000> : vector<2x8xf32>
    %236 = vector.multi_reduction <maximumf>, %235, %cst_86 [2] : vector<2x8x8xf32> to vector<2x8xf32>
    %237 = vector.shape_cast %236 : vector<2x8xf32> to vector<2x8x1xf32>
    %238 = vector.broadcast %237 : vector<2x8x1xf32> to vector<2x8x8xf32>
    %239 = arith.subf %235, %238 : vector<2x8x8xf32>
    %240 = math.exp %239 : vector<2x8x8xf32>
    %cst_87 = arith.constant dense<0.000000e+00> : vector<2x8xf32>
    %241 = vector.multi_reduction <add>, %240, %cst_87 [2] : vector<2x8x8xf32> to vector<2x8xf32>
    %242 = vector.shape_cast %241 : vector<2x8xf32> to vector<2x8x1xf32>
    %243 = tpu.reciprocal %242 {approx = true} : vector<2x8x1xf32> -> vector<2x8x1xf32>
    %244 = vector.broadcast %243 : vector<2x8x1xf32> to vector<2x8x8xf32>
    %245 = arith.mulf %240, %244 : vector<2x8x8xf32>
    "tpu.trace_start"() <{level = 10 : i32, message = "bqk,bkd->bqd"}> : () -> ()
    %cst_88 = arith.constant dense<0.000000e+00> : vector<2x8x8xf32>
    %246 = tpu.matmul %245, %232, %cst_88 {dimension_numbers = #tpu.dot_dimension_numbers<[2], [1], [1], [2], [0, 0, 0, 1, 1, 2], [0], [0]>} : vector<2x8x8xf32>, vector<2x8x8xf32>, vector<2x8x8xf32> -> vector<2x8x8xf32>
    "tpu.trace_stop"() : () -> ()
    %247 = vector.shape_cast %246 : vector<2x8x8xf32> to vector<16x8xf32>
    %248 = vector.extract_strided_slice %151 {offsets = [24, 0], sizes = [8, 32], strides = [1, 1]} : vector<32x32xf32> to vector<8x32xf32>
    %cst_89 = arith.constant dense<0.000000e+00> : vector<16x32xf32>
    %249 = tpu.matmul %247, %248, %cst_89 {dimension_numbers = #tpu.dot_dimension_numbers<[1], [0], [0], [1], [0, 0, 1, 1], [], []>} : vector<16x8xf32>, vector<8x32xf32>, vector<16x32xf32> -> vector<16x32xf32>
    %250 = arith.addf %226, %249 : vector<16x32xf32>
    %251 = arith.addf %250, %144 : vector<16x32xf32>
    %cst_90 = arith.constant dense<0.000000e+00> : vector<16xf32>
    %252 = vector.multi_reduction <add>, %251, %cst_90 [1] : vector<16x32xf32> to vector<16xf32>
    %253 = vector.shape_cast %252 : vector<16xf32> to vector<16x1xf32>
    %cst_91 = arith.constant 3.200000e+01 : f32
    %254 = vector.broadcast %cst_91 : f32 to vector<16x1xf32>
    %255 = arith.divf %253, %254 : vector<16x1xf32>
    %256 = vector.broadcast %255 : vector<16x1xf32> to vector<16x32xf32>
    %257 = arith.subf %251, %256 : vector<16x32xf32>
    %258 = arith.mulf %257, %257 : vector<16x32xf32>
    %cst_92 = arith.constant dense<0.000000e+00> : vector<16xf32>
    %259 = vector.multi_reduction <add>, %258, %cst_92 [1] : vector<16x32xf32> to vector<16xf32>
    %260 = vector.shape_cast %259 : vector<16xf32> to vector<16x1xf32>
    %cst_93 = arith.constant 3.200000e+01 : f32
    %261 = vector.broadcast %cst_93 : f32 to vector<16x1xf32>
    %262 = arith.divf %260, %261 : vector<16x1xf32>
    %263 = vector.broadcast %255 : vector<16x1xf32> to vector<16x32xf32>
    %264 = arith.subf %251, %263 : vector<16x32xf32>
    %cst_94 = arith.constant 9.99999997E-7 : f32
    %265 = vector.broadcast %cst_94 : f32 to vector<16x1xf32>
    %266 = arith.addf %262, %265 : vector<16x1xf32>
    %267 = math.rsqrt %266 : vector<16x1xf32>
    %268 = vector.broadcast %267 : vector<16x1xf32> to vector<16x32xf32>
    %269 = arith.mulf %264, %268 : vector<16x32xf32>
    %270 = vector.broadcast %152 : vector<1x32xf32> to vector<16x32xf32>
    %271 = arith.mulf %269, %270 : vector<16x32xf32>
    %272 = vector.broadcast %153 : vector<1x32xf32> to vector<16x32xf32>
    %273 = arith.addf %271, %272 : vector<16x32xf32>
    %c0_95 = arith.constant 0 : index
    %c0_96 = arith.constant 0 : index
    %274 = vector.load %arg12[%c0_95, %c0_96] : memref<32x64xf32, #tpu.memory_space<vmem>>, vector<32x64xf32>
    %cst_97 = arith.constant dense<0.000000e+00> : vector<16x64xf32>
    %275 = tpu.matmul %273, %274, %cst_97 {dimension_numbers = #tpu.dot_dimension_numbers<[1], [0], [0], [1], [0, 0, 1, 1], [], []>} : vector<16x32xf32>, vector<32x64xf32>, vector<16x64xf32> -> vector<16x64xf32>
    %c0_98 = arith.constant 0 : index
    %c0_99 = arith.constant 0 : index
    %276 = vector.load %arg13[%c0_98, %c0_99] : memref<1x64xf32, #tpu.memory_space<vmem>>, vector<1x64xf32>
    %277 = vector.broadcast %276 : vector<1x64xf32> to vector<16x64xf32>
    %278 = arith.addf %275, %277 : vector<16x64xf32>
    %cst_100 = arith.constant 0.000000e+00 : f32
    %279 = vector.broadcast %cst_100 : f32 to vector<16x64xf32>
    %280 = arith.maximumf %278, %279 : vector<16x64xf32>
    %c0_101 = arith.constant 0 : index
    %c0_102 = arith.constant 0 : index
    %281 = vector.load %arg14[%c0_101, %c0_102] : memref<64x32xf32, #tpu.memory_space<vmem>>, vector<64x32xf32>
    %cst_103 = arith.constant dense<0.000000e+00> : vector<16x32xf32>
    %282 = tpu.matmul %280, %281, %cst_103 {dimension_numbers = #tpu.dot_dimension_numbers<[1], [0], [0], [1], [0, 0, 1, 1], [], []>} : vector<16x64xf32>, vector<64x32xf32>, vector<16x32xf32> -> vector<16x32xf32>
    %c0_104 = arith.constant 0 : index
    %c0_105 = arith.constant 0 : index
    %283 = vector.load %arg15[%c0_104, %c0_105] : memref<1x32xf32, #tpu.memory_space<vmem>>, vector<1x32xf32>
    %284 = vector.broadcast %283 : vector<1x32xf32> to vector<16x32xf32>
    %285 = arith.addf %282, %284 : vector<16x32xf32>
    %286 = arith.addf %285, %273 : vector<16x32xf32>
    %c0_106 = arith.constant 0 : index
    %c0_107 = arith.constant 0 : index
    %287 = vector.load %arg16[%c0_106, %c0_107] : memref<1x32xf32, #tpu.memory_space<vmem>>, vector<1x32xf32>
    %c0_108 = arith.constant 0 : index
    %c0_109 = arith.constant 0 : index
    %288 = vector.load %arg17[%c0_108, %c0_109] : memref<1x32xf32, #tpu.memory_space<vmem>>, vector<1x32xf32>
    %cst_110 = arith.constant dense<0.000000e+00> : vector<16xf32>
    %289 = vector.multi_reduction <add>, %286, %cst_110 [1] : vector<16x32xf32> to vector<16xf32>
    %290 = vector.shape_cast %289 : vector<16xf32> to vector<16x1xf32>
    %cst_111 = arith.constant 3.200000e+01 : f32
    %291 = vector.broadcast %cst_111 : f32 to vector<16x1xf32>
    %292 = arith.divf %290, %291 : vector<16x1xf32>
    %293 = vector.broadcast %292 : vector<16x1xf32> to vector<16x32xf32>
    %294 = arith.subf %286, %293 : vector<16x32xf32>
    %295 = arith.mulf %294, %294 : vector<16x32xf32>
    %cst_112 = arith.constant dense<0.000000e+00> : vector<16xf32>
    %296 = vector.multi_reduction <add>, %295, %cst_112 [1] : vector<16x32xf32> to vector<16xf32>
    %297 = vector.shape_cast %296 : vector<16xf32> to vector<16x1xf32>
    %cst_113 = arith.constant 3.200000e+01 : f32
    %298 = vector.broadcast %cst_113 : f32 to vector<16x1xf32>
    %299 = arith.divf %297, %298 : vector<16x1xf32>
    %300 = vector.broadcast %292 : vector<16x1xf32> to vector<16x32xf32>
    %301 = arith.subf %286, %300 : vector<16x32xf32>
    %cst_114 = arith.constant 9.99999997E-7 : f32
    %302 = vector.broadcast %cst_114 : f32 to vector<16x1xf32>
    %303 = arith.addf %299, %302 : vector<16x1xf32>
    %304 = math.rsqrt %303 : vector<16x1xf32>
    %305 = vector.broadcast %304 : vector<16x1xf32> to vector<16x32xf32>
    %306 = arith.mulf %301, %305 : vector<16x32xf32>
    %307 = vector.broadcast %287 : vector<1x32xf32> to vector<16x32xf32>
    %308 = arith.mulf %306, %307 : vector<16x32xf32>
    %309 = vector.broadcast %288 : vector<1x32xf32> to vector<16x32xf32>
    %310 = arith.addf %308, %309 : vector<16x32xf32>
    %c0_115 = arith.constant 0 : index
    %c0_116 = arith.constant 0 : index
    %311 = vector.load %arg18[%c0_115, %c0_116] : memref<16x32xf32, #tpu.memory_space<vmem>>, vector<16x32xf32>
    tpu.vector_store %arg18[%c0_115, %c0_116], %310 {strides = array<i32>} : memref<16x32xf32, #tpu.memory_space<vmem>>, vector<16x32xf32>,
    return
  }
}

</mosaic_0001>

<llo_original>
// kernel: tpu_custom_call.1
$region0: #{tpu_custom_call.1}
  #allocation0 [shape = 'u32[]', space=smem, size = 0x4, offset = 0x4, fixed_abs, tag = 'smem constant byte address 0x4 - core index']
  #allocation1 [shape = 'u32[144,128]{1,0:T(1,128)}', space=vmem, size = 0x12000, scoped, tag = 'internal scratch']
  %s0 = inlined_call_operand.hbm [shape: f32[16,32], index: 0, kind: input, shape index: {}]
  %s1 = inlined_call_operand.hbm [shape: f32[16,32], index: 1, kind: input, shape index: {}]
  %s2 = inlined_call_operand.hbm [shape: f32[1,2,8,8], index: 2, kind: input, shape index: {}]
  %s3 = inlined_call_operand.vmem [shape: f32[32,128], index: 3, kind: input, shape index: {}]
  %s4 = inlined_call_operand.vmem [shape: f32[1,32,32], index: 4, kind: input, shape index: {}]
  %s5 = inlined_call_operand.vmem [shape: f32[1,1,32], index: 5, kind: input, shape index: {}]
  %s6 = inlined_call_operand.vmem [shape: f32[1,1,32], index: 6, kind: input, shape index: {}]
  %s7 = inlined_call_operand.vmem [shape: f32[32,32], index: 7, kind: input, shape index: {}]
  %s8 = inlined_call_operand.hbm [shape: f32[32,128], index: 8, kind: input, shape index: {}]
  %s9 = inlined_call_operand.hbm [shape: f32[32,32], index: 9, kind: input, shape index: {}]
  %s10 = inlined_call_operand.vmem [shape: f32[1,32], index: 10, kind: input, shape index: {}]
  %s11 = inlined_call_operand.vmem [shape: f32[1,32], index: 11, kind: input, shape index: {}]
  %s12 = inlined_call_operand.hbm [shape: f32[32,64], index: 12, kind: input, shape index: {}]
  %s13 = inlined_call_operand.vmem [shape: f32[1,64], index: 13, kind: input, shape index: {}]
  %s14 = inlined_call_operand.vmem [shape: f32[64,32], index: 14, kind: input, shape index: {}]
  %s15 = inlined_call_operand.vmem [shape: f32[1,32], index: 15, kind: input, shape index: {}]
  %s16 = inlined_call_operand.vmem [shape: f32[1,32], index: 16, kind: input, shape index: {}]
  %s17 = inlined_call_operand.vmem [shape: f32[1,32], index: 17, kind: input, shape index: {}]
  %s18 = inlined_call_operand.hbm [shape: f32[16,32], index: 18, kind: output, shape index: {}]
  %s19 = sld [smem:[#allocation0]]
  $region106: #{tpu_custom_call.1} parent=0
    _
  %s21 = ssub.s32 1, %s19
  %s22 = scalar_select 0, %s21, %s19
  $region1: #{tpu_custom_call.1} parent=0
    #allocation2 [shape = 'u8[8192]{0}', space=vmem, size = 0x2000, scoped, tag = 'input window, operand 0, single buffered']
    #allocation3 [shape = 's32[1]{0}', space=sflag, size = 0x4, scoped, tag = 'scoped memory for tpu_custom_call.1']
    #allocation4 [shape = 's32[1]{0}', space=sflag, size = 0x4, scoped, tag = 'scoped memory for tpu_custom_call.1']
    #allocation5 [shape = 'u8[8192]{0}', space=vmem, size = 0x2000, scoped, tag = 'input window, operand 1, single buffered']
    #allocation6 [shape = 's32[1]{0}', space=sflag, size = 0x4, scoped, tag = 'scoped memory for tpu_custom_call.1']
    #allocation7 [shape = 'u8[8192]{0}', space=vmem, size = 0x2000, scoped, tag = 'input window, operand 2, single buffered']
    #allocation8 [shape = 'u8[16384]{0}', space=vmem, size = 0x4000, scoped, tag = 'input window, operand 8, single buffered']
    #allocation9 [shape = 's32[1]{0}', space=sflag, size = 0x4, scoped, tag = 'scoped memory for tpu_custom_call.1']
    #allocation10 [shape = 'u8[16384]{0}', space=vmem, size = 0x4000, scoped, tag = 'input window, operand 9, single buffered']
    #allocation11 [shape = 'u8[16384]{0}', space=vmem, size = 0x4000, scoped, tag = 'input window, operand 12, single buffered']
    #allocation12 [shape = 's32[1]{0}', space=sflag, size = 0x4, scoped, tag = 'scoped memory for tpu_custom_call.1']
    #allocation13 [shape = 'u8[8192]{0}', space=vmem, size = 0x2000, scoped, tag = 'output window, operand 0, single buffered']
    %23 = vsyncpa [#allocation3], 0
    %24 = vsyncpa [#allocation6], 0
    %25 = vsyncpa [#allocation9], 0
    %26 = vsyncpa [#allocation12], 0
    %27 = vsyncpa [#allocation4], 0
    // Predicated region
    $region2: #{tpu_custom_call.1} parent=1 // pred_check
      _
    $region3: #{tpu_custom_call.1} parent=1 // pred_check_branch
      %29 = sbr.rel (0) target = $region5
    $region4: #{tpu_custom_call.1} parent=1 // pred_region
      %s31 = ssub.s32 256, 256
      %32 = vsyncadd [#allocation3], %s31
      %s33 = sshll.u32 [#allocation2], 4
      %s34 = int_to_ptr.vmem [resolvable:$true] %s33
      %39 = dma.hbm_to_vmem [thread:$0]  %s0, 256, %s34, [#allocation3], 128, 128, 8
    $region5: #{tpu_custom_call.1} parent=1 // pred_fallthru
      _
    // Predicated region
    $region6: #{tpu_custom_call.1} parent=1 // pred_check
      _
    $region7: #{tpu_custom_call.1} parent=1 // pred_check_branch
      %41 = sbr.rel (0) target = $region9
    $region8: #{tpu_custom_call.1} parent=1 // pred_region
      %s43 = ssub.s32 256, 256
      %44 = vsyncadd [#allocation6], %s43
      %s45 = sshll.u32 [#allocation5], 4
      %s46 = int_to_ptr.vmem [resolvable:$true] %s45
      %51 = dma.hbm_to_vmem [thread:$0]  %s1, 256, %s46, [#allocation6], 128, 128, 8
    $region9: #{tpu_custom_call.1} parent=1 // pred_fallthru
      _
    // Predicated region
    $region10: #{tpu_custom_call.1} parent=1 // pred_check
      _
    $region11: #{tpu_custom_call.1} parent=1 // pred_check_branch
      %53 = sbr.rel (0) target = $region13
    $region12: #{tpu_custom_call.1} parent=1 // pred_region
      %s55 = ssub.s32 256, 256
      %56 = vsyncadd [#allocation6], %s55
      %s57 = sshll.u32 [#allocation7], 4
      %s58 = int_to_ptr.vmem [resolvable:$true] %s57
      %63 = dma.hbm_to_vmem [thread:$0]  %s2, 256, %s58, [#allocation6], 128, 128, 8
    $region13: #{tpu_custom_call.1} parent=1 // pred_fallthru
      _
    // Predicated region
    $region14: #{tpu_custom_call.1} parent=1 // pred_check
      _
    $region15: #{tpu_custom_call.1} parent=1 // pred_check_branch
      %65 = sbr.rel (0) target = $region17
    $region16: #{tpu_custom_call.1} parent=1 // pred_region
      _
    $region17: #{tpu_custom_call.1} parent=1 // pred_fallthru
      _
    // Predicated region
    $region18: #{tpu_custom_call.1} parent=1 // pred_check
      _
    $region19: #{tpu_custom_call.1} parent=1 // pred_check_branch
      %67 = sbr.rel (0) target = $region21
    $region20: #{tpu_custom_call.1} parent=1 // pred_region
      _
    $region21: #{tpu_custom_call.1} parent=1 // pred_fallthru
      _
    // Predicated region
    $region22: #{tpu_custom_call.1} parent=1 // pred_check
      _
    $region23: #{tpu_custom_call.1} parent=1 // pred_check_branch
      %69 = sbr.rel (0) target = $region25
    $region24: #{tpu_custom_call.1} parent=1 // pred_region
      _
    $region25: #{tpu_custom_call.1} parent=1 // pred_fallthru
      _
    // Predicated region
    $region26: #{tpu_custom_call.1} parent=1 // pred_check
      _
    $region27: #{tpu_custom_call.1} parent=1 // pred_check_branch
      %71 = sbr.rel (0) target = $region29
    $region28: #{tpu_custom_call.1} parent=1 // pred_region
      _
    $region29: #{tpu_custom_call.1} parent=1 // pred_fallthru
      _
    // Predicated region
    $region30: #{tpu_custom_call.1} parent=1 // pred_check
      _
    $region31: #{tpu_custom_call.1} parent=1 // pred_check_branch
      %73 = sbr.rel (0) target = $region33
    $region32: #{tpu_custom_call.1} parent=1 // pred_region
      _
    $region33: #{tpu_custom_call.1} parent=1 // pred_fallthru
      _
    // Predicated region
    $region34: #{tpu_custom_call.1} parent=1 // pred_check
      _
    $region35: #{tpu_custom_call.1} parent=1 // pred_check_branch
      %75 = sbr.rel (0) target = $region37
    $region36: #{tpu_custom_call.1} parent=1 // pred_region
      %s77 = ssub.s32 512, 512
      %78 = vsyncadd [#allocation9], %s77
      %s79 = sshll.u32 [#allocation8], 4
      %s80 = int_to_ptr.vmem [resolvable:$true] %s79
      %85 = dma.hbm_to_vmem [thread:$0]  %s8, 512, %s80, [#allocation9], 128, 128, 8
    $region37: #{tpu_custom_call.1} parent=1 // pred_fallthru
      _
    // Predicated region
    $region38: #{tpu_custom_call.1} parent=1 // pred_check
      _
    $region39: #{tpu_custom_call.1} parent=1 // pred_check_branch
      %87 = sbr.rel (0) target = $region41
    $region40: #{tpu_custom_call.1} parent=1 // pred_region
      %s89 = ssub.s32 512, 512
      %90 = vsyncadd [#allocation9], %s89
      %s91 = sshll.u32 [#allocation10], 4
      %s92 = int_to_ptr.vmem [resolvable:$true] %s91
      %97 = dma.hbm_to_vmem [thread:$0]  %s9, 512, %s92, [#allocation9], 128, 128, 8
    $region41: #{tpu_custom_call.1} parent=1 // pred_fallthru
      _
    // Predicated region
    $region42: #{tpu_custom_call.1} parent=1 // pred_check
      _
    $region43: #{tpu_custom_call.1} parent=1 // pred_check_branch
      %99 = sbr.rel (0) target = $region45
    $region44: #{tpu_custom_call.1} parent=1 // pred_region
      _
    $region45: #{tpu_custom_call.1} parent=1 // pred_fallthru
      _
    // Predicated region
    $region46: #{tpu_custom_call.1} parent=1 // pred_check
      _
    $region47: #{tpu_custom_call.1} parent=1 // pred_check_branch
      %101 = sbr.rel (0) target = $region49
    $region48: #{tpu_custom_call.1} parent=1 // pred_region
      _
    $region49: #{tpu_custom_call.1} parent=1 // pred_fallthru
      _
    // Predicated region
    $region50: #{tpu_custom_call.1} parent=1 // pred_check
      _
    $region51: #{tpu_custom_call.1} parent=1 // pred_check_branch
      %103 = sbr.rel (0) target = $region53
    $region52: #{tpu_custom_call.1} parent=1 // pred_region
      %s105 = ssub.s32 512, 512
      %106 = vsyncadd [#allocation12], %s105
      %s107 = sshll.u32 [#allocation11], 4
      %s108 = int_to_ptr.vmem [resolvable:$true] %s107
      %113 = dma.hbm_to_vmem [thread:$0]  %s12, 512, %s108, [#allocation12], 128, 128, 8
    $region53: #{tpu_custom_call.1} parent=1 // pred_fallthru
      _
    // Predicated region
    $region54: #{tpu_custom_call.1} parent=1 // pred_check
      _
    $region55: #{tpu_custom_call.1} parent=1 // pred_check_branch
      %115 = sbr.rel (0) target = $region57
    $region56: #{tpu_custom_call.1} parent=1 // pred_region
      _
    $region57: #{tpu_custom_call.1} parent=1 // pred_fallthru
      _
    // Predicated region
    $region58: #{tpu_custom_call.1} parent=1 // pred_check
      _
    $region59: #{tpu_custom_call.1} parent=1 // pred_check_branch
      %117 = sbr.rel (0) target = $region61
    $region60: #{tpu_custom_call.1} parent=1 // pred_region
      _
    $region61: #{tpu_custom_call.1} parent=1 // pred_fallthru
      _
    // Predicated region
    $region62: #{tpu_custom_call.1} parent=1 // pred_check
      _
    $region63: #{tpu_custom_call.1} parent=1 // pred_check_branch
      %119 = sbr.rel (0) target = $region65
    $region64: #{tpu_custom_call.1} parent=1 // pred_region
      _
    $region65: #{tpu_custom_call.1} parent=1 // pred_fallthru
      _
    // Predicated region
    $region66: #{tpu_custom_call.1} parent=1 // pred_check
      _
    $region67: #{tpu_custom_call.1} parent=1 // pred_check_branch
      %121 = sbr.rel (0) target = $region69
    $region68: #{tpu_custom_call.1} parent=1 // pred_region
      _
    $region69: #{tpu_custom_call.1} parent=1 // pred_fallthru
      _
    // Predicated region
    $region70: #{tpu_custom_call.1} parent=1 // pred_check
      _
    $region71: #{tpu_custom_call.1} parent=1 // pred_check_branch
      %123 = sbr.rel (0) target = $region73
    $region72: #{tpu_custom_call.1} parent=1 // pred_region
      _
    $region73: #{tpu_custom_call.1} parent=1 // pred_fallthru
      _
    // Predicated region
    $region74: #{tpu_custom_call.1} parent=1 // pred_check
      _
    $region75: #{tpu_custom_call.1} parent=1 // pred_check_branch
      %125 = sbr.rel (0) target = $region77
    $region76: #{tpu_custom_call.1} parent=1 // pred_region
      %126 = dma.done [#allocation3], 256
    $region77: #{tpu_custom_call.1} parent=1 // pred_fallthru
      _
    // Predicated region
    $region78: #{tpu_custom_call.1} parent=1 // pred_check
      _
    $region79: #{tpu_custom_call.1} parent=1 // pred_check_branch
      %128 = sbr.rel (0) target = $region81
    $region80: #{tpu_custom_call.1} parent=1 // pred_region
      %129 = dma.done [#allocation6], 256
    $region81: #{tpu_custom_call.1} parent=1 // pred_fallthru
      _
    // Predicated region
    $region82: #{tpu_custom_call.1} parent=1 // pred_check
      _
    $region83: #{tpu_custom_call.1} parent=1 // pred_check_branch
      %131 = sbr.rel (0) target = $region85
    $region84: #{tpu_custom_call.1} parent=1 // pred_region
      %132 = dma.done [#allocation6], 256
    $region85: #{tpu_custom_call.1} parent=1 // pred_fallthru
      _
    // Predicated region
    $region86: #{tpu_custom_call.1} parent=1 // pred_check
      _
    $region87: #{tpu_custom_call.1} parent=1 // pred_check_branch
      %134 = sbr.rel (0) target = $region89
    $region88: #{tpu_custom_call.1} parent=1 // pred_region
      %135 = dma.done [#allocation9], 512
    $region89: #{tpu_custom_call.1} parent=1 // pred_fallthru
      _
    // Predicated region
    $region90: #{tpu_custom_call.1} parent=1 // pred_check
      _
    $region91: #{tpu_custom_call.1} parent=1 // pred_check_branch
      %137 = sbr.rel (0) target = $region93
    $region92: #{tpu_custom_call.1} parent=1 // pred_region
      %138 = dma.done [#allocation9], 512
    $region93: #{tpu_custom_call.1} parent=1 // pred_fallthru
      _
    // Predicated region
    $region94: #{tpu_custom_call.1} parent=1 // pred_check
      _
    $region95: #{tpu_custom_call.1} parent=1 // pred_check_branch
      %140 = sbr.rel (0) target = $region97
    $region96: #{tpu_custom_call.1} parent=1 // pred_region
      %141 = dma.done [#allocation12], 512
    $region97: #{tpu_custom_call.1} parent=1 // pred_fallthru
      _
    %v142 = vld [vmem:[#allocation2] sm:$0xff]
    %v143 = vld [vmem:[#allocation2 + $0x8] sm:$0xff]
    %v144 = vld [vmem:[#allocation5] sm:$0xff]
    %v145 = vld [vmem:[#allocation5 + $0x8] sm:$0xff]
    %v146 = vld [vmem:[%s3] sm:$0xff]
    %v147 = vld [vmem:[%s3 + $0x8] sm:$0xff]
    %v148 = vld [vmem:[%s3 + $0x10] sm:$0xff]
    %v149 = vld [vmem:[%s3 + $0x18] sm:$0xff]
    %vm150 = vcmask 261120
    %v152 = vsel %vm150, %v142, 0
    %v155 = vsel %vm150, %v143, 0
    %157 = vmatprep.subr.mxu0 0.0
    %158 = vmatpush1.msra.mxu0 %v146
    %159 = vmatprep.subr.mxu0 0.0
    %160 = vmatpush1.msra.mxu0 %v147
    %161 = vmatprep.subr.mxu0 0.0
    %162 = vmatpush1.msra.mxu0 %v148
    %163 = vmatprep.subr.mxu0 0.0
    %164 = vmatpush1.msra.mxu0 %v149
    %165 = vmatprep.subr.mxu0 0.0
    %166 = vmatpush1.msra.mxu0 0.0
    %167 = vmatprep.subr.mxu0 0.0
    %168 = vmatpush1.msra.mxu0 0.0
    %169 = vmatprep.subr.mxu0 0.0
    %170 = vmatpush1.msra.mxu0 0.0
    %171 = vmatprep.subr.mxu0 0.0
    %172 = vmatpush1.msra.mxu0 0.0
    %173 = vmatprep.subr.mxu0 0.0
    %174 = vmatpush1.msra.mxu0 0.0
    %175 = vmatprep.subr.mxu0 0.0
    %176 = vmatpush1.msra.mxu0 0.0
    %177 = vmatprep.subr.mxu0 0.0
    %178 = vmatpush1.msra.mxu0 0.0
    %179 = vmatprep.subr.mxu0 0.0
    %180 = vmatpush1.msra.mxu0 0.0
    %181 = vmatprep.subr.mxu0 0.0
    %182 = vmatpush1.msra.mxu0 0.0
    %183 = vmatprep.subr.mxu0 0.0
    %184 = vmatpush1.msra.mxu0 0.0
    %185 = vmatprep.subr.mxu0 0.0
    %186 = vmatpush1.msra.mxu0 0.0
    %187 = vmatprep.subr.mxu0 0.0
    %188 = vmatpush1.msra.mxu0 0.0
    %189 = vmatprep.subr.mxu0 0.0
    %190 = vmatpush1.msra.mxu0 0.0
    %191 = vmatprep.subr.mxu0 0.0
    %192 = vmatpush1.msra.mxu0 0.0
    %193 = vmatprep.subr.mxu0 0.0
    %194 = vmatpush1.msra.mxu0 0.0
    %195 = vmatprep.subr.mxu0 0.0
    %196 = vmatpush1.msra.mxu0 0.0
    %197 = vmatprep.subr.mxu0 0.0
    %198 = vmatpush1.msra.mxu0 0.0
    %199 = vmatprep.subr.mxu0 0.0
    %200 = vmatpush1.msra.mxu0 0.0
    %201 = vmatprep.subr.mxu0 0.0
    %202 = vmatpush1.msra.mxu0 0.0
    %203 = vmatprep.subr.mxu0 0.0
    %204 = vmatpush1.msra.mxu0 0.0
    %205 = vmatprep.subr.mxu0 0.0
    %206 = vmatpush1.msra.mxu0 0.0
    %207 = vmatprep.subr.mxu0 0.0
    %208 = vmatpush1.msra.mxu0 0.0
    %209 = vmatprep.subr.mxu0 0.0
    %210 = vmatpush1.msra.mxu0 0.0
    %211 = vmatprep.subr.mxu0 0.0
    %212 = vmatpush1.msra.mxu0 0.0
    %213 = vmatprep.subr.mxu0 0.0
    %214 = vmatpush1.msra.mxu0 0.0
    %215 = vmatprep.subr.mxu0 0.0
    %216 = vmatpush1.msra.mxu0 0.0
    %217 = vmatprep.subr.mxu0 0.0
    %218 = vmatpush1.msra.mxu0 0.0
    %219 = vmatprep.subr.mxu0 0.0
    %220 = vmatpush1.msra.mxu0 0.0
    %221 = vmatprep.mubr.f32.mxu0 0.0
    %222 = vmatmul.mubr.f32.gmra.mrb[0].mxu0 %v152
    %v223 = vpop.f32.mrb[0].mxu0
    %v224 = vadd.f32 0.0, %v223
    %v225 = vpop.f32.mrb[0].mxu0
    %226 = vmatprep.mubr.f32.mxu0 0.0
    %227 = vmatmul.mubr.f32.gmra.mrb[0].mxu0 %v155
    %v228 = vpop.f32.mrb[0].mxu0
    %v229 = vadd.f32 0.0, %v228
    %v230 = vpop.f32.mrb[0].mxu0
    %231 = vdwg.mxu0
    %v232 = vld [vmem:[#allocation7] sm:$0xff]
    %v233 = vld [vmem:[#allocation7 + $0x8] sm:$0xff]
    %vm234 = vcmp.eq.f32.partialorder %v232, 0.0
    %vm235 = vcmp.eq.f32.partialorder %v233, 0.0
    %v236 = vld [vmem:[%s4] sm:$0xff]
    %v237 = vld [vmem:[%s4 + $0x8] sm:$0xff]
    %v238 = vld [vmem:[%s4 + $0x10] sm:$0xff]
    %v239 = vld [vmem:[%s4 + $0x18] sm:$0xff]
    %v240 = vld [vmem:[%s5] sm:$0x1]
    %v241 = vld [vmem:[%s6] sm:$0x1]
    %243 = vrot.lane.b32.xlu0 %v224, 96
    %v244 = vpop.permute.xlu0 %243
    %vm245 = vcmask 64512
    %v246 = vsel %vm245, %v224, 0
    %v248 = vsel %vm245, %v244, 0
    %250 = vmatprep.subr.mxu0 0.0
    %251 = vmatpush1.xpose.msra.mxu0 %v248
    %252 = vmatprep.subr.mxu0 0.0
    %253 = vmatpush1.xpose.msra.mxu0 0.0
    %254 = vmatprep.subr.mxu0 0.0
    %255 = vmatpush1.xpose.msra.mxu0 0.0
    %256 = vmatprep.subr.mxu0 0.0
    %257 = vmatpush1.xpose.msra.mxu0 0.0
    %258 = vmatprep.subr.mxu0 0.0
    %259 = vmatpush1.xpose.msra.mxu0 0.0
    %260 = vmatprep.subr.mxu0 0.0
    %261 = vmatpush1.xpose.msra.mxu0 0.0
    %262 = vmatprep.subr.mxu0 0.0
    %263 = vmatpush1.xpose.msra.mxu0 0.0
    %264 = vmatprep.subr.mxu0 0.0
    %265 = vmatpush1.xpose.msra.mxu0 0.0
    %266 = vmatprep.subr.mxu0 0.0
    %267 = vmatpush1.xpose.msra.mxu0 0.0
    %268 = vmatprep.subr.mxu0 0.0
    %269 = vmatpush1.xpose.msra.mxu0 0.0
    %270 = vmatprep.subr.mxu0 0.0
    %271 = vmatpush1.xpose.msra.mxu0 0.0
    %272 = vmatprep.subr.mxu0 0.0
    %273 = vmatpush1.xpose.msra.mxu0 0.0
    %274 = vmatprep.subr.mxu0 0.0
    %275 = vmatpush1.xpose.msra.mxu0 0.0
    %276 = vmatprep.subr.mxu0 0.0
    %277 = vmatpush1.xpose.msra.mxu0 0.0
    %278 = vmatprep.subr.mxu0 0.0
    %279 = vmatpush1.xpose.msra.mxu0 0.0
    %280 = vmatprep.subr.mxu0 0.0
    %281 = vmatpush1.xpose.msra.mxu0 0.0
    %282 = vmatprep.subr.mxu0 0.0
    %283 = vmatpush1.xpose.msra.mxu0 0.0
    %284 = vmatprep.subr.mxu0 0.0
    %285 = vmatpush1.xpose.msra.mxu0 0.0
    %286 = vmatprep.subr.mxu0 0.0
    %287 = vmatpush1.xpose.msra.mxu0 0.0
    %288 = vmatprep.subr.mxu0 0.0
    %289 = vmatpush1.xpose.msra.mxu0 0.0
    %290 = vmatprep.subr.mxu0 0.0
    %291 = vmatpush1.xpose.msra.mxu0 0.0
    %292 = vmatprep.subr.mxu0 0.0
    %293 = vmatpush1.xpose.msra.mxu0 0.0
    %294 = vmatprep.subr.mxu0 0.0
    %295 = vmatpush1.xpose.msra.mxu0 0.0
    %296 = vmatprep.subr.mxu0 0.0
    %297 = vmatpush1.xpose.msra.mxu0 0.0
    %298 = vmatprep.subr.mxu0 0.0
    %299 = vmatpush1.xpose.msra.mxu0 0.0
    %300 = vmatprep.subr.mxu0 0.0
    %301 = vmatpush1.xpose.msra.mxu0 0.0
    %302 = vmatprep.subr.mxu0 0.0
    %303 = vmatpush1.xpose.msra.mxu0 0.0
    %304 = vmatprep.subr.mxu0 0.0
    %305 = vmatpush1.xpose.msra.mxu0 0.0
    %306 = vmatprep.subr.mxu0 0.0
    %307 = vmatpush1.xpose.msra.mxu0 0.0
    %308 = vmatprep.subr.mxu0 0.0
    %309 = vmatpush1.xpose.msra.mxu0 0.0
    %310 = vmatprep.subr.mxu0 0.0
    %311 = vmatpush1.xpose.msra.mxu0 0.0
    %312 = vmatprep.subr.mxu0 0.0
    %313 = vmatpush1.xpose.msra.mxu0 0.0
    %314 = vmatprep.mubr.f32.mxu0 0.0
    %315 = vmatmul.mubr.f32.gmra.mrb[0].mxu0 %v246
    %v316 = vpop.f32.mrb[0].mxu0
    %v317 = vadd.f32 0.0, %v316
    %v318 = vpop.f32.mrb[0].mxu0
    %319 = vdwg.mxu0
    %321 = vrot.lane.b32.xlu0 %v229, 96
    %v322 = vpop.permute.xlu0 %321
    %v323 = vsel %vm245, %v229, 0
    %v325 = vsel %vm245, %v322, 0
    %327 = vmatprep.subr.mxu0 0.0
    %328 = vmatpush1.xpose.msra.mxu0 %v325
    %329 = vmatprep.subr.mxu0 0.0
    %330 = vmatpush1.xpose.msra.mxu0 0.0
    %331 = vmatprep.subr.mxu0 0.0
    %332 = vmatpush1.xpose.msra.mxu0 0.0
    %333 = vmatprep.subr.mxu0 0.0
    %334 = vmatpush1.xpose.msra.mxu0 0.0
    %335 = vmatprep.subr.mxu0 0.0
    %336 = vmatpush1.xpose.msra.mxu0 0.0
    %337 = vmatprep.subr.mxu0 0.0
    %338 = vmatpush1.xpose.msra.mxu0 0.0
    %339 = vmatprep.subr.mxu0 0.0
    %340 = vmatpush1.xpose.msra.mxu0 0.0
    %341 = vmatprep.subr.mxu0 0.0
    %342 = vmatpush1.xpose.msra.mxu0 0.0
    %343 = vmatprep.subr.mxu0 0.0
    %344 = vmatpush1.xpose.msra.mxu0 0.0
    %345 = vmatprep.subr.mxu0 0.0
    %346 = vmatpush1.xpose.msra.mxu0 0.0
    %347 = vmatprep.subr.mxu0 0.0
    %348 = vmatpush1.xpose.msra.mxu0 0.0
    %349 = vmatprep.subr.mxu0 0.0
    %350 = vmatpush1.xpose.msra.mxu0 0.0
    %351 = vmatprep.subr.mxu0 0.0
    %352 = vmatpush1.xpose.msra.mxu0 0.0
    %353 = vmatprep.subr.mxu0 0.0
    %354 = vmatpush1.xpose.msra.mxu0 0.0
    %355 = vmatprep.subr.mxu0 0.0
    %356 = vmatpush1.xpose.msra.mxu0 0.0
    %357 = vmatprep.subr.mxu0 0.0
    %358 = vmatpush1.xpose.msra.mxu0 0.0
    %359 = vmatprep.subr.mxu0 0.0
    %360 = vmatpush1.xpose.msra.mxu0 0.0
    %361 = vmatprep.subr.mxu0 0.0
    %362 = vmatpush1.xpose.msra.mxu0 0.0
    %363 = vmatprep.subr.mxu0 0.0
    %364 = vmatpush1.xpose.msra.mxu0 0.0
    %365 = vmatprep.subr.mxu0 0.0
    %366 = vmatpush1.xpose.msra.mxu0 0.0
    %367 = vmatprep.subr.mxu0 0.0
    %368 = vmatpush1.xpose.msra.mxu0 0.0
    %369 = vmatprep.subr.mxu0 0.0
    %370 = vmatpush1.xpose.msra.mxu0 0.0
    %371 = vmatprep.subr.mxu0 0.0
    %372 = vmatpush1.xpose.msra.mxu0 0.0
    %373 = vmatprep.subr.mxu0 0.0
    %374 = vmatpush1.xpose.msra.mxu0 0.0
    %375 = vmatprep.subr.mxu0 0.0
    %376 = vmatpush1.xpose.msra.mxu0 0.0
    %377 = vmatprep.subr.mxu0 0.0
    %378 = vmatpush1.xpose.msra.mxu0 0.0
    %379 = vmatprep.subr.mxu0 0.0
    %380 = vmatpush1.xpose.msra.mxu0 0.0
    %381 = vmatprep.subr.mxu0 0.0
    %382 = vmatpush1.xpose.msra.mxu0 0.0
    %383 = vmatprep.subr.mxu0 0.0
    %384 = vmatpush1.xpose.msra.mxu0 0.0
    %385 = vmatprep.subr.mxu0 0.0
    %386 = vmatpush1.xpose.msra.mxu0 0.0
    %387 = vmatprep.subr.mxu0 0.0
    %388 = vmatpush1.xpose.msra.mxu0 0.0
    %389 = vmatprep.subr.mxu0 0.0
    %390 = vmatpush1.xpose.msra.mxu0 0.0
    %391 = vmatprep.mubr.f32.mxu0 0.0
    %392 = vmatmul.mubr.f32.gmra.mrb[0].mxu0 %v323
    %v393 = vpop.f32.mrb[0].mxu0
    %v394 = vadd.f32 0.0, %v393
    %v395 = vpop.f32.mrb[0].mxu0
    %396 = vdwg.mxu0
    %v397 = vmul.f32 %v317, 0.35355338
    %v398 = vmul.f32 %v394, 0.35355338
    %v399 = vsel %vm234, -1e+09, %v397
    %v400 = vsel %vm235, -1e+09, %v398
    %v401 = vsel %vm245, %v399, -inf
    %402 = vmax.xlane.f32.xlu0 %v401
    %v403 = vpop.xlane.xlu0 %402
    %v404 = vsel %vm245, %v400, -inf
    %405 = vmax.xlane.f32.xlu0 %v404
    %v406 = vpop.xlane.xlu0 %405
    %v407 = vsub.f32 %v399, %v403
    %v408 = vsub.f32 %v400, %v406
    %v409 = vmul.f32 %v407, 1.442695
    %v410 = vpow.pop %v409
    %v411 = vmul.f32 %v408, 1.442695
    %v412 = vpow.pop %v411
    %v413 = vsel %vm245, %v410, 0.0
    %414 = vadd.xlane.f32.xlu0 %v413
    %v415 = vpop.xlane.xlu0 %414
    %v416 = vsel %vm245, %v412, 0.0
    %417 = vadd.xlane.f32.xlu0 %v416
    %v418 = vpop.xlane.xlu0 %417
    %v419 = vrcp.pop %v415
    %v420 = vrcp.pop %v418
    %v421 = vmul.f32 %v410, %v419
    %v422 = vmul.f32 %v412, %v420
    %423 = vrot.lane.b32.xlu0 %v224, 64
    %v424 = vpop.permute.xlu0 %423
    %v427 = vsel %vm245, %v421, 0
    %429 = vmatprep.subr.mxu0 0.0
    %430 = vmatpush1.msra.mxu0 %v424
    %431 = vmatprep.subr.mxu0 0.0
    %432 = vmatpush1.msra.mxu0 0.0
    %433 = vmatprep.subr.mxu0 0.0
    %434 = vmatpush1.msra.mxu0 0.0
    %435 = vmatprep.subr.mxu0 0.0
    %436 = vmatpush1.msra.mxu0 0.0
    %437 = vmatprep.subr.mxu0 0.0
    %438 = vmatpush1.msra.mxu0 0.0
    %439 = vmatprep.subr.mxu0 0.0
    %440 = vmatpush1.msra.mxu0 0.0
    %441 = vmatprep.subr.mxu0 0.0
    %442 = vmatpush1.msra.mxu0 0.0
    %443 = vmatprep.subr.mxu0 0.0
    %444 = vmatpush1.msra.mxu0 0.0
    %445 = vmatprep.subr.mxu0 0.0
    %446 = vmatpush1.msra.mxu0 0.0
    %447 = vmatprep.subr.mxu0 0.0
    %448 = vmatpush1.msra.mxu0 0.0
    %449 = vmatprep.subr.mxu0 0.0
    %450 = vmatpush1.msra.mxu0 0.0
    %451 = vmatprep.subr.mxu0 0.0
    %452 = vmatpush1.msra.mxu0 0.0
    %453 = vmatprep.subr.mxu0 0.0
    %454 = vmatpush1.msra.mxu0 0.0
    %455 = vmatprep.subr.mxu0 0.0
    %456 = vmatpush1.msra.mxu0 0.0
    %457 = vmatprep.subr.mxu0 0.0
    %458 = vmatpush1.msra.mxu0 0.0
    %459 = vmatprep.subr.mxu0 0.0
    %460 = vmatpush1.msra.mxu0 0.0
    %461 = vmatprep.subr.mxu0 0.0
    %462 = vmatpush1.msra.mxu0 0.0
    %463 = vmatprep.subr.mxu0 0.0
    %464 = vmatpush1.msra.mxu0 0.0
    %465 = vmatprep.subr.mxu0 0.0
    %466 = vmatpush1.msra.mxu0 0.0
    %467 = vmatprep.subr.mxu0 0.0
    %468 = vmatpush1.msra.mxu0 0.0
    %469 = vmatprep.subr.mxu0 0.0
    %470 = vmatpush1.msra.mxu0 0.0
    %471 = vmatprep.subr.mxu0 0.0
    %472 = vmatpush1.msra.mxu0 0.0
    %473 = vmatprep.subr.mxu0 0.0
    %474 = vmatpush1.msra.mxu0 0.0
    %475 = vmatprep.subr.mxu0 0.0
    %476 = vmatpush1.msra.mxu0 0.0
    %477 = vmatprep.subr.mxu0 0.0
    %478 = vmatpush1.msra.mxu0 0.0
    %479 = vmatprep.subr.mxu0 0.0
    %480 = vmatpush1.msra.mxu0 0.0
    %481 = vmatprep.subr.mxu0 0.0
    %482 = vmatpush1.msra.mxu0 0.0
    %483 = vmatprep.subr.mxu0 0.0
    %484 = vmatpush1.msra.mxu0 0.0
    %485 = vmatprep.subr.mxu0 0.0
    %486 = vmatpush1.msra.mxu0 0.0
    %487 = vmatprep.subr.mxu0 0.0
    %488 = vmatpush1.msra.mxu0 0.0
    %489 = vmatprep.subr.mxu0 0.0
    %490 = vmatpush1.msra.mxu0 0.0
    %491 = vmatprep.subr.mxu0 0.0
    %492 = vmatpush1.msra.mxu0 0.0
    %493 = vmatprep.mubr.f32.mxu0 0.0
    %494 = vmatmul.mubr.f32.gmra.mrb[0].mxu0 %v427
    %v495 = vpop.f32.mrb[0].mxu0
    %v496 = vadd.f32 0.0, %v495
    %v497 = vpop.f32.mrb[0].mxu0
    %498 = vdwg.mxu0
    %499 = vrot.lane.b32.xlu0 %v229, 64
    %v500 = vpop.permute.xlu0 %499
    %v503 = vsel %vm245, %v422, 0
    %505 = vmatprep.subr.mxu0 0.0
    %506 = vmatpush1.msra.mxu0 %v500
    %507 = vmatprep.subr.mxu0 0.0
    %508 = vmatpush1.msra.mxu0 0.0
    %509 = vmatprep.subr.mxu0 0.0
    %510 = vmatpush1.msra.mxu0 0.0
    %511 = vmatprep.subr.mxu0 0.0
    %512 = vmatpush1.msra.mxu0 0.0
    %513 = vmatprep.subr.mxu0 0.0
    %514 = vmatpush1.msra.mxu0 0.0
    %515 = vmatprep.subr.mxu0 0.0
    %516 = vmatpush1.msra.mxu0 0.0
    %517 = vmatprep.subr.mxu0 0.0
    %518 = vmatpush1.msra.mxu0 0.0
    %519 = vmatprep.subr.mxu0 0.0
    %520 = vmatpush1.msra.mxu0 0.0
    %521 = vmatprep.subr.mxu0 0.0
    %522 = vmatpush1.msra.mxu0 0.0
    %523 = vmatprep.subr.mxu0 0.0
    %524 = vmatpush1.msra.mxu0 0.0
    %525 = vmatprep.subr.mxu0 0.0
    %526 = vmatpush1.msra.mxu0 0.0
    %527 = vmatprep.subr.mxu0 0.0
    %528 = vmatpush1.msra.mxu0 0.0
    %529 = vmatprep.subr.mxu0 0.0
    %530 = vmatpush1.msra.mxu0 0.0
    %531 = vmatprep.subr.mxu0 0.0
    %532 = vmatpush1.msra.mxu0 0.0
    %533 = vmatprep.subr.mxu0 0.0
    %534 = vmatpush1.msra.mxu0 0.0
    %535 = vmatprep.subr.mxu0 0.0
    %536 = vmatpush1.msra.mxu0 0.0
    %537 = vmatprep.subr.mxu0 0.0
    %538 = vmatpush1.msra.mxu0 0.0
    %539 = vmatprep.subr.mxu0 0.0
    %540 = vmatpush1.msra.mxu0 0.0
    %541 = vmatprep.subr.mxu0 0.0
    %542 = vmatpush1.msra.mxu0 0.0
    %543 = vmatprep.subr.mxu0 0.0
    %544 = vmatpush1.msra.mxu0 0.0
    %545 = vmatprep.subr.mxu0 0.0
    %546 = vmatpush1.msra.mxu0 0.0
    %547 = vmatprep.subr.mxu0 0.0
    %548 = vmatpush1.msra.mxu0 0.0
    %549 = vmatprep.subr.mxu0 0.0
    %550 = vmatpush1.msra.mxu0 0.0
    %551 = vmatprep.subr.mxu0 0.0
    %552 = vmatpush1.msra.mxu0 0.0
    %553 = vmatprep.subr.mxu0 0.0
    %554 = vmatpush1.msra.mxu0 0.0
    %555 = vmatprep.subr.mxu0 0.0
    %556 = vmatpush1.msra.mxu0 0.0
    %557 = vmatprep.subr.mxu0 0.0
    %558 = vmatpush1.msra.mxu0 0.0
    %559 = vmatprep.subr.mxu0 0.0
    %560 = vmatpush1.msra.mxu0 0.0
    %561 = vmatprep.subr.mxu0 0.0
    %562 = vmatpush1.msra.mxu0 0.0
    %563 = vmatprep.subr.mxu0 0.0
    %564 = vmatpush1.msra.mxu0 0.0
    %565 = vmatprep.subr.mxu0 0.0
    %566 = vmatpush1.msra.mxu0 0.0
    %567 = vmatprep.subr.mxu0 0.0
    %568 = vmatpush1.msra.mxu0 0.0
    %569 = vmatprep.mubr.f32.mxu0 0.0
    %570 = vmatmul.mubr.f32.gmra.mrb[0].mxu0 %v503
    %v571 = vpop.f32.mrb[0].mxu0
    %v572 = vadd.f32 0.0, %v571
    %v573 = vpop.f32.mrb[0].mxu0
    %574 = vdwg.mxu0
    %575 = vrot.lane.b32.xlu0 %v224, 120
    %v576 = vpop.permute.xlu0 %575
    %577 = vrot.lane.b32.xlu0 %v224, 88
    %v578 = vpop.permute.xlu0 %577
    %v579 = vsel %vm245, %v576, 0
    %v581 = vsel %vm245, %v578, 0
    %583 = vmatprep.subr.mxu0 0.0
    %584 = vmatpush1.xpose.msra.mxu0 %v581
    %585 = vmatprep.subr.mxu0 0.0
    %586 = vmatpush1.xpose.msra.mxu0 0.0
    %587 = vmatprep.subr.mxu0 0.0
    %588 = vmatpush1.xpose.msra.mxu0 0.0
    %589 = vmatprep.subr.mxu0 0.0
    %590 = vmatpush1.xpose.msra.mxu0 0.0
    %591 = vmatprep.subr.mxu0 0.0
    %592 = vmatpush1.xpose.msra.mxu0 0.0
    %593 = vmatprep.subr.mxu0 0.0
    %594 = vmatpush1.xpose.msra.mxu0 0.0
    %595 = vmatprep.subr.mxu0 0.0
    %596 = vmatpush1.xpose.msra.mxu0 0.0
    %597 = vmatprep.subr.mxu0 0.0
    %598 = vmatpush1.xpose.msra.mxu0 0.0
    %599 = vmatprep.subr.mxu0 0.0
    %600 = vmatpush1.xpose.msra.mxu0 0.0
    %601 = vmatprep.subr.mxu0 0.0
    %602 = vmatpush1.xpose.msra.mxu0 0.0
    %603 = vmatprep.subr.mxu0 0.0
    %604 = vmatpush1.xpose.msra.mxu0 0.0
    %605 = vmatprep.subr.mxu0 0.0
    %606 = vmatpush1.xpose.msra.mxu0 0.0
    %607 = vmatprep.subr.mxu0 0.0
    %608 = vmatpush1.xpose.msra.mxu0 0.0
    %609 = vmatprep.subr.mxu0 0.0
    %610 = vmatpush1.xpose.msra.mxu0 0.0
    %611 = vmatprep.subr.mxu0 0.0
    %612 = vmatpush1.xpose.msra.mxu0 0.0
    %613 = vmatprep.subr.mxu0 0.0
    %614 = vmatpush1.xpose.msra.mxu0 0.0
    %615 = vmatprep.subr.mxu0 0.0
    %616 = vmatpush1.xpose.msra.mxu0 0.0
    %617 = vmatprep.subr.mxu0 0.0
    %618 = vmatpush1.xpose.msra.mxu0 0.0
    %619 = vmatprep.subr.mxu0 0.0
    %620 = vmatpush1.xpose.msra.mxu0 0.0
    %621 = vmatprep.subr.mxu0 0.0
    %622 = vmatpush1.xpose.msra.mxu0 0.0
    %623 = vmatprep.subr.mxu0 0.0
    %624 = vmatpush1.xpose.msra.mxu0 0.0
    %625 = vmatprep.subr.mxu0 0.0
    %626 = vmatpush1.xpose.msra.mxu0 0.0
    %627 = vmatprep.subr.mxu0 0.0
    %628 = vmatpush1.xpose.msra.mxu0 0.0
    %629 = vmatprep.subr.mxu0 0.0
    %630 = vmatpush1.xpose.msra.mxu0 0.0
    %631 = vmatprep.subr.mxu0 0.0
    %632 = vmatpush1.xpose.msra.mxu0 0.0
    %633 = vmatprep.subr.mxu0 0.0
    %634 = vmatpush1.xpose.msra.mxu0 0.0
    %635 = vmatprep.subr.mxu0 0.0
    %636 = vmatpush1.xpose.msra.mxu0 0.0
    %637 = vmatprep.subr.mxu0 0.0
    %638 = vmatpush1.xpose.msra.mxu0 0.0
    %639 = vmatprep.subr.mxu0 0.0
    %640 = vmatpush1.xpose.msra.mxu0 0.0
    %641 = vmatprep.subr.mxu0 0.0
    %642 = vmatpush1.xpose.msra.mxu0 0.0
    %643 = vmatprep.subr.mxu0 0.0
    %644 = vmatpush1.xpose.msra.mxu0 0.0
    %645 = vmatprep.subr.mxu0 0.0
    %646 = vmatpush1.xpose.msra.mxu0 0.0
    %647 = vmatprep.mubr.f32.mxu0 0.0
    %648 = vmatmul.mubr.f32.gmra.mrb[0].mxu0 %v579
    %v649 = vpop.f32.mrb[0].mxu0
    %v650 = vadd.f32 0.0, %v649
    %v651 = vpop.f32.mrb[0].mxu0
    %652 = vdwg.mxu0
    %653 = vrot.lane.b32.xlu0 %v229, 120
    %v654 = vpop.permute.xlu0 %653
    %655 = vrot.lane.b32.xlu0 %v229, 88
    %v656 = vpop.permute.xlu0 %655
    %v657 = vsel %vm245, %v654, 0
    %v659 = vsel %vm245, %v656, 0
    %661 = vmatprep.subr.mxu0 0.0
    %662 = vmatpush1.xpose.msra.mxu0 %v659
    %663 = vmatprep.subr.mxu0 0.0
    %664 = vmatpush1.xpose.msra.mxu0 0.0
    %665 = vmatprep.subr.mxu0 0.0
    %666 = vmatpush1.xpose.msra.mxu0 0.0
    %667 = vmatprep.subr.mxu0 0.0
    %668 = vmatpush1.xpose.msra.mxu0 0.0
    %669 = vmatprep.subr.mxu0 0.0
    %670 = vmatpush1.xpose.msra.mxu0 0.0
    %671 = vmatprep.subr.mxu0 0.0
    %672 = vmatpush1.xpose.msra.mxu0 0.0
    %673 = vmatprep.subr.mxu0 0.0
    %674 = vmatpush1.xpose.msra.mxu0 0.0
    %675 = vmatprep.subr.mxu0 0.0
    %676 = vmatpush1.xpose.msra.mxu0 0.0
    %677 = vmatprep.subr.mxu0 0.0
    %678 = vmatpush1.xpose.msra.mxu0 0.0
    %679 = vmatprep.subr.mxu0 0.0
    %680 = vmatpush1.xpose.msra.mxu0 0.0
    %681 = vmatprep.subr.mxu0 0.0
    %682 = vmatpush1.xpose.msra.mxu0 0.0
    %683 = vmatprep.subr.mxu0 0.0
    %684 = vmatpush1.xpose.msra.mxu0 0.0
    %685 = vmatprep.subr.mxu0 0.0
    %686 = vmatpush1.xpose.msra.mxu0 0.0
    %687 = vmatprep.subr.mxu0 0.0
    %688 = vmatpush1.xpose.msra.mxu0 0.0
    %689 = vmatprep.subr.mxu0 0.0
    %690 = vmatpush1.xpose.msra.mxu0 0.0
    %691 = vmatprep.subr.mxu0 0.0
    %692 = vmatpush1.xpose.msra.mxu0 0.0
    %693 = vmatprep.subr.mxu0 0.0
    %694 = vmatpush1.xpose.msra.mxu0 0.0
    %695 = vmatprep.subr.mxu0 0.0
    %696 = vmatpush1.xpose.msra.mxu0 0.0
    %697 = vmatprep.subr.mxu0 0.0
    %698 = vmatpush1.xpose.msra.mxu0 0.0
    %699 = vmatprep.subr.mxu0 0.0
    %700 = vmatpush1.xpose.msra.mxu0 0.0
    %701 = vmatprep.subr.mxu0 0.0
    %702 = vmatpush1.xpose.msra.mxu0 0.0
    %703 = vmatprep.subr.mxu0 0.0
    %704 = vmatpush1.xpose.msra.mxu0 0.0
    %705 = vmatprep.subr.mxu0 0.0
    %706 = vmatpush1.xpose.msra.mxu0 0.0
    %707 = vmatprep.subr.mxu0 0.0
    %708 = vmatpush1.xpose.msra.mxu0 0.0
    %709 = vmatprep.subr.mxu0 0.0
    %710 = vmatpush1.xpose.msra.mxu0 0.0
    %711 = vmatprep.subr.mxu0 0.0
    %712 = vmatpush1.xpose.msra.mxu0 0.0
    %713 = vmatprep.subr.mxu0 0.0
    %714 = vmatpush1.xpose.msra.mxu0 0.0
    %715 = vmatprep.subr.mxu0 0.0
    %716 = vmatpush1.xpose.msra.mxu0 0.0
    %717 = vmatprep.subr.mxu0 0.0
    %718 = vmatpush1.xpose.msra.mxu0 0.0
    %719 = vmatprep.subr.mxu0 0.0
    %720 = vmatpush1.xpose.msra.mxu0 0.0
    %721 = vmatprep.subr.mxu0 0.0
    %722 = vmatpush1.xpose.msra.mxu0 0.0
    %723 = vmatprep.subr.mxu0 0.0
    %724 = vmatpush1.xpose.msra.mxu0 0.0
    %725 = vmatprep.mubr.f32.mxu0 0.0
    %726 = vmatmul.mubr.f32.gmra.mrb[0].mxu0 %v657
    %v727 = vpop.f32.mrb[0].mxu0
    %v728 = vadd.f32 0.0, %v727
    %v729 = vpop.f32.mrb[0].mxu0
    %730 = vdwg.mxu0
    %v731 = vmul.f32 %v650, 0.35355338
    %v732 = vmul.f32 %v728, 0.35355338
    %v733 = vsel %vm234, -1e+09, %v731
    %v734 = vsel %vm235, -1e+09, %v732
    %v735 = vsel %vm245, %v733, -inf
    %736 = vmax.xlane.f32.xlu0 %v735
    %v737 = vpop.xlane.xlu0 %736
    %v738 = vsel %vm245, %v734, -inf
    %739 = vmax.xlane.f32.xlu0 %v738
    %v740 = vpop.xlane.xlu0 %739
    %v741 = vsub.f32 %v733, %v737
    %v742 = vsub.f32 %v734, %v740
    %v743 = vmul.f32 %v741, 1.442695
    %v744 = vpow.pop %v743
    %v745 = vmul.f32 %v742, 1.442695
    %v746 = vpow.pop %v745
    %v747 = vsel %vm245, %v744, 0.0
    %748 = vadd.xlane.f32.xlu0 %v747
    %v749 = vpop.xlane.xlu0 %748
    %v750 = vsel %vm245, %v746, 0.0
    %751 = vadd.xlane.f32.xlu0 %v750
    %v752 = vpop.xlane.xlu0 %751
    %v753 = vrcp.pop %v749
    %v754 = vrcp.pop %v752
    %v755 = vmul.f32 %v744, %v753
    %v756 = vmul.f32 %v746, %v754
    %757 = vrot.lane.b32.xlu0 %v224, 56
    %v758 = vpop.permute.xlu0 %757
    %v761 = vsel %vm245, %v755, 0
    %763 = vmatprep.subr.mxu0 0.0
    %764 = vmatpush1.msra.mxu0 %v758
    %765 = vmatprep.subr.mxu0 0.0
    %766 = vmatpush1.msra.mxu0 0.0
    %767 = vmatprep.subr.mxu0 0.0
    %768 = vmatpush1.msra.mxu0 0.0
    %769 = vmatprep.subr.mxu0 0.0
    %770 = vmatpush1.msra.mxu0 0.0
    %771 = vmatprep.subr.mxu0 0.0
    %772 = vmatpush1.msra.mxu0 0.0
    %773 = vmatprep.subr.mxu0 0.0
    %774 = vmatpush1.msra.mxu0 0.0
    %775 = vmatprep.subr.mxu0 0.0
    %776 = vmatpush1.msra.mxu0 0.0
    %777 = vmatprep.subr.mxu0 0.0
    %778 = vmatpush1.msra.mxu0 0.0
    %779 = vmatprep.subr.mxu0 0.0
    %780 = vmatpush1.msra.mxu0 0.0
    %781 = vmatprep.subr.mxu0 0.0
    %782 = vmatpush1.msra.mxu0 0.0
    %783 = vmatprep.subr.mxu0 0.0
    %784 = vmatpush1.msra.mxu0 0.0
    %785 = vmatprep.subr.mxu0 0.0
    %786 = vmatpush1.msra.mxu0 0.0
    %787 = vmatprep.subr.mxu0 0.0
    %788 = vmatpush1.msra.mxu0 0.0
    %789 = vmatprep.subr.mxu0 0.0
    %790 = vmatpush1.msra.mxu0 0.0
    %791 = vmatprep.subr.mxu0 0.0
    %792 = vmatpush1.msra.mxu0 0.0
    %793 = vmatprep.subr.mxu0 0.0
    %794 = vmatpush1.msra.mxu0 0.0
    %795 = vmatprep.subr.mxu0 0.0
    %796 = vmatpush1.msra.mxu0 0.0
    %797 = vmatprep.subr.mxu0 0.0
    %798 = vmatpush1.msra.mxu0 0.0
    %799 = vmatprep.subr.mxu0 0.0
    %800 = vmatpush1.msra.mxu0 0.0
    %801 = vmatprep.subr.mxu0 0.0
    %802 = vmatpush1.msra.mxu0 0.0
    %803 = vmatprep.subr.mxu0 0.0
    %804 = vmatpush1.msra.mxu0 0.0
    %805 = vmatprep.subr.mxu0 0.0
    %806 = vmatpush1.msra.mxu0 0.0
    %807 = vmatprep.subr.mxu0 0.0
    %808 = vmatpush1.msra.mxu0 0.0
    %809 = vmatprep.subr.mxu0 0.0
    %810 = vmatpush1.msra.mxu0 0.0
    %811 = vmatprep.subr.mxu0 0.0
    %812 = vmatpush1.msra.mxu0 0.0
    %813 = vmatprep.subr.mxu0 0.0
    %814 = vmatpush1.msra.mxu0 0.0
    %815 = vmatprep.subr.mxu0 0.0
    %816 = vmatpush1.msra.mxu0 0.0
    %817 = vmatprep.subr.mxu0 0.0
    %818 = vmatpush1.msra.mxu0 0.0
    %819 = vmatprep.subr.mxu0 0.0
    %820 = vmatpush1.msra.mxu0 0.0
    %821 = vmatprep.subr.mxu0 0.0
    %822 = vmatpush1.msra.mxu0 0.0
    %823 = vmatprep.subr.mxu0 0.0
    %824 = vmatpush1.msra.mxu0 0.0
    %825 = vmatprep.subr.mxu0 0.0
    %826 = vmatpush1.msra.mxu0 0.0
    %827 = vmatprep.mubr.f32.mxu0 0.0
    %828 = vmatmul.mubr.f32.gmra.mrb[0].mxu0 %v761
    %v829 = vpop.f32.mrb[0].mxu0
    %v830 = vadd.f32 0.0, %v829
    %v831 = vpop.f32.mrb[0].mxu0
    %832 = vdwg.mxu0
    %833 = vrot.lane.b32.xlu0 %v229, 56
    %v834 = vpop.permute.xlu0 %833
    %v837 = vsel %vm245, %v756, 0
    %839 = vmatprep.subr.mxu0 0.0
    %840 = vmatpush1.msra.mxu0 %v834
    %841 = vmatprep.subr.mxu0 0.0
    %842 = vmatpush1.msra.mxu0 0.0
    %843 = vmatprep.subr.mxu0 0.0
    %844 = vmatpush1.msra.mxu0 0.0
    %845 = vmatprep.subr.mxu0 0.0
    %846 = vmatpush1.msra.mxu0 0.0
    %847 = vmatprep.subr.mxu0 0.0
    %848 = vmatpush1.msra.mxu0 0.0
    %849 = vmatprep.subr.mxu0 0.0
    %850 = vmatpush1.msra.mxu0 0.0
    %851 = vmatprep.subr.mxu0 0.0
    %852 = vmatpush1.msra.mxu0 0.0
    %853 = vmatprep.subr.mxu0 0.0
    %854 = vmatpush1.msra.mxu0 0.0
    %855 = vmatprep.subr.mxu0 0.0
    %856 = vmatpush1.msra.mxu0 0.0
    %857 = vmatprep.subr.mxu0 0.0
    %858 = vmatpush1.msra.mxu0 0.0
    %859 = vmatprep.subr.mxu0 0.0
    %860 = vmatpush1.msra.mxu0 0.0
    %861 = vmatprep.subr.mxu0 0.0
    %862 = vmatpush1.msra.mxu0 0.0
    %863 = vmatprep.subr.mxu0 0.0
    %864 = vmatpush1.msra.mxu0 0.0
    %865 = vmatprep.subr.mxu0 0.0
    %866 = vmatpush1.msra.mxu0 0.0
    %867 = vmatprep.subr.mxu0 0.0
    %868 = vmatpush1.msra.mxu0 0.0
    %869 = vmatprep.subr.mxu0 0.0
    %870 = vmatpush1.msra.mxu0 0.0
    %871 = vmatprep.subr.mxu0 0.0
    %872 = vmatpush1.msra.mxu0 0.0
    %873 = vmatprep.subr.mxu0 0.0
    %874 = vmatpush1.msra.mxu0 0.0
    %875 = vmatprep.subr.mxu0 0.0
    %876 = vmatpush1.msra.mxu0 0.0
    %877 = vmatprep.subr.mxu0 0.0
    %878 = vmatpush1.msra.mxu0 0.0
    %879 = vmatprep.subr.mxu0 0.0
    %880 = vmatpush1.msra.mxu0 0.0
    %881 = vmatprep.subr.mxu0 0.0
    %882 = vmatpush1.msra.mxu0 0.0
    %883 = vmatprep.subr.mxu0 0.0
    %884 = vmatpush1.msra.mxu0 0.0
    %885 = vmatprep.subr.mxu0 0.0
    %886 = vmatpush1.msra.mxu0 0.0
    %887 = vmatprep.subr.mxu0 0.0
    %888 = vmatpush1.msra.mxu0 0.0
    %889 = vmatprep.subr.mxu0 0.0
    %890 = vmatpush1.msra.mxu0 0.0
    %891 = vmatprep.subr.mxu0 0.0
    %892 = vmatpush1.msra.mxu0 0.0
    %893 = vmatprep.subr.mxu0 0.0
    %894 = vmatpush1.msra.mxu0 0.0
    %895 = vmatprep.subr.mxu0 0.0
    %896 = vmatpush1.msra.mxu0 0.0
    %897 = vmatprep.subr.mxu0 0.0
    %898 = vmatpush1.msra.mxu0 0.0
    %899 = vmatprep.subr.mxu0 0.0
    %900 = vmatpush1.msra.mxu0 0.0
    %901 = vmatprep.subr.mxu0 0.0
    %902 = vmatpush1.msra.mxu0 0.0
    %903 = vmatprep.mubr.f32.mxu0 0.0
    %904 = vmatmul.mubr.f32.gmra.mrb[0].mxu0 %v837
    %v905 = vpop.f32.mrb[0].mxu0
    %v906 = vadd.f32 0.0, %v905
    %v907 = vpop.f32.mrb[0].mxu0
    %908 = vdwg.mxu0
    %v910 = vsel %vm245, %v830, 0
    %v913 = vsel %vm245, %v906, 0
    %915 = vmatprep.subr.mxu0 0.0
    %916 = vmatpush1.msra.mxu0 %v237
    %917 = vmatprep.subr.mxu0 0.0
    %918 = vmatpush1.msra.mxu0 0.0
    %919 = vmatprep.subr.mxu0 0.0
    %920 = vmatpush1.msra.mxu0 0.0
    %921 = vmatprep.subr.mxu0 0.0
    %922 = vmatpush1.msra.mxu0 0.0
    %923 = vmatprep.subr.mxu0 0.0
    %924 = vmatpush1.msra.mxu0 0.0
    %925 = vmatprep.subr.mxu0 0.0
    %926 = vmatpush1.msra.mxu0 0.0
    %927 = vmatprep.subr.mxu0 0.0
    %928 = vmatpush1.msra.mxu0 0.0
    %929 = vmatprep.subr.mxu0 0.0
    %930 = vmatpush1.msra.mxu0 0.0
    %931 = vmatprep.subr.mxu0 0.0
    %932 = vmatpush1.msra.mxu0 0.0
    %933 = vmatprep.subr.mxu0 0.0
    %934 = vmatpush1.msra.mxu0 0.0
    %935 = vmatprep.subr.mxu0 0.0
    %936 = vmatpush1.msra.mxu0 0.0
    %937 = vmatprep.subr.mxu0 0.0
    %938 = vmatpush1.msra.mxu0 0.0
    %939 = vmatprep.subr.mxu0 0.0
    %940 = vmatpush1.msra.mxu0 0.0
    %941 = vmatprep.subr.mxu0 0.0
    %942 = vmatpush1.msra.mxu0 0.0
    %943 = vmatprep.subr.mxu0 0.0
    %944 = vmatpush1.msra.mxu0 0.0
    %945 = vmatprep.subr.mxu0 0.0
    %946 = vmatpush1.msra.mxu0 0.0
    %947 = vmatprep.subr.mxu0 0.0
    %948 = vmatpush1.msra.mxu0 0.0
    %949 = vmatprep.subr.mxu0 0.0
    %950 = vmatpush1.msra.mxu0 0.0
    %951 = vmatprep.subr.mxu0 0.0
    %952 = vmatpush1.msra.mxu0 0.0
    %953 = vmatprep.subr.mxu0 0.0
    %954 = vmatpush1.msra.mxu0 0.0
    %955 = vmatprep.subr.mxu0 0.0
    %956 = vmatpush1.msra.mxu0 0.0
    %957 = vmatprep.subr.mxu0 0.0
    %958 = vmatpush1.msra.mxu0 0.0
    %959 = vmatprep.subr.mxu0 0.0
    %960 = vmatpush1.msra.mxu0 0.0
    %961 = vmatprep.subr.mxu0 0.0
    %962 = vmatpush1.msra.mxu0 0.0
    %963 = vmatprep.subr.mxu0 0.0
    %964 = vmatpush1.msra.mxu0 0.0
    %965 = vmatprep.subr.mxu0 0.0
    %966 = vmatpush1.msra.mxu0 0.0
    %967 = vmatprep.subr.mxu0 0.0
    %968 = vmatpush1.msra.mxu0 0.0
    %969 = vmatprep.subr.mxu0 0.0
    %970 = vmatpush1.msra.mxu0 0.0
    %971 = vmatprep.subr.mxu0 0.0
    %972 = vmatpush1.msra.mxu0 0.0
    %973 = vmatprep.subr.mxu0 0.0
    %974 = vmatpush1.msra.mxu0 0.0
    %975 = vmatprep.subr.mxu0 0.0
    %976 = vmatpush1.msra.mxu0 0.0
    %977 = vmatprep.subr.mxu0 0.0
    %978 = vmatpush1.msra.mxu0 0.0
    %979 = vmatprep.mubr.f32.mxu0 0.0
    %980 = vmatmul.mubr.f32.gmra.mrb[0].mxu0 %v910
    %v981 = vpop.f32.mrb[0].mxu0
    %v982 = vadd.f32 0.0, %v981
    %v983 = vpop.f32.mrb[0].mxu0
    %984 = vmatprep.mubr.f32.mxu0 0.0
    %985 = vmatmul.mubr.f32.gmra.mrb[0].mxu0 %v913
    %v986 = vpop.f32.mrb[0].mxu0
    %v987 = vadd.f32 0.0, %v986
    %v988 = vpop.f32.mrb[0].mxu0
    %989 = vdwg.mxu0
    %v991 = vsel %vm245, %v496, 0
    %v994 = vsel %vm245, %v572, 0
    %996 = vmatprep.subr.mxu0 0.0
    %997 = vmatpush1.msra.mxu0 %v236
    %998 = vmatprep.subr.mxu0 0.0
    %999 = vmatpush1.msra.mxu0 0.0
    %1000 = vmatprep.subr.mxu0 0.0
    %1001 = vmatpush1.msra.mxu0 0.0
    %1002 = vmatprep.subr.mxu0 0.0
    %1003 = vmatpush1.msra.mxu0 0.0
    %1004 = vmatprep.subr.mxu0 0.0
    %1005 = vmatpush1.msra.mxu0 0.0
    %1006 = vmatprep.subr.mxu0 0.0
    %1007 = vmatpush1.msra.mxu0 0.0
    %1008 = vmatprep.subr.mxu0 0.0
    %1009 = vmatpush1.msra.mxu0 0.0
    %1010 = vmatprep.subr.mxu0 0.0
    %1011 = vmatpush1.msra.mxu0 0.0
    %1012 = vmatprep.subr.mxu0 0.0
    %1013 = vmatpush1.msra.mxu0 0.0
    %1014 = vmatprep.subr.mxu0 0.0
    %1015 = vmatpush1.msra.mxu0 0.0
    %1016 = vmatprep.subr.mxu0 0.0
    %1017 = vmatpush1.msra.mxu0 0.0
    %1018 = vmatprep.subr.mxu0 0.0
    %1019 = vmatpush1.msra.mxu0 0.0
    %1020 = vmatprep.subr.mxu0 0.0
    %1021 = vmatpush1.msra.mxu0 0.0
    %1022 = vmatprep.subr.mxu0 0.0
    %1023 = vmatpush1.msra.mxu0 0.0
    %1024 = vmatprep.subr.mxu0 0.0
    %1025 = vmatpush1.msra.mxu0 0.0
    %1026 = vmatprep.subr.mxu0 0.0
    %1027 = vmatpush1.msra.mxu0 0.0
    %1028 = vmatprep.subr.mxu0 0.0
    %1029 = vmatpush1.msra.mxu0 0.0
    %1030 = vmatprep.subr.mxu0 0.0
    %1031 = vmatpush1.msra.mxu0 0.0
    %1032 = vmatprep.subr.mxu0 0.0
    %1033 = vmatpush1.msra.mxu0 0.0
    %1034 = vmatprep.subr.mxu0 0.0
    %1035 = vmatpush1.msra.mxu0 0.0
    %1036 = vmatprep.subr.mxu0 0.0
    %1037 = vmatpush1.msra.mxu0 0.0
    %1038 = vmatprep.subr.mxu0 0.0
    %1039 = vmatpush1.msra.mxu0 0.0
    %1040 = vmatprep.subr.mxu0 0.0
    %1041 = vmatpush1.msra.mxu0 0.0
    %1042 = vmatprep.subr.mxu0 0.0
    %1043 = vmatpush1.msra.mxu0 0.0
    %1044 = vmatprep.subr.mxu0 0.0
    %1045 = vmatpush1.msra.mxu0 0.0
    %1046 = vmatprep.subr.mxu0 0.0
    %1047 = vmatpush1.msra.mxu0 0.0
    %1048 = vmatprep.subr.mxu0 0.0
    %1049 = vmatpush1.msra.mxu0 0.0
    %1050 = vmatprep.subr.mxu0 0.0
    %1051 = vmatpush1.msra.mxu0 0.0
    %1052 = vmatprep.subr.mxu0 0.0
    %1053 = vmatpush1.msra.mxu0 0.0
    %1054 = vmatprep.subr.mxu0 0.0
    %1055 = vmatpush1.msra.mxu0 0.0
    %1056 = vmatprep.subr.mxu0 0.0
    %1057 = vmatpush1.msra.mxu0 0.0
    %1058 = vmatprep.subr.mxu0 0.0
    %1059 = vmatpush1.msra.mxu0 0.0
    %1060 = vmatprep.mubr.f32.mxu0 0.0
    %1061 = vmatmul.mubr.f32.gmra.mrb[0].mxu0 %v991
    %v1062 = vpop.f32.mrb[0].mxu0
    %v1063 = vadd.f32 %v982, %v1062
    %v1064 = vpop.f32.mrb[0].mxu0
    %1065 = vmatprep.mubr.f32.mxu0 0.0
    %1066 = vmatmul.mubr.f32.gmra.mrb[0].mxu0 %v994
    %v1067 = vpop.f32.mrb[0].mxu0
    %v1068 = vadd.f32 %v987, %v1067
    %v1069 = vpop.f32.mrb[0].mxu0
    %1070 = vdwg.mxu0
    %1071 = vrot.lane.b32.xlu0 %v224, 112
    %v1072 = vpop.permute.xlu0 %1071
    %1073 = vrot.lane.b32.xlu0 %v224, 80
    %v1074 = vpop.permute.xlu0 %1073
    %v1075 = vsel %vm245, %v1072, 0
    %v1077 = vsel %vm245, %v1074, 0
    %1079 = vmatprep.subr.mxu0 0.0
    %1080 = vmatpush1.xpose.msra.mxu0 %v1077
    %1081 = vmatprep.subr.mxu0 0.0
    %1082 = vmatpush1.xpose.msra.mxu0 0.0
    %1083 = vmatprep.subr.mxu0 0.0
    %1084 = vmatpush1.xpose.msra.mxu0 0.0
    %1085 = vmatprep.subr.mxu0 0.0
    %1086 = vmatpush1.xpose.msra.mxu0 0.0
    %1087 = vmatprep.subr.mxu0 0.0
    %1088 = vmatpush1.xpose.msra.mxu0 0.0
    %1089 = vmatprep.subr.mxu0 0.0
    %1090 = vmatpush1.xpose.msra.mxu0 0.0
    %1091 = vmatprep.subr.mxu0 0.0
    %1092 = vmatpush1.xpose.msra.mxu0 0.0
    %1093 = vmatprep.subr.mxu0 0.0
    %1094 = vmatpush1.xpose.msra.mxu0 0.0
    %1095 = vmatprep.subr.mxu0 0.0
    %1096 = vmatpush1.xpose.msra.mxu0 0.0
    %1097 = vmatprep.subr.mxu0 0.0
    %1098 = vmatpush1.xpose.msra.mxu0 0.0
    %1099 = vmatprep.subr.mxu0 0.0
    %1100 = vmatpush1.xpose.msra.mxu0 0.0
    %1101 = vmatprep.subr.mxu0 0.0
    %1102 = vmatpush1.xpose.msra.mxu0 0.0
    %1103 = vmatprep.subr.mxu0 0.0
    %1104 = vmatpush1.xpose.msra.mxu0 0.0
    %1105 = vmatprep.subr.mxu0 0.0
    %1106 = vmatpush1.xpose.msra.mxu0 0.0
    %1107 = vmatprep.subr.mxu0 0.0
    %1108 = vmatpush1.xpose.msra.mxu0 0.0
    %1109 = vmatprep.subr.mxu0 0.0
    %1110 = vmatpush1.xpose.msra.mxu0 0.0
    %1111 = vmatprep.subr.mxu0 0.0
    %1112 = vmatpush1.xpose.msra.mxu0 0.0
    %1113 = vmatprep.subr.mxu0 0.0
    %1114 = vmatpush1.xpose.msra.mxu0 0.0
    %1115 = vmatprep.subr.mxu0 0.0
    %1116 = vmatpush1.xpose.msra.mxu0 0.0
    %1117 = vmatprep.subr.mxu0 0.0
    %1118 = vmatpush1.xpose.msra.mxu0 0.0
    %1119 = vmatprep.subr.mxu0 0.0
    %1120 = vmatpush1.xpose.msra.mxu0 0.0
    %1121 = vmatprep.subr.mxu0 0.0
    %1122 = vmatpush1.xpose.msra.mxu0 0.0
    %1123 = vmatprep.subr.mxu0 0.0
    %1124 = vmatpush1.xpose.msra.mxu0 0.0
    %1125 = vmatprep.subr.mxu0 0.0
    %1126 = vmatpush1.xpose.msra.mxu0 0.0
    %1127 = vmatprep.subr.mxu0 0.0
    %1128 = vmatpush1.xpose.msra.mxu0 0.0
    %1129 = vmatprep.subr.mxu0 0.0
    %1130 = vmatpush1.xpose.msra.mxu0 0.0
    %1131 = vmatprep.subr.mxu0 0.0
    %1132 = vmatpush1.xpose.msra.mxu0 0.0
    %1133 = vmatprep.subr.mxu0 0.0
    %1134 = vmatpush1.xpose.msra.mxu0 0.0
    %1135 = vmatprep.subr.mxu0 0.0
    %1136 = vmatpush1.xpose.msra.mxu0 0.0
    %1137 = vmatprep.subr.mxu0 0.0
    %1138 = vmatpush1.xpose.msra.mxu0 0.0
    %1139 = vmatprep.subr.mxu0 0.0
    %1140 = vmatpush1.xpose.msra.mxu0 0.0
    %1141 = vmatprep.subr.mxu0 0.0
    %1142 = vmatpush1.xpose.msra.mxu0 0.0
    %1143 = vmatprep.mubr.f32.mxu0 0.0
    %1144 = vmatmul.mubr.f32.gmra.mrb[0].mxu0 %v1075
    %v1145 = vpop.f32.mrb[0].mxu0
    %v1146 = vadd.f32 0.0, %v1145
    %v1147 = vpop.f32.mrb[0].mxu0
    %1148 = vdwg.mxu0
    %1149 = vrot.lane.b32.xlu0 %v229, 112
    %v1150 = vpop.permute.xlu0 %1149
    %1151 = vrot.lane.b32.xlu0 %v229, 80
    %v1152 = vpop.permute.xlu0 %1151
    %v1153 = vsel %vm245, %v1150, 0
    %v1155 = vsel %vm245, %v1152, 0
    %1157 = vmatprep.subr.mxu0 0.0
    %1158 = vmatpush1.xpose.msra.mxu0 %v1155
    %1159 = vmatprep.subr.mxu0 0.0
    %1160 = vmatpush1.xpose.msra.mxu0 0.0
    %1161 = vmatprep.subr.mxu0 0.0
    %1162 = vmatpush1.xpose.msra.mxu0 0.0
    %1163 = vmatprep.subr.mxu0 0.0
    %1164 = vmatpush1.xpose.msra.mxu0 0.0
    %1165 = vmatprep.subr.mxu0 0.0
    %1166 = vmatpush1.xpose.msra.mxu0 0.0
    %1167 = vmatprep.subr.mxu0 0.0
    %1168 = vmatpush1.xpose.msra.mxu0 0.0
    %1169 = vmatprep.subr.mxu0 0.0
    %1170 = vmatpush1.xpose.msra.mxu0 0.0
    %1171 = vmatprep.subr.mxu0 0.0
    %1172 = vmatpush1.xpose.msra.mxu0 0.0
    %1173 = vmatprep.subr.mxu0 0.0
    %1174 = vmatpush1.xpose.msra.mxu0 0.0
    %1175 = vmatprep.subr.mxu0 0.0
    %1176 = vmatpush1.xpose.msra.mxu0 0.0
    %1177 = vmatprep.subr.mxu0 0.0
    %1178 = vmatpush1.xpose.msra.mxu0 0.0
    %1179 = vmatprep.subr.mxu0 0.0
    %1180 = vmatpush1.xpose.msra.mxu0 0.0
    %1181 = vmatprep.subr.mxu0 0.0
    %1182 = vmatpush1.xpose.msra.mxu0 0.0
    %1183 = vmatprep.subr.mxu0 0.0
    %1184 = vmatpush1.xpose.msra.mxu0 0.0
    %1185 = vmatprep.subr.mxu0 0.0
    %1186 = vmatpush1.xpose.msra.mxu0 0.0
    %1187 = vmatprep.subr.mxu0 0.0
    %1188 = vmatpush1.xpose.msra.mxu0 0.0
    %1189 = vmatprep.subr.mxu0 0.0
    %1190 = vmatpush1.xpose.msra.mxu0 0.0
    %1191 = vmatprep.subr.mxu0 0.0
    %1192 = vmatpush1.xpose.msra.mxu0 0.0
    %1193 = vmatprep.subr.mxu0 0.0
    %1194 = vmatpush1.xpose.msra.mxu0 0.0
    %1195 = vmatprep.subr.mxu0 0.0
    %1196 = vmatpush1.xpose.msra.mxu0 0.0
    %1197 = vmatprep.subr.mxu0 0.0
    %1198 = vmatpush1.xpose.msra.mxu0 0.0
    %1199 = vmatprep.subr.mxu0 0.0
    %1200 = vmatpush1.xpose.msra.mxu0 0.0
    %1201 = vmatprep.subr.mxu0 0.0
    %1202 = vmatpush1.xpose.msra.mxu0 0.0
    %1203 = vmatprep.subr.mxu0 0.0
    %1204 = vmatpush1.xpose.msra.mxu0 0.0
    %1205 = vmatprep.subr.mxu0 0.0
    %1206 = vmatpush1.xpose.msra.mxu0 0.0
    %1207 = vmatprep.subr.mxu0 0.0
    %1208 = vmatpush1.xpose.msra.mxu0 0.0
    %1209 = vmatprep.subr.mxu0 0.0
    %1210 = vmatpush1.xpose.msra.mxu0 0.0
    %1211 = vmatprep.subr.mxu0 0.0
    %1212 = vmatpush1.xpose.msra.mxu0 0.0
    %1213 = vmatprep.subr.mxu0 0.0
    %1214 = vmatpush1.xpose.msra.mxu0 0.0
    %1215 = vmatprep.subr.mxu0 0.0
    %1216 = vmatpush1.xpose.msra.mxu0 0.0
    %1217 = vmatprep.subr.mxu0 0.0
    %1218 = vmatpush1.xpose.msra.mxu0 0.0
    %1219 = vmatprep.subr.mxu0 0.0
    %1220 = vmatpush1.xpose.msra.mxu0 0.0
    %1221 = vmatprep.mubr.f32.mxu0 0.0
    %1222 = vmatmul.mubr.f32.gmra.mrb[0].mxu0 %v1153
    %v1223 = vpop.f32.mrb[0].mxu0
    %v1224 = vadd.f32 0.0, %v1223
    %v1225 = vpop.f32.mrb[0].mxu0
    %1226 = vdwg.mxu0
    %v1227 = vmul.f32 %v1146, 0.35355338
    %v1228 = vmul.f32 %v1224, 0.35355338
    %v1229 = vsel %vm234, -1e+09, %v1227
    %v1230 = vsel %vm235, -1e+09, %v1228
    %v1231 = vsel %vm245, %v1229, -inf
    %1232 = vmax.xlane.f32.xlu0 %v1231
    %v1233 = vpop.xlane.xlu0 %1232
    %v1234 = vsel %vm245, %v1230, -inf
    %1235 = vmax.xlane.f32.xlu0 %v1234
    %v1236 = vpop.xlane.xlu0 %1235
    %v1237 = vsub.f32 %v1229, %v1233
    %v1238 = vsub.f32 %v1230, %v1236
    %v1239 = vmul.f32 %v1237, 1.442695
    %v1240 = vpow.pop %v1239
    %v1241 = vmul.f32 %v1238, 1.442695
    %v1242 = vpow.pop %v1241
    %v1243 = vsel %vm245, %v1240, 0.0
    %1244 = vadd.xlane.f32.xlu0 %v1243
    %v1245 = vpop.xlane.xlu0 %1244
    %v1246 = vsel %vm245, %v1242, 0.0
    %1247 = vadd.xlane.f32.xlu0 %v1246
    %v1248 = vpop.xlane.xlu0 %1247
    %v1249 = vrcp.pop %v1245
    %v1250 = vrcp.pop %v1248
    %v1251 = vmul.f32 %v1240, %v1249
    %v1252 = vmul.f32 %v1242, %v1250
    %1253 = vrot.lane.b32.xlu0 %v224, 48
    %v1254 = vpop.permute.xlu0 %1253
    %v1257 = vsel %vm245, %v1251, 0
    %1259 = vmatprep.subr.mxu0 0.0
    %1260 = vmatpush1.msra.mxu0 %v1254
    %1261 = vmatprep.subr.mxu0 0.0
    %1262 = vmatpush1.msra.mxu0 0.0
    %1263 = vmatprep.subr.mxu0 0.0
    %1264 = vmatpush1.msra.mxu0 0.0
    %1265 = vmatprep.subr.mxu0 0.0
    %1266 = vmatpush1.msra.mxu0 0.0
    %1267 = vmatprep.subr.mxu0 0.0
    %1268 = vmatpush1.msra.mxu0 0.0
    %1269 = vmatprep.subr.mxu0 0.0
    %1270 = vmatpush1.msra.mxu0 0.0
    %1271 = vmatprep.subr.mxu0 0.0
    %1272 = vmatpush1.msra.mxu0 0.0
    %1273 = vmatprep.subr.mxu0 0.0
    %1274 = vmatpush1.msra.mxu0 0.0
    %1275 = vmatprep.subr.mxu0 0.0
    %1276 = vmatpush1.msra.mxu0 0.0
    %1277 = vmatprep.subr.mxu0 0.0
    %1278 = vmatpush1.msra.mxu0 0.0
    %1279 = vmatprep.subr.mxu0 0.0
    %1280 = vmatpush1.msra.mxu0 0.0
    %1281 = vmatprep.subr.mxu0 0.0
    %1282 = vmatpush1.msra.mxu0 0.0
    %1283 = vmatprep.subr.mxu0 0.0
    %1284 = vmatpush1.msra.mxu0 0.0
    %1285 = vmatprep.subr.mxu0 0.0
    %1286 = vmatpush1.msra.mxu0 0.0
    %1287 = vmatprep.subr.mxu0 0.0
    %1288 = vmatpush1.msra.mxu0 0.0
    %1289 = vmatprep.subr.mxu0 0.0
    %1290 = vmatpush1.msra.mxu0 0.0
    %1291 = vmatprep.subr.mxu0 0.0
    %1292 = vmatpush1.msra.mxu0 0.0
    %1293 = vmatprep.subr.mxu0 0.0
    %1294 = vmatpush1.msra.mxu0 0.0
    %1295 = vmatprep.subr.mxu0 0.0
    %1296 = vmatpush1.msra.mxu0 0.0
    %1297 = vmatprep.subr.mxu0 0.0
    %1298 = vmatpush1.msra.mxu0 0.0
    %1299 = vmatprep.subr.mxu0 0.0
    %1300 = vmatpush1.msra.mxu0 0.0
    %1301 = vmatprep.subr.mxu0 0.0
    %1302 = vmatpush1.msra.mxu0 0.0
    %1303 = vmatprep.subr.mxu0 0.0
    %1304 = vmatpush1.msra.mxu0 0.0
    %1305 = vmatprep.subr.mxu0 0.0
    %1306 = vmatpush1.msra.mxu0 0.0
    %1307 = vmatprep.subr.mxu0 0.0
    %1308 = vmatpush1.msra.mxu0 0.0
    %1309 = vmatprep.subr.mxu0 0.0
    %1310 = vmatpush1.msra.mxu0 0.0
    %1311 = vmatprep.subr.mxu0 0.0
    %1312 = vmatpush1.msra.mxu0 0.0
    %1313 = vmatprep.subr.mxu0 0.0
    %1314 = vmatpush1.msra.mxu0 0.0
    %1315 = vmatprep.subr.mxu0 0.0
    %1316 = vmatpush1.msra.mxu0 0.0
    %1317 = vmatprep.subr.mxu0 0.0
    %1318 = vmatpush1.msra.mxu0 0.0
    %1319 = vmatprep.subr.mxu0 0.0
    %1320 = vmatpush1.msra.mxu0 0.0
    %1321 = vmatprep.subr.mxu0 0.0
    %1322 = vmatpush1.msra.mxu0 0.0
    %1323 = vmatprep.mubr.f32.mxu0 0.0
    %1324 = vmatmul.mubr.f32.gmra.mrb[0].mxu0 %v1257
    %v1325 = vpop.f32.mrb[0].mxu0
    %v1326 = vadd.f32 0.0, %v1325
    %v1327 = vpop.f32.mrb[0].mxu0
    %1328 = vdwg.mxu0
    %1329 = vrot.lane.b32.xlu0 %v229, 48
    %v1330 = vpop.permute.xlu0 %1329
    %v1333 = vsel %vm245, %v1252, 0
    %1335 = vmatprep.subr.mxu0 0.0
    %1336 = vmatpush1.msra.mxu0 %v1330
    %1337 = vmatprep.subr.mxu0 0.0
    %1338 = vmatpush1.msra.mxu0 0.0
    %1339 = vmatprep.subr.mxu0 0.0
    %1340 = vmatpush1.msra.mxu0 0.0
    %1341 = vmatprep.subr.mxu0 0.0
    %1342 = vmatpush1.msra.mxu0 0.0
    %1343 = vmatprep.subr.mxu0 0.0
    %1344 = vmatpush1.msra.mxu0 0.0
    %1345 = vmatprep.subr.mxu0 0.0
    %1346 = vmatpush1.msra.mxu0 0.0
    %1347 = vmatprep.subr.mxu0 0.0
    %1348 = vmatpush1.msra.mxu0 0.0
    %1349 = vmatprep.subr.mxu0 0.0
    %1350 = vmatpush1.msra.mxu0 0.0
    %1351 = vmatprep.subr.mxu0 0.0
    %1352 = vmatpush1.msra.mxu0 0.0
    %1353 = vmatprep.subr.mxu0 0.0
    %1354 = vmatpush1.msra.mxu0 0.0
    %1355 = vmatprep.subr.mxu0 0.0
    %1356 = vmatpush1.msra.mxu0 0.0
    %1357 = vmatprep.subr.mxu0 0.0
    %1358 = vmatpush1.msra.mxu0 0.0
    %1359 = vmatprep.subr.mxu0 0.0
    %1360 = vmatpush1.msra.mxu0 0.0
    %1361 = vmatprep.subr.mxu0 0.0
    %1362 = vmatpush1.msra.mxu0 0.0
    %1363 = vmatprep.subr.mxu0 0.0
    %1364 = vmatpush1.msra.mxu0 0.0
    %1365 = vmatprep.subr.mxu0 0.0
    %1366 = vmatpush1.msra.mxu0 0.0
    %1367 = vmatprep.subr.mxu0 0.0
    %1368 = vmatpush1.msra.mxu0 0.0
    %1369 = vmatprep.subr.mxu0 0.0
    %1370 = vmatpush1.msra.mxu0 0.0
    %1371 = vmatprep.subr.mxu0 0.0
    %1372 = vmatpush1.msra.mxu0 0.0
    %1373 = vmatprep.subr.mxu0 0.0
    %1374 = vmatpush1.msra.mxu0 0.0
    %1375 = vmatprep.subr.mxu0 0.0
    %1376 = vmatpush1.msra.mxu0 0.0
    %1377 = vmatprep.subr.mxu0 0.0
    %1378 = vmatpush1.msra.mxu0 0.0
    %1379 = vmatprep.subr.mxu0 0.0
    %1380 = vmatpush1.msra.mxu0 0.0
    %1381 = vmatprep.subr.mxu0 0.0
    %1382 = vmatpush1.msra.mxu0 0.0
    %1383 = vmatprep.subr.mxu0 0.0
    %1384 = vmatpush1.msra.mxu0 0.0
    %1385 = vmatprep.subr.mxu0 0.0
    %1386 = vmatpush1.msra.mxu0 0.0
    %1387 = vmatprep.subr.mxu0 0.0
    %1388 = vmatpush1.msra.mxu0 0.0
    %1389 = vmatprep.subr.mxu0 0.0
    %1390 = vmatpush1.msra.mxu0 0.0
    %1391 = vmatprep.subr.mxu0 0.0
    %1392 = vmatpush1.msra.mxu0 0.0
    %1393 = vmatprep.subr.mxu0 0.0
    %1394 = vmatpush1.msra.mxu0 0.0
    %1395 = vmatprep.subr.mxu0 0.0
    %1396 = vmatpush1.msra.mxu0 0.0
    %1397 = vmatprep.subr.mxu0 0.0
    %1398 = vmatpush1.msra.mxu0 0.0
    %1399 = vmatprep.mubr.f32.mxu0 0.0
    %1400 = vmatmul.mubr.f32.gmra.mrb[0].mxu0 %v1333
    %v1401 = vpop.f32.mrb[0].mxu0
    %v1402 = vadd.f32 0.0, %v1401
    %v1403 = vpop.f32.mrb[0].mxu0
    %1404 = vdwg.mxu0
    %v1406 = vsel %vm245, %v1326, 0
    %v1409 = vsel %vm245, %v1402, 0
    %1411 = vmatprep.subr.mxu0 0.0
    %1412 = vmatpush1.msra.mxu0 %v238
    %1413 = vmatprep.subr.mxu0 0.0
    %1414 = vmatpush1.msra.mxu0 0.0
    %1415 = vmatprep.subr.mxu0 0.0
    %1416 = vmatpush1.msra.mxu0 0.0
    %1417 = vmatprep.subr.mxu0 0.0
    %1418 = vmatpush1.msra.mxu0 0.0
    %1419 = vmatprep.subr.mxu0 0.0
    %1420 = vmatpush1.msra.mxu0 0.0
    %1421 = vmatprep.subr.mxu0 0.0
    %1422 = vmatpush1.msra.mxu0 0.0
    %1423 = vmatprep.subr.mxu0 0.0
    %1424 = vmatpush1.msra.mxu0 0.0
    %1425 = vmatprep.subr.mxu0 0.0
    %1426 = vmatpush1.msra.mxu0 0.0
    %1427 = vmatprep.subr.mxu0 0.0
    %1428 = vmatpush1.msra.mxu0 0.0
    %1429 = vmatprep.subr.mxu0 0.0
    %1430 = vmatpush1.msra.mxu0 0.0
    %1431 = vmatprep.subr.mxu0 0.0
    %1432 = vmatpush1.msra.mxu0 0.0
    %1433 = vmatprep.subr.mxu0 0.0
    %1434 = vmatpush1.msra.mxu0 0.0
    %1435 = vmatprep.subr.mxu0 0.0
    %1436 = vmatpush1.msra.mxu0 0.0
    %1437 = vmatprep.subr.mxu0 0.0
    %1438 = vmatpush1.msra.mxu0 0.0
    %1439 = vmatprep.subr.mxu0 0.0
    %1440 = vmatpush1.msra.mxu0 0.0
    %1441 = vmatprep.subr.mxu0 0.0
    %1442 = vmatpush1.msra.mxu0 0.0
    %1443 = vmatprep.subr.mxu0 0.0
    %1444 = vmatpush1.msra.mxu0 0.0
    %1445 = vmatprep.subr.mxu0 0.0
    %1446 = vmatpush1.msra.mxu0 0.0
    %1447 = vmatprep.subr.mxu0 0.0
    %1448 = vmatpush1.msra.mxu0 0.0
    %1449 = vmatprep.subr.mxu0 0.0
    %1450 = vmatpush1.msra.mxu0 0.0
    %1451 = vmatprep.subr.mxu0 0.0
    %1452 = vmatpush1.msra.mxu0 0.0
    %1453 = vmatprep.subr.mxu0 0.0
    %1454 = vmatpush1.msra.mxu0 0.0
    %1455 = vmatprep.subr.mxu0 0.0
    %1456 = vmatpush1.msra.mxu0 0.0
    %1457 = vmatprep.subr.mxu0 0.0
    %1458 = vmatpush1.msra.mxu0 0.0
    %1459 = vmatprep.subr.mxu0 0.0
    %1460 = vmatpush1.msra.mxu0 0.0
    %1461 = vmatprep.subr.mxu0 0.0
    %1462 = vmatpush1.msra.mxu0 0.0
    %1463 = vmatprep.subr.mxu0 0.0
    %1464 = vmatpush1.msra.mxu0 0.0
    %1465 = vmatprep.subr.mxu0 0.0
    %1466 = vmatpush1.msra.mxu0 0.0
    %1467 = vmatprep.subr.mxu0 0.0
    %1468 = vmatpush1.msra.mxu0 0.0
    %1469 = vmatprep.subr.mxu0 0.0
    %1470 = vmatpush1.msra.mxu0 0.0
    %1471 = vmatprep.subr.mxu0 0.0
    %1472 = vmatpush1.msra.mxu0 0.0
    %1473 = vmatprep.subr.mxu0 0.0
    %1474 = vmatpush1.msra.mxu0 0.0
    %1475 = vmatprep.mubr.f32.mxu0 0.0
    %1476 = vmatmul.mubr.f32.gmra.mrb[0].mxu0 %v1406
    %v1477 = vpop.f32.mrb[0].mxu0
    %v1478 = vadd.f32 0.0, %v1477
    %v1479 = vpop.f32.mrb[0].mxu0
    %1480 = vmatprep.mubr.f32.mxu0 0.0
    %1481 = vmatmul.mubr.f32.gmra.mrb[0].mxu0 %v1409
    %v1482 = vpop.f32.mrb[0].mxu0
    %v1483 = vadd.f32 0.0, %v1482
    %v1484 = vpop.f32.mrb[0].mxu0
    %1485 = vdwg.mxu0
    %v1486 = vadd.f32 %v1063, %v1478
    %v1487 = vadd.f32 %v1068, %v1483
    %1488 = vrot.lane.b32.xlu0 %v224, 104
    %v1489 = vpop.permute.xlu0 %1488
    %1490 = vrot.lane.b32.xlu0 %v224, 72
    %v1491 = vpop.permute.xlu0 %1490
    %v1492 = vsel %vm245, %v1489, 0
    %v1494 = vsel %vm245, %v1491, 0
    %1496 = vmatprep.subr.mxu0 0.0
    %1497 = vmatpush1.xpose.msra.mxu0 %v1494
    %1498 = vmatprep.subr.mxu0 0.0
    %1499 = vmatpush1.xpose.msra.mxu0 0.0
    %1500 = vmatprep.subr.mxu0 0.0
    %1501 = vmatpush1.xpose.msra.mxu0 0.0
    %1502 = vmatprep.subr.mxu0 0.0
    %1503 = vmatpush1.xpose.msra.mxu0 0.0
    %1504 = vmatprep.subr.mxu0 0.0
    %1505 = vmatpush1.xpose.msra.mxu0 0.0
    %1506 = vmatprep.subr.mxu0 0.0
    %1507 = vmatpush1.xpose.msra.mxu0 0.0
    %1508 = vmatprep.subr.mxu0 0.0
    %1509 = vmatpush1.xpose.msra.mxu0 0.0
    %1510 = vmatprep.subr.mxu0 0.0
    %1511 = vmatpush1.xpose.msra.mxu0 0.0
    %1512 = vmatprep.subr.mxu0 0.0
    %1513 = vmatpush1.xpose.msra.mxu0 0.0
    %1514 = vmatprep.subr.mxu0 0.0
    %1515 = vmatpush1.xpose.msra.mxu0 0.0
    %1516 = vmatprep.subr.mxu0 0.0
    %1517 = vmatpush1.xpose.msra.mxu0 0.0
    %1518 = vmatprep.subr.mxu0 0.0
    %1519 = vmatpush1.xpose.msra.mxu0 0.0
    %1520 = vmatprep.subr.mxu0 0.0
    %1521 = vmatpush1.xpose.msra.mxu0 0.0
    %1522 = vmatprep.subr.mxu0 0.0
    %1523 = vmatpush1.xpose.msra.mxu0 0.0
    %1524 = vmatprep.subr.mxu0 0.0
    %1525 = vmatpush1.xpose.msra.mxu0 0.0
    %1526 = vmatprep.subr.mxu0 0.0
    %1527 = vmatpush1.xpose.msra.mxu0 0.0
    %1528 = vmatprep.subr.mxu0 0.0
    %1529 = vmatpush1.xpose.msra.mxu0 0.0
    %1530 = vmatprep.subr.mxu0 0.0
    %1531 = vmatpush1.xpose.msra.mxu0 0.0
    %1532 = vmatprep.subr.mxu0 0.0
    %1533 = vmatpush1.xpose.msra.mxu0 0.0
    %1534 = vmatprep.subr.mxu0 0.0
    %1535 = vmatpush1.xpose.msra.mxu0 0.0
    %1536 = vmatprep.subr.mxu0 0.0
    %1537 = vmatpush1.xpose.msra.mxu0 0.0
    %1538 = vmatprep.subr.mxu0 0.0
    %1539 = vmatpush1.xpose.msra.mxu0 0.0
    %1540 = vmatprep.subr.mxu0 0.0
    %1541 = vmatpush1.xpose.msra.mxu0 0.0
    %1542 = vmatprep.subr.mxu0 0.0
    %1543 = vmatpush1.xpose.msra.mxu0 0.0
    %1544 = vmatprep.subr.mxu0 0.0
    %1545 = vmatpush1.xpose.msra.mxu0 0.0
    %1546 = vmatprep.subr.mxu0 0.0
    %1547 = vmatpush1.xpose.msra.mxu0 0.0
    %1548 = vmatprep.subr.mxu0 0.0
    %1549 = vmatpush1.xpose.msra.mxu0 0.0
    %1550 = vmatprep.subr.mxu0 0.0
    %1551 = vmatpush1.xpose.msra.mxu0 0.0
    %1552 = vmatprep.subr.mxu0 0.0
    %1553 = vmatpush1.xpose.msra.mxu0 0.0
    %1554 = vmatprep.subr.mxu0 0.0
    %1555 = vmatpush1.xpose.msra.mxu0 0.0
    %1556 = vmatprep.subr.mxu0 0.0
    %1557 = vmatpush1.xpose.msra.mxu0 0.0
    %1558 = vmatprep.subr.mxu0 0.0
    %1559 = vmatpush1.xpose.msra.mxu0 0.0
    %1560 = vmatprep.mubr.f32.mxu0 0.0
    %1561 = vmatmul.mubr.f32.gmra.mrb[0].mxu0 %v1492
    %v1562 = vpop.f32.mrb[0].mxu0
    %v1563 = vadd.f32 0.0, %v1562
    %v1564 = vpop.f32.mrb[0].mxu0
    %1565 = vdwg.mxu0
    %1566 = vrot.lane.b32.xlu0 %v229, 104
    %v1567 = vpop.permute.xlu0 %1566
    %1568 = vrot.lane.b32.xlu0 %v229, 72
    %v1569 = vpop.permute.xlu0 %1568
    %v1570 = vsel %vm245, %v1567, 0
    %v1572 = vsel %vm245, %v1569, 0
    %1574 = vmatprep.subr.mxu0 0.0
    %1575 = vmatpush1.xpose.msra.mxu0 %v1572
    %1576 = vmatprep.subr.mxu0 0.0
    %1577 = vmatpush1.xpose.msra.mxu0 0.0
    %1578 = vmatprep.subr.mxu0 0.0
    %1579 = vmatpush1.xpose.msra.mxu0 0.0
    %1580 = vmatprep.subr.mxu0 0.0
    %1581 = vmatpush1.xpose.msra.mxu0 0.0
    %1582 = vmatprep.subr.mxu0 0.0
    %1583 = vmatpush1.xpose.msra.mxu0 0.0
    %1584 = vmatprep.subr.mxu0 0.0
    %1585 = vmatpush1.xpose.msra.mxu0 0.0
    %1586 = vmatprep.subr.mxu0 0.0
    %1587 = vmatpush1.xpose.msra.mxu0 0.0
    %1588 = vmatprep.subr.mxu0 0.0
    %1589 = vmatpush1.xpose.msra.mxu0 0.0
    %1590 = vmatprep.subr.mxu0 0.0
    %1591 = vmatpush1.xpose.msra.mxu0 0.0
    %1592 = vmatprep.subr.mxu0 0.0
    %1593 = vmatpush1.xpose.msra.mxu0 0.0
    %1594 = vmatprep.subr.mxu0 0.0
    %1595 = vmatpush1.xpose.msra.mxu0 0.0
    %1596 = vmatprep.subr.mxu0 0.0
    %1597 = vmatpush1.xpose.msra.mxu0 0.0
    %1598 = vmatprep.subr.mxu0 0.0
    %1599 = vmatpush1.xpose.msra.mxu0 0.0
    %1600 = vmatprep.subr.mxu0 0.0
    %1601 = vmatpush1.xpose.msra.mxu0 0.0
    %1602 = vmatprep.subr.mxu0 0.0
    %1603 = vmatpush1.xpose.msra.mxu0 0.0
    %1604 = vmatprep.subr.mxu0 0.0
    %1605 = vmatpush1.xpose.msra.mxu0 0.0
    %1606 = vmatprep.subr.mxu0 0.0
    %1607 = vmatpush1.xpose.msra.mxu0 0.0
    %1608 = vmatprep.subr.mxu0 0.0
    %1609 = vmatpush1.xpose.msra.mxu0 0.0
    %1610 = vmatprep.subr.mxu0 0.0
    %1611 = vmatpush1.xpose.msra.mxu0 0.0
    %1612 = vmatprep.subr.mxu0 0.0
    %1613 = vmatpush1.xpose.msra.mxu0 0.0
    %1614 = vmatprep.subr.mxu0 0.0
    %1615 = vmatpush1.xpose.msra.mxu0 0.0
    %1616 = vmatprep.subr.mxu0 0.0
    %1617 = vmatpush1.xpose.msra.mxu0 0.0
    %1618 = vmatprep.subr.mxu0 0.0
    %1619 = vmatpush1.xpose.msra.mxu0 0.0
    %1620 = vmatprep.subr.mxu0 0.0
    %1621 = vmatpush1.xpose.msra.mxu0 0.0
    %1622 = vmatprep.subr.mxu0 0.0
    %1623 = vmatpush1.xpose.msra.mxu0 0.0
    %1624 = vmatprep.subr.mxu0 0.0
    %1625 = vmatpush1.xpose.msra.mxu0 0.0
    %1626 = vmatprep.subr.mxu0 0.0
    %1627 = vmatpush1.xpose.msra.mxu0 0.0
    %1628 = vmatprep.subr.mxu0 0.0
    %1629 = vmatpush1.xpose.msra.mxu0 0.0
    %1630 = vmatprep.subr.mxu0 0.0
    %1631 = vmatpush1.xpose.msra.mxu0 0.0
    %1632 = vmatprep.subr.mxu0 0.0
    %1633 = vmatpush1.xpose.msra.mxu0 0.0
    %1634 = vmatprep.subr.mxu0 0.0
    %1635 = vmatpush1.xpose.msra.mxu0 0.0
    %1636 = vmatprep.subr.mxu0 0.0
    %1637 = vmatpush1.xpose.msra.mxu0 0.0
    %1638 = vmatprep.mubr.f32.mxu0 0.0
    %1639 = vmatmul.mubr.f32.gmra.mrb[0].mxu0 %v1570
    %v1640 = vpop.f32.mrb[0].mxu0
    %v1641 = vadd.f32 0.0, %v1640
    %v1642 = vpop.f32.mrb[0].mxu0
    %1643 = vdwg.mxu0
    %v1644 = vmul.f32 %v1563, 0.35355338
    %v1645 = vmul.f32 %v1641, 0.35355338
    %v1646 = vsel %vm234, -1e+09, %v1644
    %v1647 = vsel %vm235, -1e+09, %v1645
    %v1648 = vsel %vm245, %v1646, -inf
    %1649 = vmax.xlane.f32.xlu0 %v1648
    %v1650 = vpop.xlane.xlu0 %1649
    %v1651 = vsel %vm245, %v1647, -inf
    %1652 = vmax.xlane.f32.xlu0 %v1651
    %v1653 = vpop.xlane.xlu0 %1652
    %v1654 = vsub.f32 %v1646, %v1650
    %v1655 = vsub.f32 %v1647, %v1653
    %v1656 = vmul.f32 %v1654, 1.442695
    %v1657 = vpow.pop %v1656
    %v1658 = vmul.f32 %v1655, 1.442695
    %v1659 = vpow.pop %v1658
    %v1660 = vsel %vm245, %v1657, 0.0
    %1661 = vadd.xlane.f32.xlu0 %v1660
    %v1662 = vpop.xlane.xlu0 %1661
    %v1663 = vsel %vm245, %v1659, 0.0
    %1664 = vadd.xlane.f32.xlu0 %v1663
    %v1665 = vpop.xlane.xlu0 %1664
    %v1666 = vrcp.pop %v1662
    %v1667 = vrcp.pop %v1665
    %v1668 = vmul.f32 %v1657, %v1666
    %v1669 = vmul.f32 %v1659, %v1667
    %1670 = vrot.lane.b32.xlu0 %v224, 40
    %v1671 = vpop.permute.xlu0 %1670
    %v1674 = vsel %vm245, %v1668, 0
    %1676 = vmatprep.subr.mxu0 0.0
    %1677 = vmatpush1.msra.mxu0 %v1671
    %1678 = vmatprep.subr.mxu0 0.0
    %1679 = vmatpush1.msra.mxu0 0.0
    %1680 = vmatprep.subr.mxu0 0.0
    %1681 = vmatpush1.msra.mxu0 0.0
    %1682 = vmatprep.subr.mxu0 0.0
    %1683 = vmatpush1.msra.mxu0 0.0
    %1684 = vmatprep.subr.mxu0 0.0
    %1685 = vmatpush1.msra.mxu0 0.0
    %1686 = vmatprep.subr.mxu0 0.0
    %1687 = vmatpush1.msra.mxu0 0.0
    %1688 = vmatprep.subr.mxu0 0.0
    %1689 = vmatpush1.msra.mxu0 0.0
    %1690 = vmatprep.subr.mxu0 0.0
    %1691 = vmatpush1.msra.mxu0 0.0
    %1692 = vmatprep.subr.mxu0 0.0
    %1693 = vmatpush1.msra.mxu0 0.0
    %1694 = vmatprep.subr.mxu0 0.0
    %1695 = vmatpush1.msra.mxu0 0.0
    %1696 = vmatprep.subr.mxu0 0.0
    %1697 = vmatpush1.msra.mxu0 0.0
    %1698 = vmatprep.subr.mxu0 0.0
    %1699 = vmatpush1.msra.mxu0 0.0
    %1700 = vmatprep.subr.mxu0 0.0
    %1701 = vmatpush1.msra.mxu0 0.0
    %1702 = vmatprep.subr.mxu0 0.0
    %1703 = vmatpush1.msra.mxu0 0.0
    %1704 = vmatprep.subr.mxu0 0.0
    %1705 = vmatpush1.msra.mxu0 0.0
    %1706 = vmatprep.subr.mxu0 0.0
    %1707 = vmatpush1.msra.mxu0 0.0
    %1708 = vmatprep.subr.mxu0 0.0
    %1709 = vmatpush1.msra.mxu0 0.0
    %1710 = vmatprep.subr.mxu0 0.0
    %1711 = vmatpush1.msra.mxu0 0.0
    %1712 = vmatprep.subr.mxu0 0.0
    %1713 = vmatpush1.msra.mxu0 0.0
    %1714 = vmatprep.subr.mxu0 0.0
    %1715 = vmatpush1.msra.mxu0 0.0
    %1716 = vmatprep.subr.mxu0 0.0
    %1717 = vmatpush1.msra.mxu0 0.0
    %1718 = vmatprep.subr.mxu0 0.0
    %1719 = vmatpush1.msra.mxu0 0.0
    %1720 = vmatprep.subr.mxu0 0.0
    %1721 = vmatpush1.msra.mxu0 0.0
    %1722 = vmatprep.subr.mxu0 0.0
    %1723 = vmatpush1.msra.mxu0 0.0
    %1724 = vmatprep.subr.mxu0 0.0
    %1725 = vmatpush1.msra.mxu0 0.0
    %1726 = vmatprep.subr.mxu0 0.0
    %1727 = vmatpush1.msra.mxu0 0.0
    %1728 = vmatprep.subr.mxu0 0.0
    %1729 = vmatpush1.msra.mxu0 0.0
    %1730 = vmatprep.subr.mxu0 0.0
    %1731 = vmatpush1.msra.mxu0 0.0
    %1732 = vmatprep.subr.mxu0 0.0
    %1733 = vmatpush1.msra.mxu0 0.0
    %1734 = vmatprep.subr.mxu0 0.0
    %1735 = vmatpush1.msra.mxu0 0.0
    %1736 = vmatprep.subr.mxu0 0.0
    %1737 = vmatpush1.msra.mxu0 0.0
    %1738 = vmatprep.subr.mxu0 0.0
    %1739 = vmatpush1.msra.mxu0 0.0
    %1740 = vmatprep.mubr.f32.mxu0 0.0
    %1741 = vmatmul.mubr.f32.gmra.mrb[0].mxu0 %v1674
    %v1742 = vpop.f32.mrb[0].mxu0
    %v1743 = vadd.f32 0.0, %v1742
    %v1744 = vpop.f32.mrb[0].mxu0
    %1745 = vdwg.mxu0
    %1746 = vrot.lane.b32.xlu0 %v229, 40
    %v1747 = vpop.permute.xlu0 %1746
    %v1750 = vsel %vm245, %v1669, 0
    %1752 = vmatprep.subr.mxu0 0.0
    %1753 = vmatpush1.msra.mxu0 %v1747
    %1754 = vmatprep.subr.mxu0 0.0
    %1755 = vmatpush1.msra.mxu0 0.0
    %1756 = vmatprep.subr.mxu0 0.0
    %1757 = vmatpush1.msra.mxu0 0.0
    %1758 = vmatprep.subr.mxu0 0.0
    %1759 = vmatpush1.msra.mxu0 0.0
    %1760 = vmatprep.subr.mxu0 0.0
    %1761 = vmatpush1.msra.mxu0 0.0
    %1762 = vmatprep.subr.mxu0 0.0
    %1763 = vmatpush1.msra.mxu0 0.0
    %1764 = vmatprep.subr.mxu0 0.0
    %1765 = vmatpush1.msra.mxu0 0.0
    %1766 = vmatprep.subr.mxu0 0.0
    %1767 = vmatpush1.msra.mxu0 0.0
    %1768 = vmatprep.subr.mxu0 0.0
    %1769 = vmatpush1.msra.mxu0 0.0
    %1770 = vmatprep.subr.mxu0 0.0
    %1771 = vmatpush1.msra.mxu0 0.0
    %1772 = vmatprep.subr.mxu0 0.0
    %1773 = vmatpush1.msra.mxu0 0.0
    %1774 = vmatprep.subr.mxu0 0.0
    %1775 = vmatpush1.msra.mxu0 0.0
    %1776 = vmatprep.subr.mxu0 0.0
    %1777 = vmatpush1.msra.mxu0 0.0
    %1778 = vmatprep.subr.mxu0 0.0
    %1779 = vmatpush1.msra.mxu0 0.0
    %1780 = vmatprep.subr.mxu0 0.0
    %1781 = vmatpush1.msra.mxu0 0.0
    %1782 = vmatprep.subr.mxu0 0.0
    %1783 = vmatpush1.msra.mxu0 0.0
    %1784 = vmatprep.subr.mxu0 0.0
    %1785 = vmatpush1.msra.mxu0 0.0
    %1786 = vmatprep.subr.mxu0 0.0
    %1787 = vmatpush1.msra.mxu0 0.0
    %1788 = vmatprep.subr.mxu0 0.0
    %1789 = vmatpush1.msra.mxu0 0.0
    %1790 = vmatprep.subr.mxu0 0.0
    %1791 = vmatpush1.msra.mxu0 0.0
    %1792 = vmatprep.subr.mxu0 0.0
    %1793 = vmatpush1.msra.mxu0 0.0
    %1794 = vmatprep.subr.mxu0 0.0
    %1795 = vmatpush1.msra.mxu0 0.0
    %1796 = vmatprep.subr.mxu0 0.0
    %1797 = vmatpush1.msra.mxu0 0.0
    %1798 = vmatprep.subr.mxu0 0.0
    %1799 = vmatpush1.msra.mxu0 0.0
    %1800 = vmatprep.subr.mxu0 0.0
    %1801 = vmatpush1.msra.mxu0 0.0
    %1802 = vmatprep.subr.mxu0 0.0
    %1803 = vmatpush1.msra.mxu0 0.0
    %1804 = vmatprep.subr.mxu0 0.0
    %1805 = vmatpush1.msra.mxu0 0.0
    %1806 = vmatprep.subr.mxu0 0.0
    %1807 = vmatpush1.msra.mxu0 0.0
    %1808 = vmatprep.subr.mxu0 0.0
    %1809 = vmatpush1.msra.mxu0 0.0
    %1810 = vmatprep.subr.mxu0 0.0
    %1811 = vmatpush1.msra.mxu0 0.0
    %1812 = vmatprep.subr.mxu0 0.0
    %1813 = vmatpush1.msra.mxu0 0.0
    %1814 = vmatprep.subr.mxu0 0.0
    %1815 = vmatpush1.msra.mxu0 0.0
    %1816 = vmatprep.mubr.f32.mxu0 0.0
    %1817 = vmatmul.mubr.f32.gmra.mrb[0].mxu0 %v1750
    %v1818 = vpop.f32.mrb[0].mxu0
    %v1819 = vadd.f32 0.0, %v1818
    %v1820 = vpop.f32.mrb[0].mxu0
    %1821 = vdwg.mxu0
    %v1823 = vsel %vm245, %v1743, 0
    %v1826 = vsel %vm245, %v1819, 0
    %1828 = vmatprep.subr.mxu0 0.0
    %1829 = vmatpush1.msra.mxu0 %v239
    %1830 = vmatprep.subr.mxu0 0.0
    %1831 = vmatpush1.msra.mxu0 0.0
    %1832 = vmatprep.subr.mxu0 0.0
    %1833 = vmatpush1.msra.mxu0 0.0
    %1834 = vmatprep.subr.mxu0 0.0
    %1835 = vmatpush1.msra.mxu0 0.0
    %1836 = vmatprep.subr.mxu0 0.0
    %1837 = vmatpush1.msra.mxu0 0.0
    %1838 = vmatprep.subr.mxu0 0.0
    %1839 = vmatpush1.msra.mxu0 0.0
    %1840 = vmatprep.subr.mxu0 0.0
    %1841 = vmatpush1.msra.mxu0 0.0
    %1842 = vmatprep.subr.mxu0 0.0
    %1843 = vmatpush1.msra.mxu0 0.0
    %1844 = vmatprep.subr.mxu0 0.0
    %1845 = vmatpush1.msra.mxu0 0.0
    %1846 = vmatprep.subr.mxu0 0.0
    %1847 = vmatpush1.msra.mxu0 0.0
    %1848 = vmatprep.subr.mxu0 0.0
    %1849 = vmatpush1.msra.mxu0 0.0
    %1850 = vmatprep.subr.mxu0 0.0
    %1851 = vmatpush1.msra.mxu0 0.0
    %1852 = vmatprep.subr.mxu0 0.0
    %1853 = vmatpush1.msra.mxu0 0.0
    %1854 = vmatprep.subr.mxu0 0.0
    %1855 = vmatpush1.msra.mxu0 0.0
    %1856 = vmatprep.subr.mxu0 0.0
    %1857 = vmatpush1.msra.mxu0 0.0
    %1858 = vmatprep.subr.mxu0 0.0
    %1859 = vmatpush1.msra.mxu0 0.0
    %1860 = vmatprep.subr.mxu0 0.0
    %1861 = vmatpush1.msra.mxu0 0.0
    %1862 = vmatprep.subr.mxu0 0.0
    %1863 = vmatpush1.msra.mxu0 0.0
    %1864 = vmatprep.subr.mxu0 0.0
    %1865 = vmatpush1.msra.mxu0 0.0
    %1866 = vmatprep.subr.mxu0 0.0
    %1867 = vmatpush1.msra.mxu0 0.0
    %1868 = vmatprep.subr.mxu0 0.0
    %1869 = vmatpush1.msra.mxu0 0.0
    %1870 = vmatprep.subr.mxu0 0.0
    %1871 = vmatpush1.msra.mxu0 0.0
    %1872 = vmatprep.subr.mxu0 0.0
    %1873 = vmatpush1.msra.mxu0 0.0
    %1874 = vmatprep.subr.mxu0 0.0
    %1875 = vmatpush1.msra.mxu0 0.0
    %1876 = vmatprep.subr.mxu0 0.0
    %1877 = vmatpush1.msra.mxu0 0.0
    %1878 = vmatprep.subr.mxu0 0.0
    %1879 = vmatpush1.msra.mxu0 0.0
    %1880 = vmatprep.subr.mxu0 0.0
    %1881 = vmatpush1.msra.mxu0 0.0
    %1882 = vmatprep.subr.mxu0 0.0
    %1883 = vmatpush1.msra.mxu0 0.0
    %1884 = vmatprep.subr.mxu0 0.0
    %1885 = vmatpush1.msra.mxu0 0.0
    %1886 = vmatprep.subr.mxu0 0.0
    %1887 = vmatpush1.msra.mxu0 0.0
    %1888 = vmatprep.subr.mxu0 0.0
    %1889 = vmatpush1.msra.mxu0 0.0
    %1890 = vmatprep.subr.mxu0 0.0
    %1891 = vmatpush1.msra.mxu0 0.0
    %1892 = vmatprep.mubr.f32.mxu0 0.0
    %1893 = vmatmul.mubr.f32.gmra.mrb[0].mxu0 %v1823
    %v1894 = vpop.f32.mrb[0].mxu0
    %v1895 = vadd.f32 0.0, %v1894
    %v1896 = vpop.f32.mrb[0].mxu0
    %1897 = vmatprep.mubr.f32.mxu0 0.0
    %1898 = vmatmul.mubr.f32.gmra.mrb[0].mxu0 %v1826
    %v1899 = vpop.f32.mrb[0].mxu0
    %v1900 = vadd.f32 0.0, %v1899
    %v1901 = vpop.f32.mrb[0].mxu0
    %1902 = vdwg.mxu0
    %v1903 = vadd.f32 %v1486, %v1895
    %v1904 = vadd.f32 %v1487, %v1900
    %v1905 = vadd.f32 %v1903, %v142
    %v1906 = vadd.f32 %v1904, %v143
    %v1907 = vsel %vm150, %v1905, 0.0
    %1908 = vadd.xlane.f32.xlu0 %v1907
    %v1909 = vpop.xlane.xlu0 %1908
    %v1910 = vsel %vm150, %v1906, 0.0
    %1911 = vadd.xlane.f32.xlu0 %v1910
    %v1912 = vpop.xlane.xlu0 %1911
    %v1913 = vrcp.pop 32.0
    %v1914 = vmul.f32 %v1909, %v1913
    %v1915 = vmul.f32 %v1912, %v1913
    %v1916 = vsub.f32 %v1905, %v1914
    %v1917 = vsub.f32 %v1906, %v1915
    %v1918 = vmul.f32 %v1916, %v1916
    %v1919 = vmul.f32 %v1917, %v1917
    %v1920 = vsel %vm150, %v1918, 0.0
    %1921 = vadd.xlane.f32.xlu0 %v1920
    %v1922 = vpop.xlane.xlu0 %1921
    %v1923 = vsel %vm150, %v1919, 0.0
    %1924 = vadd.xlane.f32.xlu0 %v1923
    %v1925 = vpop.xlane.xlu0 %1924
    %v1926 = vmul.f32 %v1922, %v1913
    %v1927 = vmul.f32 %v1925, %v1913
    %v1928 = vadd.f32 %v1926, 1e-06
    %v1929 = vadd.f32 %v1927, 1e-06
    %v1930 = vrsqrt.pop %v1928
    %v1931 = vrsqrt.pop %v1929
    %v1932 = vmul.f32 %v1916, %v1930
    %v1933 = vmul.f32 %v1917, %v1931
    %v1935 = vlaneseq
    %v1936 = vshrl.u32 %v1935, 7
    %v1937 = vsub.s32 0, %v1936
    %v1938 = vrot.slane %v240, %v1937
    %v1940 = vmul.f32 %v1932, %v1938
    %v1941 = vmul.f32 %v1933, %v1938
    %v1943 = vlaneseq
    %v1944 = vshrl.u32 %v1943, 7
    %v1945 = vsub.s32 0, %v1944
    %v1946 = vrot.slane %v241, %v1945
    %v1948 = vadd.f32 %v1940, %v1946
    %v1949 = vadd.f32 %v1941, %v1946
    %v1950 = vld [vmem:[%s7] sm:$0xff]
    %v1951 = vld [vmem:[%s7 + $0x8] sm:$0xff]
    %v1952 = vld [vmem:[%s7 + $0x10] sm:$0xff]
    %v1953 = vld [vmem:[%s7 + $0x18] sm:$0xff]
    %v1955 = vsel %vm150, %v1948, 0
    %v1958 = vsel %vm150, %v1949, 0
    %1960 = vmatprep.subr.mxu0 0.0
    %1961 = vmatpush1.msra.mxu0 %v1950
    %1962 = vmatprep.subr.mxu0 0.0
    %1963 = vmatpush1.msra.mxu0 %v1951
    %1964 = vmatprep.subr.mxu0 0.0
    %1965 = vmatpush1.msra.mxu0 %v1952
    %1966 = vmatprep.subr.mxu0 0.0
    %1967 = vmatpush1.msra.mxu0 %v1953
    %1968 = vmatprep.subr.mxu0 0.0
    %1969 = vmatpush1.msra.mxu0 0.0
    %1970 = vmatprep.subr.mxu0 0.0
    %1971 = vmatpush1.msra.mxu0 0.0
    %1972 = vmatprep.subr.mxu0 0.0
    %1973 = vmatpush1.msra.mxu0 0.0
    %1974 = vmatprep.subr.mxu0 0.0
    %1975 = vmatpush1.msra.mxu0 0.0
    %1976 = vmatprep.subr.mxu0 0.0
    %1977 = vmatpush1.msra.mxu0 0.0
    %1978 = vmatprep.subr.mxu0 0.0
    %1979 = vmatpush1.msra.mxu0 0.0
    %1980 = vmatprep.subr.mxu0 0.0
    %1981 = vmatpush1.msra.mxu0 0.0
    %1982 = vmatprep.subr.mxu0 0.0
    %1983 = vmatpush1.msra.mxu0 0.0
    %1984 = vmatprep.subr.mxu0 0.0
    %1985 = vmatpush1.msra.mxu0 0.0
    %1986 = vmatprep.subr.mxu0 0.0
    %1987 = vmatpush1.msra.mxu0 0.0
    %1988 = vmatprep.subr.mxu0 0.0
    %1989 = vmatpush1.msra.mxu0 0.0
    %1990 = vmatprep.subr.mxu0 0.0
    %1991 = vmatpush1.msra.mxu0 0.0
    %1992 = vmatprep.subr.mxu0 0.0
    %1993 = vmatpush1.msra.mxu0 0.0
    %1994 = vmatprep.subr.mxu0 0.0
    %1995 = vmatpush1.msra.mxu0 0.0
    %1996 = vmatprep.subr.mxu0 0.0
    %1997 = vmatpush1.msra.mxu0 0.0
    %1998 = vmatprep.subr.mxu0 0.0
    %1999 = vmatpush1.msra.mxu0 0.0
    %2000 = vmatprep.subr.mxu0 0.0
    %2001 = vmatpush1.msra.mxu0 0.0
    %2002 = vmatprep.subr.mxu0 0.0
    %2003 = vmatpush1.msra.mxu0 0.0
    %2004 = vmatprep.subr.mxu0 0.0
    %2005 = vmatpush1.msra.mxu0 0.0
    %2006 = vmatprep.subr.mxu0 0.0
    %2007 = vmatpush1.msra.mxu0 0.0
    %2008 = vmatprep.subr.mxu0 0.0
    %2009 = vmatpush1.msra.mxu0 0.0
    %2010 = vmatprep.subr.mxu0 0.0
    %2011 = vmatpush1.msra.mxu0 0.0
    %2012 = vmatprep.subr.mxu0 0.0
    %2013 = vmatpush1.msra.mxu0 0.0
    %2014 = vmatprep.subr.mxu0 0.0
    %2015 = vmatpush1.msra.mxu0 0.0
    %2016 = vmatprep.subr.mxu0 0.0
    %2017 = vmatpush1.msra.mxu0 0.0
    %2018 = vmatprep.subr.mxu0 0.0
    %2019 = vmatpush1.msra.mxu0 0.0
    %2020 = vmatprep.subr.mxu0 0.0
    %2021 = vmatpush1.msra.mxu0 0.0
    %2022 = vmatprep.subr.mxu0 0.0
    %2023 = vmatpush1.msra.mxu0 0.0
    %2024 = vmatprep.mubr.f32.mxu0 0.0
    %2025 = vmatmul.mubr.f32.gmra.mrb[0].mxu0 %v1955
    %v2026 = vpop.f32.mrb[0].mxu0
    %v2027 = vadd.f32 0.0, %v2026
    %v2028 = vpop.f32.mrb[0].mxu0
    %2029 = vmatprep.mubr.f32.mxu0 0.0
    %2030 = vmatmul.mubr.f32.gmra.mrb[0].mxu0 %v1958
    %v2031 = vpop.f32.mrb[0].mxu0
    %v2032 = vadd.f32 0.0, %v2031
    %v2033 = vpop.f32.mrb[0].mxu0
    %2034 = vdwg.mxu0
    %v2035 = vld [vmem:[#allocation8] sm:$0xff]
    %v2036 = vld [vmem:[#allocation8 + $0x8] sm:$0xff]
    %v2037 = vld [vmem:[#allocation8 + $0x10] sm:$0xff]
    %v2038 = vld [vmem:[#allocation8 + $0x18] sm:$0xff]
    %v2040 = vsel %vm150, %v144, 0
    %v2043 = vsel %vm150, %v145, 0
    %2045 = vmatprep.subr.mxu0 0.0
    %2046 = vmatpush1.msra.mxu0 %v2035
    %2047 = vmatprep.subr.mxu0 0.0
    %2048 = vmatpush1.msra.mxu0 %v2036
    %2049 = vmatprep.subr.mxu0 0.0
    %2050 = vmatpush1.msra.mxu0 %v2037
    %2051 = vmatprep.subr.mxu0 0.0
    %2052 = vmatpush1.msra.mxu0 %v2038
    %2053 = vmatprep.subr.mxu0 0.0
    %2054 = vmatpush1.msra.mxu0 0.0
    %2055 = vmatprep.subr.mxu0 0.0
    %2056 = vmatpush1.msra.mxu0 0.0
    %2057 = vmatprep.subr.mxu0 0.0
    %2058 = vmatpush1.msra.mxu0 0.0
    %2059 = vmatprep.subr.mxu0 0.0
    %2060 = vmatpush1.msra.mxu0 0.0
    %2061 = vmatprep.subr.mxu0 0.0
    %2062 = vmatpush1.msra.mxu0 0.0
    %2063 = vmatprep.subr.mxu0 0.0
    %2064 = vmatpush1.msra.mxu0 0.0
    %2065 = vmatprep.subr.mxu0 0.0
    %2066 = vmatpush1.msra.mxu0 0.0
    %2067 = vmatprep.subr.mxu0 0.0
    %2068 = vmatpush1.msra.mxu0 0.0
    %2069 = vmatprep.subr.mxu0 0.0
    %2070 = vmatpush1.msra.mxu0 0.0
    %2071 = vmatprep.subr.mxu0 0.0
    %2072 = vmatpush1.msra.mxu0 0.0
    %2073 = vmatprep.subr.mxu0 0.0
    %2074 = vmatpush1.msra.mxu0 0.0
    %2075 = vmatprep.subr.mxu0 0.0
    %2076 = vmatpush1.msra.mxu0 0.0
    %2077 = vmatprep.subr.mxu0 0.0
    %2078 = vmatpush1.msra.mxu0 0.0
    %2079 = vmatprep.subr.mxu0 0.0
    %2080 = vmatpush1.msra.mxu0 0.0
    %2081 = vmatprep.subr.mxu0 0.0
    %2082 = vmatpush1.msra.mxu0 0.0
    %2083 = vmatprep.subr.mxu0 0.0
    %2084 = vmatpush1.msra.mxu0 0.0
    %2085 = vmatprep.subr.mxu0 0.0
    %2086 = vmatpush1.msra.mxu0 0.0
    %2087 = vmatprep.subr.mxu0 0.0
    %2088 = vmatpush1.msra.mxu0 0.0
    %2089 = vmatprep.subr.mxu0 0.0
    %2090 = vmatpush1.msra.mxu0 0.0
    %2091 = vmatprep.subr.mxu0 0.0
    %2092 = vmatpush1.msra.mxu0 0.0
    %2093 = vmatprep.subr.mxu0 0.0
    %2094 = vmatpush1.msra.mxu0 0.0
    %2095 = vmatprep.subr.mxu0 0.0
    %2096 = vmatpush1.msra.mxu0 0.0
    %2097 = vmatprep.subr.mxu0 0.0
    %2098 = vmatpush1.msra.mxu0 0.0
    %2099 = vmatprep.subr.mxu0 0.0
    %2100 = vmatpush1.msra.mxu0 0.0
    %2101 = vmatprep.subr.mxu0 0.0
    %2102 = vmatpush1.msra.mxu0 0.0
    %2103 = vmatprep.subr.mxu0 0.0
    %2104 = vmatpush1.msra.mxu0 0.0
    %2105 = vmatprep.subr.mxu0 0.0
    %2106 = vmatpush1.msra.mxu0 0.0
    %2107 = vmatprep.subr.mxu0 0.0
    %2108 = vmatpush1.msra.mxu0 0.0
    %2109 = vmatprep.mubr.f32.mxu0 0.0
    %2110 = vmatmul.mubr.f32.gmra.mrb[0].mxu0 %v2040
    %v2111 = vpop.f32.mrb[0].mxu0
    %v2112 = vadd.f32 0.0, %v2111
    %v2113 = vpop.f32.mrb[0].mxu0
    %2114 = vmatprep.mubr.f32.mxu0 0.0
    %2115 = vmatmul.mubr.f32.gmra.mrb[0].mxu0 %v2043
    %v2116 = vpop.f32.mrb[0].mxu0
    %v2117 = vadd.f32 0.0, %v2116
    %v2118 = vpop.f32.mrb[0].mxu0
    %2119 = vdwg.mxu0
    %v2120 = vld [vmem:[#allocation10] sm:$0xff]
    %v2121 = vld [vmem:[#allocation10 + $0x8] sm:$0xff]
    %v2122 = vld [vmem:[#allocation10 + $0x10] sm:$0xff]
    %v2123 = vld [vmem:[#allocation10 + $0x18] sm:$0xff]
    %v2124 = vld [vmem:[%s10] sm:$0x1]
    %v2125 = vld [vmem:[%s11] sm:$0x1]
    %v2127 = vsel %vm245, %v2027, 0
    %v2130 = vsel %vm245, %v2112, 0
    %2132 = vmatprep.subr.mxu0 0.0
    %2133 = vmatpush1.xpose.msra.mxu0 %v2130
    %2134 = vmatprep.subr.mxu0 0.0
    %2135 = vmatpush1.xpose.msra.mxu0 0.0
    %2136 = vmatprep.subr.mxu0 0.0
    %2137 = vmatpush1.xpose.msra.mxu0 0.0
    %2138 = vmatprep.subr.mxu0 0.0
    %2139 = vmatpush1.xpose.msra.mxu0 0.0
    %2140 = vmatprep.subr.mxu0 0.0
    %2141 = vmatpush1.xpose.msra.mxu0 0.0
    %2142 = vmatprep.subr.mxu0 0.0
    %2143 = vmatpush1.xpose.msra.mxu0 0.0
    %2144 = vmatprep.subr.mxu0 0.0
    %2145 = vmatpush1.xpose.msra.mxu0 0.0
    %2146 = vmatprep.subr.mxu0 0.0
    %2147 = vmatpush1.xpose.msra.mxu0 0.0
    %2148 = vmatprep.subr.mxu0 0.0
    %2149 = vmatpush1.xpose.msra.mxu0 0.0
    %2150 = vmatprep.subr.mxu0 0.0
    %2151 = vmatpush1.xpose.msra.mxu0 0.0
    %2152 = vmatprep.subr.mxu0 0.0
    %2153 = vmatpush1.xpose.msra.mxu0 0.0
    %2154 = vmatprep.subr.mxu0 0.0
    %2155 = vmatpush1.xpose.msra.mxu0 0.0
    %2156 = vmatprep.subr.mxu0 0.0
    %2157 = vmatpush1.xpose.msra.mxu0 0.0
    %2158 = vmatprep.subr.mxu0 0.0
    %2159 = vmatpush1.xpose.msra.mxu0 0.0
    %2160 = vmatprep.subr.mxu0 0.0
    %2161 = vmatpush1.xpose.msra.mxu0 0.0
    %2162 = vmatprep.subr.mxu0 0.0
    %2163 = vmatpush1.xpose.msra.mxu0 0.0
    %2164 = vmatprep.subr.mxu0 0.0
    %2165 = vmatpush1.xpose.msra.mxu0 0.0
    %2166 = vmatprep.subr.mxu0 0.0
    %2167 = vmatpush1.xpose.msra.mxu0 0.0
    %2168 = vmatprep.subr.mxu0 0.0
    %2169 = vmatpush1.xpose.msra.mxu0 0.0
    %2170 = vmatprep.subr.mxu0 0.0
    %2171 = vmatpush1.xpose.msra.mxu0 0.0
    %2172 = vmatprep.subr.mxu0 0.0
    %2173 = vmatpush1.xpose.msra.mxu0 0.0
    %2174 = vmatprep.subr.mxu0 0.0
    %2175 = vmatpush1.xpose.msra.mxu0 0.0
    %2176 = vmatprep.subr.mxu0 0.0
    %2177 = vmatpush1.xpose.msra.mxu0 0.0
    %2178 = vmatprep.subr.mxu0 0.0
    %2179 = vmatpush1.xpose.msra.mxu0 0.0
    %2180 = vmatprep.subr.mxu0 0.0
    %2181 = vmatpush1.xpose.msra.mxu0 0.0
    %2182 = vmatprep.subr.mxu0 0.0
    %2183 = vmatpush1.xpose.msra.mxu0 0.0
    %2184 = vmatprep.subr.mxu0 0.0
    %2185 = vmatpush1.xpose.msra.mxu0 0.0
    %2186 = vmatprep.subr.mxu0 0.0
    %2187 = vmatpush1.xpose.msra.mxu0 0.0
    %2188 = vmatprep.subr.mxu0 0.0
    %2189 = vmatpush1.xpose.msra.mxu0 0.0
    %2190 = vmatprep.subr.mxu0 0.0
    %2191 = vmatpush1.xpose.msra.mxu0 0.0
    %2192 = vmatprep.subr.mxu0 0.0
    %2193 = vmatpush1.xpose.msra.mxu0 0.0
    %2194 = vmatprep.subr.mxu0 0.0
    %2195 = vmatpush1.xpose.msra.mxu0 0.0
    %2196 = vmatprep.mubr.f32.mxu0 0.0
    %2197 = vmatmul.mubr.f32.gmra.mrb[0].mxu0 %v2127
    %v2198 = vpop.f32.mrb[0].mxu0
    %v2199 = vadd.f32 0.0, %v2198
    %v2200 = vpop.f32.mrb[0].mxu0
    %2201 = vdwg.mxu0
    %v2203 = vsel %vm245, %v2032, 0
    %v2206 = vsel %vm245, %v2117, 0
    %2208 = vmatprep.subr.mxu0 0.0
    %2209 = vmatpush1.xpose.msra.mxu0 %v2206
    %2210 = vmatprep.subr.mxu0 0.0
    %2211 = vmatpush1.xpose.msra.mxu0 0.0
    %2212 = vmatprep.subr.mxu0 0.0
    %2213 = vmatpush1.xpose.msra.mxu0 0.0
    %2214 = vmatprep.subr.mxu0 0.0
    %2215 = vmatpush1.xpose.msra.mxu0 0.0
    %2216 = vmatprep.subr.mxu0 0.0
    %2217 = vmatpush1.xpose.msra.mxu0 0.0
    %2218 = vmatprep.subr.mxu0 0.0
    %2219 = vmatpush1.xpose.msra.mxu0 0.0
    %2220 = vmatprep.subr.mxu0 0.0
    %2221 = vmatpush1.xpose.msra.mxu0 0.0
    %2222 = vmatprep.subr.mxu0 0.0
    %2223 = vmatpush1.xpose.msra.mxu0 0.0
    %2224 = vmatprep.subr.mxu0 0.0
    %2225 = vmatpush1.xpose.msra.mxu0 0.0
    %2226 = vmatprep.subr.mxu0 0.0
    %2227 = vmatpush1.xpose.msra.mxu0 0.0
    %2228 = vmatprep.subr.mxu0 0.0
    %2229 = vmatpush1.xpose.msra.mxu0 0.0
    %2230 = vmatprep.subr.mxu0 0.0
    %2231 = vmatpush1.xpose.msra.mxu0 0.0
    %2232 = vmatprep.subr.mxu0 0.0
    %2233 = vmatpush1.xpose.msra.mxu0 0.0
    %2234 = vmatprep.subr.mxu0 0.0
    %2235 = vmatpush1.xpose.msra.mxu0 0.0
    %2236 = vmatprep.subr.mxu0 0.0
    %2237 = vmatpush1.xpose.msra.mxu0 0.0
    %2238 = vmatprep.subr.mxu0 0.0
    %2239 = vmatpush1.xpose.msra.mxu0 0.0
    %2240 = vmatprep.subr.mxu0 0.0
    %2241 = vmatpush1.xpose.msra.mxu0 0.0
    %2242 = vmatprep.subr.mxu0 0.0
    %2243 = vmatpush1.xpose.msra.mxu0 0.0
    %2244 = vmatprep.subr.mxu0 0.0
    %2245 = vmatpush1.xpose.msra.mxu0 0.0
    %2246 = vmatprep.subr.mxu0 0.0
    %2247 = vmatpush1.xpose.msra.mxu0 0.0
    %2248 = vmatprep.subr.mxu0 0.0
    %2249 = vmatpush1.xpose.msra.mxu0 0.0
    %2250 = vmatprep.subr.mxu0 0.0
    %2251 = vmatpush1.xpose.msra.mxu0 0.0
    %2252 = vmatprep.subr.mxu0 0.0
    %2253 = vmatpush1.xpose.msra.mxu0 0.0
    %2254 = vmatprep.subr.mxu0 0.0
    %2255 = vmatpush1.xpose.msra.mxu0 0.0
    %2256 = vmatprep.subr.mxu0 0.0
    %2257 = vmatpush1.xpose.msra.mxu0 0.0
    %2258 = vmatprep.subr.mxu0 0.0
    %2259 = vmatpush1.xpose.msra.mxu0 0.0
    %2260 = vmatprep.subr.mxu0 0.0
    %2261 = vmatpush1.xpose.msra.mxu0 0.0
    %2262 = vmatprep.subr.mxu0 0.0
    %2263 = vmatpush1.xpose.msra.mxu0 0.0
    %2264 = vmatprep.subr.mxu0 0.0
    %2265 = vmatpush1.xpose.msra.mxu0 0.0
    %2266 = vmatprep.subr.mxu0 0.0
    %2267 = vmatpush1.xpose.msra.mxu0 0.0
    %2268 = vmatprep.subr.mxu0 0.0
    %2269 = vmatpush1.xpose.msra.mxu0 0.0
    %2270 = vmatprep.subr.mxu0 0.0
    %2271 = vmatpush1.xpose.msra.mxu0 0.0
    %2272 = vmatprep.mubr.f32.mxu0 0.0
    %2273 = vmatmul.mubr.f32.gmra.mrb[0].mxu0 %v2203
    %v2274 = vpop.f32.mrb[0].mxu0
    %v2275 = vadd.f32 0.0, %v2274
    %v2276 = vpop.f32.mrb[0].mxu0
    %2277 = vdwg.mxu0
    %v2278 = vmul.f32 %v2199, 0.35355338
    %v2279 = vmul.f32 %v2275, 0.35355338
    %v2280 = vsel %vm245, %v2278, -inf
    %2281 = vmax.xlane.f32.xlu0 %v2280
    %v2282 = vpop.xlane.xlu0 %2281
    %v2283 = vsel %vm245, %v2279, -inf
    %2284 = vmax.xlane.f32.xlu0 %v2283
    %v2285 = vpop.xlane.xlu0 %2284
    %v2286 = vsub.f32 %v2278, %v2282
    %v2287 = vsub.f32 %v2279, %v2285
    %v2288 = vmul.f32 %v2286, 1.442695
    %v2289 = vpow.pop %v2288
    %v2290 = vmul.f32 %v2287, 1.442695
    %v2291 = vpow.pop %v2290
    %v2292 = vsel %vm245, %v2289, 0.0
    %2293 = vadd.xlane.f32.xlu0 %v2292
    %v2294 = vpop.xlane.xlu0 %2293
    %v2295 = vsel %vm245, %v2291, 0.0
    %2296 = vadd.xlane.f32.xlu0 %v2295
    %v2297 = vpop.xlane.xlu0 %2296
    %v2298 = vrcp.pop %v2294
    %v2299 = vrcp.pop %v2297
    %v2300 = vmul.f32 %v2289, %v2298
    %v2301 = vmul.f32 %v2291, %v2299
    %2302 = vrot.lane.b32.xlu0 %v2112, 96
    %v2303 = vpop.permute.xlu0 %2302
    %v2306 = vsel %vm245, %v2300, 0
    %2308 = vmatprep.subr.mxu0 0.0
    %2309 = vmatpush1.msra.mxu0 %v2303
    %2310 = vmatprep.subr.mxu0 0.0
    %2311 = vmatpush1.msra.mxu0 0.0
    %2312 = vmatprep.subr.mxu0 0.0
    %2313 = vmatpush1.msra.mxu0 0.0
    %2314 = vmatprep.subr.mxu0 0.0
    %2315 = vmatpush1.msra.mxu0 0.0
    %2316 = vmatprep.subr.mxu0 0.0
    %2317 = vmatpush1.msra.mxu0 0.0
    %2318 = vmatprep.subr.mxu0 0.0
    %2319 = vmatpush1.msra.mxu0 0.0
    %2320 = vmatprep.subr.mxu0 0.0
    %2321 = vmatpush1.msra.mxu0 0.0
    %2322 = vmatprep.subr.mxu0 0.0
    %2323 = vmatpush1.msra.mxu0 0.0
    %2324 = vmatprep.subr.mxu0 0.0
    %2325 = vmatpush1.msra.mxu0 0.0
    %2326 = vmatprep.subr.mxu0 0.0
    %2327 = vmatpush1.msra.mxu0 0.0
    %2328 = vmatprep.subr.mxu0 0.0
    %2329 = vmatpush1.msra.mxu0 0.0
    %2330 = vmatprep.subr.mxu0 0.0
    %2331 = vmatpush1.msra.mxu0 0.0
    %2332 = vmatprep.subr.mxu0 0.0
    %2333 = vmatpush1.msra.mxu0 0.0
    %2334 = vmatprep.subr.mxu0 0.0
    %2335 = vmatpush1.msra.mxu0 0.0
    %2336 = vmatprep.subr.mxu0 0.0
    %2337 = vmatpush1.msra.mxu0 0.0
    %2338 = vmatprep.subr.mxu0 0.0
    %2339 = vmatpush1.msra.mxu0 0.0
    %2340 = vmatprep.subr.mxu0 0.0
    %2341 = vmatpush1.msra.mxu0 0.0
    %2342 = vmatprep.subr.mxu0 0.0
    %2343 = vmatpush1.msra.mxu0 0.0
    %2344 = vmatprep.subr.mxu0 0.0
    %2345 = vmatpush1.msra.mxu0 0.0
    %2346 = vmatprep.subr.mxu0 0.0
    %2347 = vmatpush1.msra.mxu0 0.0
    %2348 = vmatprep.subr.mxu0 0.0
    %2349 = vmatpush1.msra.mxu0 0.0
    %2350 = vmatprep.subr.mxu0 0.0
    %2351 = vmatpush1.msra.mxu0 0.0
    %2352 = vmatprep.subr.mxu0 0.0
    %2353 = vmatpush1.msra.mxu0 0.0
    %2354 = vmatprep.subr.mxu0 0.0
    %2355 = vmatpush1.msra.mxu0 0.0
    %2356 = vmatprep.subr.mxu0 0.0
    %2357 = vmatpush1.msra.mxu0 0.0
    %2358 = vmatprep.subr.mxu0 0.0
    %2359 = vmatpush1.msra.mxu0 0.0
    %2360 = vmatprep.subr.mxu0 0.0
    %2361 = vmatpush1.msra.mxu0 0.0
    %2362 = vmatprep.subr.mxu0 0.0
    %2363 = vmatpush1.msra.mxu0 0.0
    %2364 = vmatprep.subr.mxu0 0.0
    %2365 = vmatpush1.msra.mxu0 0.0
    %2366 = vmatprep.subr.mxu0 0.0
    %2367 = vmatpush1.msra.mxu0 0.0
    %2368 = vmatprep.subr.mxu0 0.0
    %2369 = vmatpush1.msra.mxu0 0.0
    %2370 = vmatprep.subr.mxu0 0.0
    %2371 = vmatpush1.msra.mxu0 0.0
    %2372 = vmatprep.mubr.f32.mxu0 0.0
    %2373 = vmatmul.mubr.f32.gmra.mrb[0].mxu0 %v2306
    %v2374 = vpop.f32.mrb[0].mxu0
    %v2375 = vadd.f32 0.0, %v2374
    %v2376 = vpop.f32.mrb[0].mxu0
    %2377 = vdwg.mxu0
    %2378 = vrot.lane.b32.xlu0 %v2117, 96
    %v2379 = vpop.permute.xlu0 %2378
    %v2382 = vsel %vm245, %v2301, 0
    %2384 = vmatprep.subr.mxu0 0.0
    %2385 = vmatpush1.msra.mxu0 %v2379
    %2386 = vmatprep.subr.mxu0 0.0
    %2387 = vmatpush1.msra.mxu0 0.0
    %2388 = vmatprep.subr.mxu0 0.0
    %2389 = vmatpush1.msra.mxu0 0.0
    %2390 = vmatprep.subr.mxu0 0.0
    %2391 = vmatpush1.msra.mxu0 0.0
    %2392 = vmatprep.subr.mxu0 0.0
    %2393 = vmatpush1.msra.mxu0 0.0
    %2394 = vmatprep.subr.mxu0 0.0
    %2395 = vmatpush1.msra.mxu0 0.0
    %2396 = vmatprep.subr.mxu0 0.0
    %2397 = vmatpush1.msra.mxu0 0.0
    %2398 = vmatprep.subr.mxu0 0.0
    %2399 = vmatpush1.msra.mxu0 0.0
    %2400 = vmatprep.subr.mxu0 0.0
    %2401 = vmatpush1.msra.mxu0 0.0
    %2402 = vmatprep.subr.mxu0 0.0
    %2403 = vmatpush1.msra.mxu0 0.0
    %2404 = vmatprep.subr.mxu0 0.0
    %2405 = vmatpush1.msra.mxu0 0.0
    %2406 = vmatprep.subr.mxu0 0.0
    %2407 = vmatpush1.msra.mxu0 0.0
    %2408 = vmatprep.subr.mxu0 0.0
    %2409 = vmatpush1.msra.mxu0 0.0
    %2410 = vmatprep.subr.mxu0 0.0
    %2411 = vmatpush1.msra.mxu0 0.0
    %2412 = vmatprep.subr.mxu0 0.0
    %2413 = vmatpush1.msra.mxu0 0.0
    %2414 = vmatprep.subr.mxu0 0.0
    %2415 = vmatpush1.msra.mxu0 0.0
    %2416 = vmatprep.subr.mxu0 0.0
    %2417 = vmatpush1.msra.mxu0 0.0
    %2418 = vmatprep.subr.mxu0 0.0
    %2419 = vmatpush1.msra.mxu0 0.0
    %2420 = vmatprep.subr.mxu0 0.0
    %2421 = vmatpush1.msra.mxu0 0.0
    %2422 = vmatprep.subr.mxu0 0.0
    %2423 = vmatpush1.msra.mxu0 0.0
    %2424 = vmatprep.subr.mxu0 0.0
    %2425 = vmatpush1.msra.mxu0 0.0
    %2426 = vmatprep.subr.mxu0 0.0
    %2427 = vmatpush1.msra.mxu0 0.0
    %2428 = vmatprep.subr.mxu0 0.0
    %2429 = vmatpush1.msra.mxu0 0.0
    %2430 = vmatprep.subr.mxu0 0.0
    %2431 = vmatpush1.msra.mxu0 0.0
    %2432 = vmatprep.subr.mxu0 0.0
    %2433 = vmatpush1.msra.mxu0 0.0
    %2434 = vmatprep.subr.mxu0 0.0
    %2435 = vmatpush1.msra.mxu0 0.0
    %2436 = vmatprep.subr.mxu0 0.0
    %2437 = vmatpush1.msra.mxu0 0.0
    %2438 = vmatprep.subr.mxu0 0.0
    %2439 = vmatpush1.msra.mxu0 0.0
    %2440 = vmatprep.subr.mxu0 0.0
    %2441 = vmatpush1.msra.mxu0 0.0
    %2442 = vmatprep.subr.mxu0 0.0
    %2443 = vmatpush1.msra.mxu0 0.0
    %2444 = vmatprep.subr.mxu0 0.0
    %2445 = vmatpush1.msra.mxu0 0.0
    %2446 = vmatprep.subr.mxu0 0.0
    %2447 = vmatpush1.msra.mxu0 0.0
    %2448 = vmatprep.mubr.f32.mxu0 0.0
    %2449 = vmatmul.mubr.f32.gmra.mrb[0].mxu0 %v2382
    %v2450 = vpop.f32.mrb[0].mxu0
    %v2451 = vadd.f32 0.0, %v2450
    %v2452 = vpop.f32.mrb[0].mxu0
    %2453 = vdwg.mxu0
    %2454 = vrot.lane.b32.xlu0 %v2027, 120
    %v2455 = vpop.permute.xlu0 %2454
    %2456 = vrot.lane.b32.xlu0 %v2112, 120
    %v2457 = vpop.permute.xlu0 %2456
    %v2458 = vsel %vm245, %v2455, 0
    %v2460 = vsel %vm245, %v2457, 0
    %2462 = vmatprep.subr.mxu0 0.0
    %2463 = vmatpush1.xpose.msra.mxu0 %v2460
    %2464 = vmatprep.subr.mxu0 0.0
    %2465 = vmatpush1.xpose.msra.mxu0 0.0
    %2466 = vmatprep.subr.mxu0 0.0
    %2467 = vmatpush1.xpose.msra.mxu0 0.0
    %2468 = vmatprep.subr.mxu0 0.0
    %2469 = vmatpush1.xpose.msra.mxu0 0.0
    %2470 = vmatprep.subr.mxu0 0.0
    %2471 = vmatpush1.xpose.msra.mxu0 0.0
    %2472 = vmatprep.subr.mxu0 0.0
    %2473 = vmatpush1.xpose.msra.mxu0 0.0
    %2474 = vmatprep.subr.mxu0 0.0
    %2475 = vmatpush1.xpose.msra.mxu0 0.0
    %2476 = vmatprep.subr.mxu0 0.0
    %2477 = vmatpush1.xpose.msra.mxu0 0.0
    %2478 = vmatprep.subr.mxu0 0.0
    %2479 = vmatpush1.xpose.msra.mxu0 0.0
    %2480 = vmatprep.subr.mxu0 0.0
    %2481 = vmatpush1.xpose.msra.mxu0 0.0
    %2482 = vmatprep.subr.mxu0 0.0
    %2483 = vmatpush1.xpose.msra.mxu0 0.0
    %2484 = vmatprep.subr.mxu0 0.0
    %2485 = vmatpush1.xpose.msra.mxu0 0.0
    %2486 = vmatprep.subr.mxu0 0.0
    %2487 = vmatpush1.xpose.msra.mxu0 0.0
    %2488 = vmatprep.subr.mxu0 0.0
    %2489 = vmatpush1.xpose.msra.mxu0 0.0
    %2490 = vmatprep.subr.mxu0 0.0
    %2491 = vmatpush1.xpose.msra.mxu0 0.0
    %2492 = vmatprep.subr.mxu0 0.0
    %2493 = vmatpush1.xpose.msra.mxu0 0.0
    %2494 = vmatprep.subr.mxu0 0.0
    %2495 = vmatpush1.xpose.msra.mxu0 0.0
    %2496 = vmatprep.subr.mxu0 0.0
    %2497 = vmatpush1.xpose.msra.mxu0 0.0
    %2498 = vmatprep.subr.mxu0 0.0
    %2499 = vmatpush1.xpose.msra.mxu0 0.0
    %2500 = vmatprep.subr.mxu0 0.0
    %2501 = vmatpush1.xpose.msra.mxu0 0.0
    %2502 = vmatprep.subr.mxu0 0.0
    %2503 = vmatpush1.xpose.msra.mxu0 0.0
    %2504 = vmatprep.subr.mxu0 0.0
    %2505 = vmatpush1.xpose.msra.mxu0 0.0
    %2506 = vmatprep.subr.mxu0 0.0
    %2507 = vmatpush1.xpose.msra.mxu0 0.0
    %2508 = vmatprep.subr.mxu0 0.0
    %2509 = vmatpush1.xpose.msra.mxu0 0.0
    %2510 = vmatprep.subr.mxu0 0.0
    %2511 = vmatpush1.xpose.msra.mxu0 0.0
    %2512 = vmatprep.subr.mxu0 0.0
    %2513 = vmatpush1.xpose.msra.mxu0 0.0
    %2514 = vmatprep.subr.mxu0 0.0
    %2515 = vmatpush1.xpose.msra.mxu0 0.0
    %2516 = vmatprep.subr.mxu0 0.0
    %2517 = vmatpush1.xpose.msra.mxu0 0.0
    %2518 = vmatprep.subr.mxu0 0.0
    %2519 = vmatpush1.xpose.msra.mxu0 0.0
    %2520 = vmatprep.subr.mxu0 0.0
    %2521 = vmatpush1.xpose.msra.mxu0 0.0
    %2522 = vmatprep.subr.mxu0 0.0
    %2523 = vmatpush1.xpose.msra.mxu0 0.0
    %2524 = vmatprep.subr.mxu0 0.0
    %2525 = vmatpush1.xpose.msra.mxu0 0.0
    %2526 = vmatprep.mubr.f32.mxu0 0.0
    %2527 = vmatmul.mubr.f32.gmra.mrb[0].mxu0 %v2458
    %v2528 = vpop.f32.mrb[0].mxu0
    %v2529 = vadd.f32 0.0, %v2528
    %v2530 = vpop.f32.mrb[0].mxu0
    %2531 = vdwg.mxu0
    %2532 = vrot.lane.b32.xlu0 %v2032, 120
    %v2533 = vpop.permute.xlu0 %2532
    %2534 = vrot.lane.b32.xlu0 %v2117, 120
    %v2535 = vpop.permute.xlu0 %2534
    %v2536 = vsel %vm245, %v2533, 0
    %v2538 = vsel %vm245, %v2535, 0
    %2540 = vmatprep.subr.mxu0 0.0
    %2541 = vmatpush1.xpose.msra.mxu0 %v2538
    %2542 = vmatprep.subr.mxu0 0.0
    %2543 = vmatpush1.xpose.msra.mxu0 0.0
    %2544 = vmatprep.subr.mxu0 0.0
    %2545 = vmatpush1.xpose.msra.mxu0 0.0
    %2546 = vmatprep.subr.mxu0 0.0
    %2547 = vmatpush1.xpose.msra.mxu0 0.0
    %2548 = vmatprep.subr.mxu0 0.0
    %2549 = vmatpush1.xpose.msra.mxu0 0.0
    %2550 = vmatprep.subr.mxu0 0.0
    %2551 = vmatpush1.xpose.msra.mxu0 0.0
    %2552 = vmatprep.subr.mxu0 0.0
    %2553 = vmatpush1.xpose.msra.mxu0 0.0
    %2554 = vmatprep.subr.mxu0 0.0
    %2555 = vmatpush1.xpose.msra.mxu0 0.0
    %2556 = vmatprep.subr.mxu0 0.0
    %2557 = vmatpush1.xpose.msra.mxu0 0.0
    %2558 = vmatprep.subr.mxu0 0.0
    %2559 = vmatpush1.xpose.msra.mxu0 0.0
    %2560 = vmatprep.subr.mxu0 0.0
    %2561 = vmatpush1.xpose.msra.mxu0 0.0
    %2562 = vmatprep.subr.mxu0 0.0
    %2563 = vmatpush1.xpose.msra.mxu0 0.0
    %2564 = vmatprep.subr.mxu0 0.0
    %2565 = vmatpush1.xpose.msra.mxu0 0.0
    %2566 = vmatprep.subr.mxu0 0.0
    %2567 = vmatpush1.xpose.msra.mxu0 0.0
    %2568 = vmatprep.subr.mxu0 0.0
    %2569 = vmatpush1.xpose.msra.mxu0 0.0
    %2570 = vmatprep.subr.mxu0 0.0
    %2571 = vmatpush1.xpose.msra.mxu0 0.0
    %2572 = vmatprep.subr.mxu0 0.0
    %2573 = vmatpush1.xpose.msra.mxu0 0.0
    %2574 = vmatprep.subr.mxu0 0.0
    %2575 = vmatpush1.xpose.msra.mxu0 0.0
    %2576 = vmatprep.subr.mxu0 0.0
    %2577 = vmatpush1.xpose.msra.mxu0 0.0
    %2578 = vmatprep.subr.mxu0 0.0
    %2579 = vmatpush1.xpose.msra.mxu0 0.0
    %2580 = vmatprep.subr.mxu0 0.0
    %2581 = vmatpush1.xpose.msra.mxu0 0.0
    %2582 = vmatprep.subr.mxu0 0.0
    %2583 = vmatpush1.xpose.msra.mxu0 0.0
    %2584 = vmatprep.subr.mxu0 0.0
    %2585 = vmatpush1.xpose.msra.mxu0 0.0
    %2586 = vmatprep.subr.mxu0 0.0
    %2587 = vmatpush1.xpose.msra.mxu0 0.0
    %2588 = vmatprep.subr.mxu0 0.0
    %2589 = vmatpush1.xpose.msra.mxu0 0.0
    %2590 = vmatprep.subr.mxu0 0.0
    %2591 = vmatpush1.xpose.msra.mxu0 0.0
    %2592 = vmatprep.subr.mxu0 0.0
    %2593 = vmatpush1.xpose.msra.mxu0 0.0
    %2594 = vmatprep.subr.mxu0 0.0
    %2595 = vmatpush1.xpose.msra.mxu0 0.0
    %2596 = vmatprep.subr.mxu0 0.0
    %2597 = vmatpush1.xpose.msra.mxu0 0.0
    %2598 = vmatprep.subr.mxu0 0.0
    %2599 = vmatpush1.xpose.msra.mxu0 0.0
    %2600 = vmatprep.subr.mxu0 0.0
    %2601 = vmatpush1.xpose.msra.mxu0 0.0
    %2602 = vmatprep.subr.mxu0 0.0
    %2603 = vmatpush1.xpose.msra.mxu0 0.0
    %2604 = vmatprep.mubr.f32.mxu0 0.0
    %2605 = vmatmul.mubr.f32.gmra.mrb[0].mxu0 %v2536
    %v2606 = vpop.f32.mrb[0].mxu0
    %v2607 = vadd.f32 0.0, %v2606
    %v2608 = vpop.f32.mrb[0].mxu0
    %2609 = vdwg.mxu0
    %v2610 = vmul.f32 %v2529, 0.35355338
    %v2611 = vmul.f32 %v2607, 0.35355338
    %v2612 = vsel %vm245, %v2610, -inf
    %2613 = vmax.xlane.f32.xlu0 %v2612
    %v2614 = vpop.xlane.xlu0 %2613
    %v2615 = vsel %vm245, %v2611, -inf
    %2616 = vmax.xlane.f32.xlu0 %v2615
    %v2617 = vpop.xlane.xlu0 %2616
    %v2618 = vsub.f32 %v2610, %v2614
    %v2619 = vsub.f32 %v2611, %v2617
    %v2620 = vmul.f32 %v2618, 1.442695
    %v2621 = vpow.pop %v2620
    %v2622 = vmul.f32 %v2619, 1.442695
    %v2623 = vpow.pop %v2622
    %v2624 = vsel %vm245, %v2621, 0.0
    %2625 = vadd.xlane.f32.xlu0 %v2624
    %v2626 = vpop.xlane.xlu0 %2625
    %v2627 = vsel %vm245, %v2623, 0.0
    %2628 = vadd.xlane.f32.xlu0 %v2627
    %v2629 = vpop.xlane.xlu0 %2628
    %v2630 = vrcp.pop %v2626
    %v2631 = vrcp.pop %v2629
    %v2632 = vmul.f32 %v2621, %v2630
    %v2633 = vmul.f32 %v2623, %v2631
    %2634 = vrot.lane.b32.xlu0 %v2112, 88
    %v2635 = vpop.permute.xlu0 %2634
    %v2638 = vsel %vm245, %v2632, 0
    %2640 = vmatprep.subr.mxu0 0.0
    %2641 = vmatpush1.msra.mxu0 %v2635
    %2642 = vmatprep.subr.mxu0 0.0
    %2643 = vmatpush1.msra.mxu0 0.0
    %2644 = vmatprep.subr.mxu0 0.0
    %2645 = vmatpush1.msra.mxu0 0.0
    %2646 = vmatprep.subr.mxu0 0.0
    %2647 = vmatpush1.msra.mxu0 0.0
    %2648 = vmatprep.subr.mxu0 0.0
    %2649 = vmatpush1.msra.mxu0 0.0
    %2650 = vmatprep.subr.mxu0 0.0
    %2651 = vmatpush1.msra.mxu0 0.0
    %2652 = vmatprep.subr.mxu0 0.0
    %2653 = vmatpush1.msra.mxu0 0.0
    %2654 = vmatprep.subr.mxu0 0.0
    %2655 = vmatpush1.msra.mxu0 0.0
    %2656 = vmatprep.subr.mxu0 0.0
    %2657 = vmatpush1.msra.mxu0 0.0
    %2658 = vmatprep.subr.mxu0 0.0
    %2659 = vmatpush1.msra.mxu0 0.0
    %2660 = vmatprep.subr.mxu0 0.0
    %2661 = vmatpush1.msra.mxu0 0.0
    %2662 = vmatprep.subr.mxu0 0.0
    %2663 = vmatpush1.msra.mxu0 0.0
    %2664 = vmatprep.subr.mxu0 0.0
    %2665 = vmatpush1.msra.mxu0 0.0
    %2666 = vmatprep.subr.mxu0 0.0
    %2667 = vmatpush1.msra.mxu0 0.0
    %2668 = vmatprep.subr.mxu0 0.0
    %2669 = vmatpush1.msra.mxu0 0.0
    %2670 = vmatprep.subr.mxu0 0.0
    %2671 = vmatpush1.msra.mxu0 0.0
    %2672 = vmatprep.subr.mxu0 0.0
    %2673 = vmatpush1.msra.mxu0 0.0
    %2674 = vmatprep.subr.mxu0 0.0
    %2675 = vmatpush1.msra.mxu0 0.0
    %2676 = vmatprep.subr.mxu0 0.0
    %2677 = vmatpush1.msra.mxu0 0.0
    %2678 = vmatprep.subr.mxu0 0.0
    %2679 = vmatpush1.msra.mxu0 0.0
    %2680 = vmatprep.subr.mxu0 0.0
    %2681 = vmatpush1.msra.mxu0 0.0
    %2682 = vmatprep.subr.mxu0 0.0
    %2683 = vmatpush1.msra.mxu0 0.0
    %2684 = vmatprep.subr.mxu0 0.0
    %2685 = vmatpush1.msra.mxu0 0.0
    %2686 = vmatprep.subr.mxu0 0.0
    %2687 = vmatpush1.msra.mxu0 0.0
    %2688 = vmatprep.subr.mxu0 0.0
    %2689 = vmatpush1.msra.mxu0 0.0
    %2690 = vmatprep.subr.mxu0 0.0
    %2691 = vmatpush1.msra.mxu0 0.0
    %2692 = vmatprep.subr.mxu0 0.0
    %2693 = vmatpush1.msra.mxu0 0.0
    %2694 = vmatprep.subr.mxu0 0.0
    %2695 = vmatpush1.msra.mxu0 0.0
    %2696 = vmatprep.subr.mxu0 0.0
    %2697 = vmatpush1.msra.mxu0 0.0
    %2698 = vmatprep.subr.mxu0 0.0
    %2699 = vmatpush1.msra.mxu0 0.0
    %2700 = vmatprep.subr.mxu0 0.0
    %2701 = vmatpush1.msra.mxu0 0.0
    %2702 = vmatprep.subr.mxu0 0.0
    %2703 = vmatpush1.msra.mxu0 0.0
    %2704 = vmatprep.mubr.f32.mxu0 0.0
    %2705 = vmatmul.mubr.f32.gmra.mrb[0].mxu0 %v2638
    %v2706 = vpop.f32.mrb[0].mxu0
    %v2707 = vadd.f32 0.0, %v2706
    %v2708 = vpop.f32.mrb[0].mxu0
    %2709 = vdwg.mxu0
    %2710 = vrot.lane.b32.xlu0 %v2117, 88
    %v2711 = vpop.permute.xlu0 %2710
    %v2714 = vsel %vm245, %v2633, 0
    %2716 = vmatprep.subr.mxu0 0.0
    %2717 = vmatpush1.msra.mxu0 %v2711
    %2718 = vmatprep.subr.mxu0 0.0
    %2719 = vmatpush1.msra.mxu0 0.0
    %2720 = vmatprep.subr.mxu0 0.0
    %2721 = vmatpush1.msra.mxu0 0.0
    %2722 = vmatprep.subr.mxu0 0.0
    %2723 = vmatpush1.msra.mxu0 0.0
    %2724 = vmatprep.subr.mxu0 0.0
    %2725 = vmatpush1.msra.mxu0 0.0
    %2726 = vmatprep.subr.mxu0 0.0
    %2727 = vmatpush1.msra.mxu0 0.0
    %2728 = vmatprep.subr.mxu0 0.0
    %2729 = vmatpush1.msra.mxu0 0.0
    %2730 = vmatprep.subr.mxu0 0.0
    %2731 = vmatpush1.msra.mxu0 0.0
    %2732 = vmatprep.subr.mxu0 0.0
    %2733 = vmatpush1.msra.mxu0 0.0
    %2734 = vmatprep.subr.mxu0 0.0
    %2735 = vmatpush1.msra.mxu0 0.0
    %2736 = vmatprep.subr.mxu0 0.0
    %2737 = vmatpush1.msra.mxu0 0.0
    %2738 = vmatprep.subr.mxu0 0.0
    %2739 = vmatpush1.msra.mxu0 0.0
    %2740 = vmatprep.subr.mxu0 0.0
    %2741 = vmatpush1.msra.mxu0 0.0
    %2742 = vmatprep.subr.mxu0 0.0
    %2743 = vmatpush1.msra.mxu0 0.0
    %2744 = vmatprep.subr.mxu0 0.0
    %2745 = vmatpush1.msra.mxu0 0.0
    %2746 = vmatprep.subr.mxu0 0.0
    %2747 = vmatpush1.msra.mxu0 0.0
    %2748 = vmatprep.subr.mxu0 0.0
    %2749 = vmatpush1.msra.mxu0 0.0
    %2750 = vmatprep.subr.mxu0 0.0
    %2751 = vmatpush1.msra.mxu0 0.0
    %2752 = vmatprep.subr.mxu0 0.0
    %2753 = vmatpush1.msra.mxu0 0.0
    %2754 = vmatprep.subr.mxu0 0.0
    %2755 = vmatpush1.msra.mxu0 0.0
    %2756 = vmatprep.subr.mxu0 0.0
    %2757 = vmatpush1.msra.mxu0 0.0
    %2758 = vmatprep.subr.mxu0 0.0
    %2759 = vmatpush1.msra.mxu0 0.0
    %2760 = vmatprep.subr.mxu0 0.0
    %2761 = vmatpush1.msra.mxu0 0.0
    %2762 = vmatprep.subr.mxu0 0.0
    %2763 = vmatpush1.msra.mxu0 0.0
    %2764 = vmatprep.subr.mxu0 0.0
    %2765 = vmatpush1.msra.mxu0 0.0
    %2766 = vmatprep.subr.mxu0 0.0
    %2767 = vmatpush1.msra.mxu0 0.0
    %2768 = vmatprep.subr.mxu0 0.0
    %2769 = vmatpush1.msra.mxu0 0.0
    %2770 = vmatprep.subr.mxu0 0.0
    %2771 = vmatpush1.msra.mxu0 0.0
    %2772 = vmatprep.subr.mxu0 0.0
    %2773 = vmatpush1.msra.mxu0 0.0
    %2774 = vmatprep.subr.mxu0 0.0
    %2775 = vmatpush1.msra.mxu0 0.0
    %2776 = vmatprep.subr.mxu0 0.0
    %2777 = vmatpush1.msra.mxu0 0.0
    %2778 = vmatprep.subr.mxu0 0.0
    %2779 = vmatpush1.msra.mxu0 0.0
    %2780 = vmatprep.mubr.f32.mxu0 0.0
    %2781 = vmatmul.mubr.f32.gmra.mrb[0].mxu0 %v2714
    %v2782 = vpop.f32.mrb[0].mxu0
    %v2783 = vadd.f32 0.0, %v2782
    %v2784 = vpop.f32.mrb[0].mxu0
    %2785 = vdwg.mxu0
    %v2787 = vsel %vm245, %v2707, 0
    %v2790 = vsel %vm245, %v2783, 0
    %2792 = vmatprep.subr.mxu0 0.0
    %2793 = vmatpush1.msra.mxu0 %v2121
    %2794 = vmatprep.subr.mxu0 0.0
    %2795 = vmatpush1.msra.mxu0 0.0
    %2796 = vmatprep.subr.mxu0 0.0
    %2797 = vmatpush1.msra.mxu0 0.0
    %2798 = vmatprep.subr.mxu0 0.0
    %2799 = vmatpush1.msra.mxu0 0.0
    %2800 = vmatprep.subr.mxu0 0.0
    %2801 = vmatpush1.msra.mxu0 0.0
    %2802 = vmatprep.subr.mxu0 0.0
    %2803 = vmatpush1.msra.mxu0 0.0
    %2804 = vmatprep.subr.mxu0 0.0
    %2805 = vmatpush1.msra.mxu0 0.0
    %2806 = vmatprep.subr.mxu0 0.0
    %2807 = vmatpush1.msra.mxu0 0.0
    %2808 = vmatprep.subr.mxu0 0.0
    %2809 = vmatpush1.msra.mxu0 0.0
    %2810 = vmatprep.subr.mxu0 0.0
    %2811 = vmatpush1.msra.mxu0 0.0
    %2812 = vmatprep.subr.mxu0 0.0
    %2813 = vmatpush1.msra.mxu0 0.0
    %2814 = vmatprep.subr.mxu0 0.0
    %2815 = vmatpush1.msra.mxu0 0.0
    %2816 = vmatprep.subr.mxu0 0.0
    %2817 = vmatpush1.msra.mxu0 0.0
    %2818 = vmatprep.subr.mxu0 0.0
    %2819 = vmatpush1.msra.mxu0 0.0
    %2820 = vmatprep.subr.mxu0 0.0
    %2821 = vmatpush1.msra.mxu0 0.0
    %2822 = vmatprep.subr.mxu0 0.0
    %2823 = vmatpush1.msra.mxu0 0.0
    %2824 = vmatprep.subr.mxu0 0.0
    %2825 = vmatpush1.msra.mxu0 0.0
    %2826 = vmatprep.subr.mxu0 0.0
    %2827 = vmatpush1.msra.mxu0 0.0
    %2828 = vmatprep.subr.mxu0 0.0
    %2829 = vmatpush1.msra.mxu0 0.0
    %2830 = vmatprep.subr.mxu0 0.0
    %2831 = vmatpush1.msra.mxu0 0.0
    %2832 = vmatprep.subr.mxu0 0.0
    %2833 = vmatpush1.msra.mxu0 0.0
    %2834 = vmatprep.subr.mxu0 0.0
    %2835 = vmatpush1.msra.mxu0 0.0
    %2836 = vmatprep.subr.mxu0 0.0
    %2837 = vmatpush1.msra.mxu0 0.0
    %2838 = vmatprep.subr.mxu0 0.0
    %2839 = vmatpush1.msra.mxu0 0.0
    %2840 = vmatprep.subr.mxu0 0.0
    %2841 = vmatpush1.msra.mxu0 0.0
    %2842 = vmatprep.subr.mxu0 0.0
    %2843 = vmatpush1.msra.mxu0 0.0
    %2844 = vmatprep.subr.mxu0 0.0
    %2845 = vmatpush1.msra.mxu0 0.0
    %2846 = vmatprep.subr.mxu0 0.0
    %2847 = vmatpush1.msra.mxu0 0.0
    %2848 = vmatprep.subr.mxu0 0.0
    %2849 = vmatpush1.msra.mxu0 0.0
    %2850 = vmatprep.subr.mxu0 0.0
    %2851 = vmatpush1.msra.mxu0 0.0
    %2852 = vmatprep.subr.mxu0 0.0
    %2853 = vmatpush1.msra.mxu0 0.0
    %2854 = vmatprep.subr.mxu0 0.0
    %2855 = vmatpush1.msra.mxu0 0.0
    %2856 = vmatprep.mubr.f32.mxu0 0.0
    %2857 = vmatmul.mubr.f32.gmra.mrb[0].mxu0 %v2787
    %v2858 = vpop.f32.mrb[0].mxu0
    %v2859 = vadd.f32 0.0, %v2858
    %v2860 = vpop.f32.mrb[0].mxu0
    %2861 = vmatprep.mubr.f32.mxu0 0.0
    %2862 = vmatmul.mubr.f32.gmra.mrb[0].mxu0 %v2790
    %v2863 = vpop.f32.mrb[0].mxu0
    %v2864 = vadd.f32 0.0, %v2863
    %v2865 = vpop.f32.mrb[0].mxu0
    %2866 = vdwg.mxu0
    %v2868 = vsel %vm245, %v2375, 0
    %v2871 = vsel %vm245, %v2451, 0
    %2873 = vmatprep.subr.mxu0 0.0
    %2874 = vmatpush1.msra.mxu0 %v2120
    %2875 = vmatprep.subr.mxu0 0.0
    %2876 = vmatpush1.msra.mxu0 0.0
    %2877 = vmatprep.subr.mxu0 0.0
    %2878 = vmatpush1.msra.mxu0 0.0
    %2879 = vmatprep.subr.mxu0 0.0
    %2880 = vmatpush1.msra.mxu0 0.0
    %2881 = vmatprep.subr.mxu0 0.0
    %2882 = vmatpush1.msra.mxu0 0.0
    %2883 = vmatprep.subr.mxu0 0.0
    %2884 = vmatpush1.msra.mxu0 0.0
    %2885 = vmatprep.subr.mxu0 0.0
    %2886 = vmatpush1.msra.mxu0 0.0
    %2887 = vmatprep.subr.mxu0 0.0
    %2888 = vmatpush1.msra.mxu0 0.0
    %2889 = vmatprep.subr.mxu0 0.0
    %2890 = vmatpush1.msra.mxu0 0.0
    %2891 = vmatprep.subr.mxu0 0.0
    %2892 = vmatpush1.msra.mxu0 0.0
    %2893 = vmatprep.subr.mxu0 0.0
    %2894 = vmatpush1.msra.mxu0 0.0
    %2895 = vmatprep.subr.mxu0 0.0
    %2896 = vmatpush1.msra.mxu0 0.0
    %2897 = vmatprep.subr.mxu0 0.0
    %2898 = vmatpush1.msra.mxu0 0.0
    %2899 = vmatprep.subr.mxu0 0.0
    %2900 = vmatpush1.msra.mxu0 0.0
    %2901 = vmatprep.subr.mxu0 0.0
    %2902 = vmatpush1.msra.mxu0 0.0
    %2903 = vmatprep.subr.mxu0 0.0
    %2904 = vmatpush1.msra.mxu0 0.0
    %2905 = vmatprep.subr.mxu0 0.0
    %2906 = vmatpush1.msra.mxu0 0.0
    %2907 = vmatprep.subr.mxu0 0.0
    %2908 = vmatpush1.msra.mxu0 0.0
    %2909 = vmatprep.subr.mxu0 0.0
    %2910 = vmatpush1.msra.mxu0 0.0
    %2911 = vmatprep.subr.mxu0 0.0
    %2912 = vmatpush1.msra.mxu0 0.0
    %2913 = vmatprep.subr.mxu0 0.0
    %2914 = vmatpush1.msra.mxu0 0.0
    %2915 = vmatprep.subr.mxu0 0.0
    %2916 = vmatpush1.msra.mxu0 0.0
    %2917 = vmatprep.subr.mxu0 0.0
    %2918 = vmatpush1.msra.mxu0 0.0
    %2919 = vmatprep.subr.mxu0 0.0
    %2920 = vmatpush1.msra.mxu0 0.0
    %2921 = vmatprep.subr.mxu0 0.0
    %2922 = vmatpush1.msra.mxu0 0.0
    %2923 = vmatprep.subr.mxu0 0.0
    %2924 = vmatpush1.msra.mxu0 0.0
    %2925 = vmatprep.subr.mxu0 0.0
    %2926 = vmatpush1.msra.mxu0 0.0
    %2927 = vmatprep.subr.mxu0 0.0
    %2928 = vmatpush1.msra.mxu0 0.0
    %2929 = vmatprep.subr.mxu0 0.0
    %2930 = vmatpush1.msra.mxu0 0.0
    %2931 = vmatprep.subr.mxu0 0.0
    %2932 = vmatpush1.msra.mxu0 0.0
    %2933 = vmatprep.subr.mxu0 0.0
    %2934 = vmatpush1.msra.mxu0 0.0
    %2935 = vmatprep.subr.mxu0 0.0
    %2936 = vmatpush1.msra.mxu0 0.0
    %2937 = vmatprep.mubr.f32.mxu0 0.0
    %2938 = vmatmul.mubr.f32.gmra.mrb[0].mxu0 %v2868
    %v2939 = vpop.f32.mrb[0].mxu0
    %v2940 = vadd.f32 %v2859, %v2939
    %v2941 = vpop.f32.mrb[0].mxu0
    %2942 = vmatprep.mubr.f32.mxu0 0.0
    %2943 = vmatmul.mubr.f32.gmra.mrb[0].mxu0 %v2871
    %v2944 = vpop.f32.mrb[0].mxu0
    %v2945 = vadd.f32 %v2864, %v2944
    %v2946 = vpop.f32.mrb[0].mxu0
    %2947 = vdwg.mxu0
    %2948 = vrot.lane.b32.xlu0 %v2027, 112
    %v2949 = vpop.permute.xlu0 %2948
    %2950 = vrot.lane.b32.xlu0 %v2112, 112
    %v2951 = vpop.permute.xlu0 %2950
    %v2952 = vsel %vm245, %v2949, 0
    %v2954 = vsel %vm245, %v2951, 0
    %2956 = vmatprep.subr.mxu0 0.0
    %2957 = vmatpush1.xpose.msra.mxu0 %v2954
    %2958 = vmatprep.subr.mxu0 0.0
    %2959 = vmatpush1.xpose.msra.mxu0 0.0
    %2960 = vmatprep.subr.mxu0 0.0
    %2961 = vmatpush1.xpose.msra.mxu0 0.0
    %2962 = vmatprep.subr.mxu0 0.0
    %2963 = vmatpush1.xpose.msra.mxu0 0.0
    %2964 = vmatprep.subr.mxu0 0.0
    %2965 = vmatpush1.xpose.msra.mxu0 0.0
    %2966 = vmatprep.subr.mxu0 0.0
    %2967 = vmatpush1.xpose.msra.mxu0 0.0
    %2968 = vmatprep.subr.mxu0 0.0
    %2969 = vmatpush1.xpose.msra.mxu0 0.0
    %2970 = vmatprep.subr.mxu0 0.0
    %2971 = vmatpush1.xpose.msra.mxu0 0.0
    %2972 = vmatprep.subr.mxu0 0.0
    %2973 = vmatpush1.xpose.msra.mxu0 0.0
    %2974 = vmatprep.subr.mxu0 0.0
    %2975 = vmatpush1.xpose.msra.mxu0 0.0
    %2976 = vmatprep.subr.mxu0 0.0
    %2977 = vmatpush1.xpose.msra.mxu0 0.0
    %2978 = vmatprep.subr.mxu0 0.0
    %2979 = vmatpush1.xpose.msra.mxu0 0.0
    %2980 = vmatprep.subr.mxu0 0.0
    %2981 = vmatpush1.xpose.msra.mxu0 0.0
    %2982 = vmatprep.subr.mxu0 0.0
    %2983 = vmatpush1.xpose.msra.mxu0 0.0
    %2984 = vmatprep.subr.mxu0 0.0
    %2985 = vmatpush1.xpose.msra.mxu0 0.0
    %2986 = vmatprep.subr.mxu0 0.0
    %2987 = vmatpush1.xpose.msra.mxu0 0.0
    %2988 = vmatprep.subr.mxu0 0.0
    %2989 = vmatpush1.xpose.msra.mxu0 0.0
    %2990 = vmatprep.subr.mxu0 0.0
    %2991 = vmatpush1.xpose.msra.mxu0 0.0
    %2992 = vmatprep.subr.mxu0 0.0
    %2993 = vmatpush1.xpose.msra.mxu0 0.0
    %2994 = vmatprep.subr.mxu0 0.0
    %2995 = vmatpush1.xpose.msra.mxu0 0.0
    %2996 = vmatprep.subr.mxu0 0.0
    %2997 = vmatpush1.xpose.msra.mxu0 0.0
    %2998 = vmatprep.subr.mxu0 0.0
    %2999 = vmatpush1.xpose.msra.mxu0 0.0
    %3000 = vmatprep.subr.mxu0 0.0
    %3001 = vmatpush1.xpose.msra.mxu0 0.0
    %3002 = vmatprep.subr.mxu0 0.0
    %3003 = vmatpush1.xpose.msra.mxu0 0.0
    %3004 = vmatprep.subr.mxu0 0.0
    %3005 = vmatpush1.xpose.msra.mxu0 0.0
    %3006 = vmatprep.subr.mxu0 0.0
    %3007 = vmatpush1.xpose.msra.mxu0 0.0
    %3008 = vmatprep.subr.mxu0 0.0
    %3009 = vmatpush1.xpose.msra.mxu0 0.0
    %3010 = vmatprep.subr.mxu0 0.0
    %3011 = vmatpush1.xpose.msra.mxu0 0.0
    %3012 = vmatprep.subr.mxu0 0.0
    %3013 = vmatpush1.xpose.msra.mxu0 0.0
    %3014 = vmatprep.subr.mxu0 0.0
    %3015 = vmatpush1.xpose.msra.mxu0 0.0
    %3016 = vmatprep.subr.mxu0 0.0
    %3017 = vmatpush1.xpose.msra.mxu0 0.0
    %3018 = vmatprep.subr.mxu0 0.0
    %3019 = vmatpush1.xpose.msra.mxu0 0.0
    %3020 = vmatprep.mubr.f32.mxu0 0.0
    %3021 = vmatmul.mubr.f32.gmra.mrb[0].mxu0 %v2952
    %v3022 = vpop.f32.mrb[0].mxu0
    %v3023 = vadd.f32 0.0, %v3022
    %v3024 = vpop.f32.mrb[0].mxu0
    %3025 = vdwg.mxu0
    %3026 = vrot.lane.b32.xlu0 %v2032, 112
    %v3027 = vpop.permute.xlu0 %3026
    %3028 = vrot.lane.b32.xlu0 %v2117, 112
    %v3029 = vpop.permute.xlu0 %3028
    %v3030 = vsel %vm245, %v3027, 0
    %v3032 = vsel %vm245, %v3029, 0
    %3034 = vmatprep.subr.mxu0 0.0
    %3035 = vmatpush1.xpose.msra.mxu0 %v3032
    %3036 = vmatprep.subr.mxu0 0.0
    %3037 = vmatpush1.xpose.msra.mxu0 0.0
    %3038 = vmatprep.subr.mxu0 0.0
    %3039 = vmatpush1.xpose.msra.mxu0 0.0
    %3040 = vmatprep.subr.mxu0 0.0
    %3041 = vmatpush1.xpose.msra.mxu0 0.0
    %3042 = vmatprep.subr.mxu0 0.0
    %3043 = vmatpush1.xpose.msra.mxu0 0.0
    %3044 = vmatprep.subr.mxu0 0.0
    %3045 = vmatpush1.xpose.msra.mxu0 0.0
    %3046 = vmatprep.subr.mxu0 0.0
    %3047 = vmatpush1.xpose.msra.mxu0 0.0
    %3048 = vmatprep.subr.mxu0 0.0
    %3049 = vmatpush1.xpose.msra.mxu0 0.0
    %3050 = vmatprep.subr.mxu0 0.0
    %3051 = vmatpush1.xpose.msra.mxu0 0.0
    %3052 = vmatprep.subr.mxu0 0.0
    %3053 = vmatpush1.xpose.msra.mxu0 0.0
    %3054 = vmatprep.subr.mxu0 0.0
    %3055 = vmatpush1.xpose.msra.mxu0 0.0
    %3056 = vmatprep.subr.mxu0 0.0
    %3057 = vmatpush1.xpose.msra.mxu0 0.0
    %3058 = vmatprep.subr.mxu0 0.0
    %3059 = vmatpush1.xpose.msra.mxu0 0.0
    %3060 = vmatprep.subr.mxu0 0.0
    %3061 = vmatpush1.xpose.msra.mxu0 0.0
    %3062 = vmatprep.subr.mxu0 0.0
    %3063 = vmatpush1.xpose.msra.mxu0 0.0
    %3064 = vmatprep.subr.mxu0 0.0
    %3065 = vmatpush1.xpose.msra.mxu0 0.0
    %3066 = vmatprep.subr.mxu0 0.0
    %3067 = vmatpush1.xpose.msra.mxu0 0.0
    %3068 = vmatprep.subr.mxu0 0.0
    %3069 = vmatpush1.xpose.msra.mxu0 0.0
    %3070 = vmatprep.subr.mxu0 0.0
    %3071 = vmatpush1.xpose.msra.mxu0 0.0
    %3072 = vmatprep.subr.mxu0 0.0
    %3073 = vmatpush1.xpose.msra.mxu0 0.0
    %3074 = vmatprep.subr.mxu0 0.0
    %3075 = vmatpush1.xpose.msra.mxu0 0.0
    %3076 = vmatprep.subr.mxu0 0.0
    %3077 = vmatpush1.xpose.msra.mxu0 0.0
    %3078 = vmatprep.subr.mxu0 0.0
    %3079 = vmatpush1.xpose.msra.mxu0 0.0
    %3080 = vmatprep.subr.mxu0 0.0
    %3081 = vmatpush1.xpose.msra.mxu0 0.0
    %3082 = vmatprep.subr.mxu0 0.0
    %3083 = vmatpush1.xpose.msra.mxu0 0.0
    %3084 = vmatprep.subr.mxu0 0.0
    %3085 = vmatpush1.xpose.msra.mxu0 0.0
    %3086 = vmatprep.subr.mxu0 0.0
    %3087 = vmatpush1.xpose.msra.mxu0 0.0
    %3088 = vmatprep.subr.mxu0 0.0
    %3089 = vmatpush1.xpose.msra.mxu0 0.0
    %3090 = vmatprep.subr.mxu0 0.0
    %3091 = vmatpush1.xpose.msra.mxu0 0.0
    %3092 = vmatprep.subr.mxu0 0.0
    %3093 = vmatpush1.xpose.msra.mxu0 0.0
    %3094 = vmatprep.subr.mxu0 0.0
    %3095 = vmatpush1.xpose.msra.mxu0 0.0
    %3096 = vmatprep.subr.mxu0 0.0
    %3097 = vmatpush1.xpose.msra.mxu0 0.0
    %3098 = vmatprep.mubr.f32.mxu0 0.0
    %3099 = vmatmul.mubr.f32.gmra.mrb[0].mxu0 %v3030
    %v3100 = vpop.f32.mrb[0].mxu0
    %v3101 = vadd.f32 0.0, %v3100
    %v3102 = vpop.f32.mrb[0].mxu0
    %3103 = vdwg.mxu0
    %v3104 = vmul.f32 %v3023, 0.35355338
    %v3105 = vmul.f32 %v3101, 0.35355338
    %v3106 = vsel %vm245, %v3104, -inf
    %3107 = vmax.xlane.f32.xlu0 %v3106
    %v3108 = vpop.xlane.xlu0 %3107
    %v3109 = vsel %vm245, %v3105, -inf
    %3110 = vmax.xlane.f32.xlu0 %v3109
    %v3111 = vpop.xlane.xlu0 %3110
    %v3112 = vsub.f32 %v3104, %v3108
    %v3113 = vsub.f32 %v3105, %v3111
    %v3114 = vmul.f32 %v3112, 1.442695
    %v3115 = vpow.pop %v3114
    %v3116 = vmul.f32 %v3113, 1.442695
    %v3117 = vpow.pop %v3116
    %v3118 = vsel %vm245, %v3115, 0.0
    %3119 = vadd.xlane.f32.xlu0 %v3118
    %v3120 = vpop.xlane.xlu0 %3119
    %v3121 = vsel %vm245, %v3117, 0.0
    %3122 = vadd.xlane.f32.xlu0 %v3121
    %v3123 = vpop.xlane.xlu0 %3122
    %v3124 = vrcp.pop %v3120
    %v3125 = vrcp.pop %v3123
    %v3126 = vmul.f32 %v3115, %v3124
    %v3127 = vmul.f32 %v3117, %v3125
    %3128 = vrot.lane.b32.xlu0 %v2112, 80
    %v3129 = vpop.permute.xlu0 %3128
    %v3132 = vsel %vm245, %v3126, 0
    %3134 = vmatprep.subr.mxu0 0.0
    %3135 = vmatpush1.msra.mxu0 %v3129
    %3136 = vmatprep.subr.mxu0 0.0
    %3137 = vmatpush1.msra.mxu0 0.0
    %3138 = vmatprep.subr.mxu0 0.0
    %3139 = vmatpush1.msra.mxu0 0.0
    %3140 = vmatprep.subr.mxu0 0.0
    %3141 = vmatpush1.msra.mxu0 0.0
    %3142 = vmatprep.subr.mxu0 0.0
    %3143 = vmatpush1.msra.mxu0 0.0
    %3144 = vmatprep.subr.mxu0 0.0
    %3145 = vmatpush1.msra.mxu0 0.0
    %3146 = vmatprep.subr.mxu0 0.0
    %3147 = vmatpush1.msra.mxu0 0.0
    %3148 = vmatprep.subr.mxu0 0.0
    %3149 = vmatpush1.msra.mxu0 0.0
    %3150 = vmatprep.subr.mxu0 0.0
    %3151 = vmatpush1.msra.mxu0 0.0
    %3152 = vmatprep.subr.mxu0 0.0
    %3153 = vmatpush1.msra.mxu0 0.0
    %3154 = vmatprep.subr.mxu0 0.0
    %3155 = vmatpush1.msra.mxu0 0.0
    %3156 = vmatprep.subr.mxu0 0.0
    %3157 = vmatpush1.msra.mxu0 0.0
    %3158 = vmatprep.subr.mxu0 0.0
    %3159 = vmatpush1.msra.mxu0 0.0
    %3160 = vmatprep.subr.mxu0 0.0
    %3161 = vmatpush1.msra.mxu0 0.0
    %3162 = vmatprep.subr.mxu0 0.0
    %3163 = vmatpush1.msra.mxu0 0.0
    %3164 = vmatprep.subr.mxu0 0.0
    %3165 = vmatpush1.msra.mxu0 0.0
    %3166 = vmatprep.subr.mxu0 0.0
    %3167 = vmatpush1.msra.mxu0 0.0
    %3168 = vmatprep.subr.mxu0 0.0
    %3169 = vmatpush1.msra.mxu0 0.0
    %3170 = vmatprep.subr.mxu0 0.0
    %3171 = vmatpush1.msra.mxu0 0.0
    %3172 = vmatprep.subr.mxu0 0.0
    %3173 = vmatpush1.msra.mxu0 0.0
    %3174 = vmatprep.subr.mxu0 0.0
    %3175 = vmatpush1.msra.mxu0 0.0
    %3176 = vmatprep.subr.mxu0 0.0
    %3177 = vmatpush1.msra.mxu0 0.0
    %3178 = vmatprep.subr.mxu0 0.0
    %3179 = vmatpush1.msra.mxu0 0.0
    %3180 = vmatprep.subr.mxu0 0.0
    %3181 = vmatpush1.msra.mxu0 0.0
    %3182 = vmatprep.subr.mxu0 0.0
    %3183 = vmatpush1.msra.mxu0 0.0
    %3184 = vmatprep.subr.mxu0 0.0
    %3185 = vmatpush1.msra.mxu0 0.0
    %3186 = vmatprep.subr.mxu0 0.0
    %3187 = vmatpush1.msra.mxu0 0.0
    %3188 = vmatprep.subr.mxu0 0.0
    %3189 = vmatpush1.msra.mxu0 0.0
    %3190 = vmatprep.subr.mxu0 0.0
    %3191 = vmatpush1.msra.mxu0 0.0
    %3192 = vmatprep.subr.mxu0 0.0
    %3193 = vmatpush1.msra.mxu0 0.0
    %3194 = vmatprep.subr.mxu0 0.0
    %3195 = vmatpush1.msra.mxu0 0.0
    %3196 = vmatprep.subr.mxu0 0.0
    %3197 = vmatpush1.msra.mxu0 0.0
    %3198 = vmatprep.mubr.f32.mxu0 0.0
    %3199 = vmatmul.mubr.f32.gmra.mrb[0].mxu0 %v3132
    %v3200 = vpop.f32.mrb[0].mxu0
    %v3201 = vadd.f32 0.0, %v3200
    %v3202 = vpop.f32.mrb[0].mxu0
    %3203 = vdwg.mxu0
    %3204 = vrot.lane.b32.xlu0 %v2117, 80
    %v3205 = vpop.permute.xlu0 %3204
    %v3208 = vsel %vm245, %v3127, 0
    %3210 = vmatprep.subr.mxu0 0.0
    %3211 = vmatpush1.msra.mxu0 %v3205
    %3212 = vmatprep.subr.mxu0 0.0
    %3213 = vmatpush1.msra.mxu0 0.0
    %3214 = vmatprep.subr.mxu0 0.0
    %3215 = vmatpush1.msra.mxu0 0.0
    %3216 = vmatprep.subr.mxu0 0.0
    %3217 = vmatpush1.msra.mxu0 0.0
    %3218 = vmatprep.subr.mxu0 0.0
    %3219 = vmatpush1.msra.mxu0 0.0
    %3220 = vmatprep.subr.mxu0 0.0
    %3221 = vmatpush1.msra.mxu0 0.0
    %3222 = vmatprep.subr.mxu0 0.0
    %3223 = vmatpush1.msra.mxu0 0.0
    %3224 = vmatprep.subr.mxu0 0.0
    %3225 = vmatpush1.msra.mxu0 0.0
    %3226 = vmatprep.subr.mxu0 0.0
    %3227 = vmatpush1.msra.mxu0 0.0
    %3228 = vmatprep.subr.mxu0 0.0
    %3229 = vmatpush1.msra.mxu0 0.0
    %3230 = vmatprep.subr.mxu0 0.0
    %3231 = vmatpush1.msra.mxu0 0.0
    %3232 = vmatprep.subr.mxu0 0.0
    %3233 = vmatpush1.msra.mxu0 0.0
    %3234 = vmatprep.subr.mxu0 0.0
    %3235 = vmatpush1.msra.mxu0 0.0
    %3236 = vmatprep.subr.mxu0 0.0
    %3237 = vmatpush1.msra.mxu0 0.0
    %3238 = vmatprep.subr.mxu0 0.0
    %3239 = vmatpush1.msra.mxu0 0.0
    %3240 = vmatprep.subr.mxu0 0.0
    %3241 = vmatpush1.msra.mxu0 0.0
    %3242 = vmatprep.subr.mxu0 0.0
    %3243 = vmatpush1.msra.mxu0 0.0
    %3244 = vmatprep.subr.mxu0 0.0
    %3245 = vmatpush1.msra.mxu0 0.0
    %3246 = vmatprep.subr.mxu0 0.0
    %3247 = vmatpush1.msra.mxu0 0.0
    %3248 = vmatprep.subr.mxu0 0.0
    %3249 = vmatpush1.msra.mxu0 0.0
    %3250 = vmatprep.subr.mxu0 0.0
    %3251 = vmatpush1.msra.mxu0 0.0
    %3252 = vmatprep.subr.mxu0 0.0
    %3253 = vmatpush1.msra.mxu0 0.0
    %3254 = vmatprep.subr.mxu0 0.0
    %3255 = vmatpush1.msra.mxu0 0.0
    %3256 = vmatprep.subr.mxu0 0.0
    %3257 = vmatpush1.msra.mxu0 0.0
    %3258 = vmatprep.subr.mxu0 0.0
    %3259 = vmatpush1.msra.mxu0 0.0
    %3260 = vmatprep.subr.mxu0 0.0
    %3261 = vmatpush1.msra.mxu0 0.0
    %3262 = vmatprep.subr.mxu0 0.0
    %3263 = vmatpush1.msra.mxu0 0.0
    %3264 = vmatprep.subr.mxu0 0.0
    %3265 = vmatpush1.msra.mxu0 0.0
    %3266 = vmatprep.subr.mxu0 0.0
    %3267 = vmatpush1.msra.mxu0 0.0
    %3268 = vmatprep.subr.mxu0 0.0
    %3269 = vmatpush1.msra.mxu0 0.0
    %3270 = vmatprep.subr.mxu0 0.0
    %3271 = vmatpush1.msra.mxu0 0.0
    %3272 = vmatprep.subr.mxu0 0.0
    %3273 = vmatpush1.msra.mxu0 0.0
    %3274 = vmatprep.mubr.f32.mxu0 0.0
    %3275 = vmatmul.mubr.f32.gmra.mrb[0].mxu0 %v3208
    %v3276 = vpop.f32.mrb[0].mxu0
    %v3277 = vadd.f32 0.0, %v3276
    %v3278 = vpop.f32.mrb[0].mxu0
    %3279 = vdwg.mxu0
    %v3281 = vsel %vm245, %v3201, 0
    %v3284 = vsel %vm245, %v3277, 0
    %3286 = vmatprep.subr.mxu0 0.0
    %3287 = vmatpush1.msra.mxu0 %v2122
    %3288 = vmatprep.subr.mxu0 0.0
    %3289 = vmatpush1.msra.mxu0 0.0
    %3290 = vmatprep.subr.mxu0 0.0
    %3291 = vmatpush1.msra.mxu0 0.0
    %3292 = vmatprep.subr.mxu0 0.0
    %3293 = vmatpush1.msra.mxu0 0.0
    %3294 = vmatprep.subr.mxu0 0.0
    %3295 = vmatpush1.msra.mxu0 0.0
    %3296 = vmatprep.subr.mxu0 0.0
    %3297 = vmatpush1.msra.mxu0 0.0
    %3298 = vmatprep.subr.mxu0 0.0
    %3299 = vmatpush1.msra.mxu0 0.0
    %3300 = vmatprep.subr.mxu0 0.0
    %3301 = vmatpush1.msra.mxu0 0.0
    %3302 = vmatprep.subr.mxu0 0.0
    %3303 = vmatpush1.msra.mxu0 0.0
    %3304 = vmatprep.subr.mxu0 0.0
    %3305 = vmatpush1.msra.mxu0 0.0
    %3306 = vmatprep.subr.mxu0 0.0
    %3307 = vmatpush1.msra.mxu0 0.0
    %3308 = vmatprep.subr.mxu0 0.0
    %3309 = vmatpush1.msra.mxu0 0.0
    %3310 = vmatprep.subr.mxu0 0.0
    %3311 = vmatpush1.msra.mxu0 0.0
    %3312 = vmatprep.subr.mxu0 0.0
    %3313 = vmatpush1.msra.mxu0 0.0
    %3314 = vmatprep.subr.mxu0 0.0
    %3315 = vmatpush1.msra.mxu0 0.0
    %3316 = vmatprep.subr.mxu0 0.0
    %3317 = vmatpush1.msra.mxu0 0.0
    %3318 = vmatprep.subr.mxu0 0.0
    %3319 = vmatpush1.msra.mxu0 0.0
    %3320 = vmatprep.subr.mxu0 0.0
    %3321 = vmatpush1.msra.mxu0 0.0
    %3322 = vmatprep.subr.mxu0 0.0
    %3323 = vmatpush1.msra.mxu0 0.0
    %3324 = vmatprep.subr.mxu0 0.0
    %3325 = vmatpush1.msra.mxu0 0.0
    %3326 = vmatprep.subr.mxu0 0.0
    %3327 = vmatpush1.msra.mxu0 0.0
    %3328 = vmatprep.subr.mxu0 0.0
    %3329 = vmatpush1.msra.mxu0 0.0
    %3330 = vmatprep.subr.mxu0 0.0
    %3331 = vmatpush1.msra.mxu0 0.0
    %3332 = vmatprep.subr.mxu0 0.0
    %3333 = vmatpush1.msra.mxu0 0.0
    %3334 = vmatprep.subr.mxu0 0.0
    %3335 = vmatpush1.msra.mxu0 0.0
    %3336 = vmatprep.subr.mxu0 0.0
    %3337 = vmatpush1.msra.mxu0 0.0
    %3338 = vmatprep.subr.mxu0 0.0
    %3339 = vmatpush1.msra.mxu0 0.0
    %3340 = vmatprep.subr.mxu0 0.0
    %3341 = vmatpush1.msra.mxu0 0.0
    %3342 = vmatprep.subr.mxu0 0.0
    %3343 = vmatpush1.msra.mxu0 0.0
    %3344 = vmatprep.subr.mxu0 0.0
    %3345 = vmatpush1.msra.mxu0 0.0
    %3346 = vmatprep.subr.mxu0 0.0
    %3347 = vmatpush1.msra.mxu0 0.0
    %3348 = vmatprep.subr.mxu0 0.0
    %3349 = vmatpush1.msra.mxu0 0.0
    %3350 = vmatprep.mubr.f32.mxu0 0.0
    %3351 = vmatmul.mubr.f32.gmra.mrb[0].mxu0 %v3281
    %v3352 = vpop.f32.mrb[0].mxu0
    %v3353 = vadd.f32 0.0, %v3352
    %v3354 = vpop.f32.mrb[0].mxu0
    %3355 = vmatprep.mubr.f32.mxu0 0.0
    %3356 = vmatmul.mubr.f32.gmra.mrb[0].mxu0 %v3284
    %v3357 = vpop.f32.mrb[0].mxu0
    %v3358 = vadd.f32 0.0, %v3357
    %v3359 = vpop.f32.mrb[0].mxu0
    %3360 = vdwg.mxu0
    %v3361 = vadd.f32 %v2940, %v3353
    %v3362 = vadd.f32 %v2945, %v3358
    %3363 = vrot.lane.b32.xlu0 %v2027, 104
    %v3364 = vpop.permute.xlu0 %3363
    %3365 = vrot.lane.b32.xlu0 %v2112, 104
    %v3366 = vpop.permute.xlu0 %3365
    %v3367 = vsel %vm245, %v3364, 0
    %v3369 = vsel %vm245, %v3366, 0
    %3371 = vmatprep.subr.mxu0 0.0
    %3372 = vmatpush1.xpose.msra.mxu0 %v3369
    %3373 = vmatprep.subr.mxu0 0.0
    %3374 = vmatpush1.xpose.msra.mxu0 0.0
    %3375 = vmatprep.subr.mxu0 0.0
    %3376 = vmatpush1.xpose.msra.mxu0 0.0
    %3377 = vmatprep.subr.mxu0 0.0
    %3378 = vmatpush1.xpose.msra.mxu0 0.0
    %3379 = vmatprep.subr.mxu0 0.0
    %3380 = vmatpush1.xpose.msra.mxu0 0.0
    %3381 = vmatprep.subr.mxu0 0.0
    %3382 = vmatpush1.xpose.msra.mxu0 0.0
    %3383 = vmatprep.subr.mxu0 0.0
    %3384 = vmatpush1.xpose.msra.mxu0 0.0
    %3385 = vmatprep.subr.mxu0 0.0
    %3386 = vmatpush1.xpose.msra.mxu0 0.0
    %3387 = vmatprep.subr.mxu0 0.0
    %3388 = vmatpush1.xpose.msra.mxu0 0.0
    %3389 = vmatprep.subr.mxu0 0.0
    %3390 = vmatpush1.xpose.msra.mxu0 0.0
    %3391 = vmatprep.subr.mxu0 0.0
    %3392 = vmatpush1.xpose.msra.mxu0 0.0
    %3393 = vmatprep.subr.mxu0 0.0
    %3394 = vmatpush1.xpose.msra.mxu0 0.0
    %3395 = vmatprep.subr.mxu0 0.0
    %3396 = vmatpush1.xpose.msra.mxu0 0.0
    %3397 = vmatprep.subr.mxu0 0.0
    %3398 = vmatpush1.xpose.msra.mxu0 0.0
    %3399 = vmatprep.subr.mxu0 0.0
    %3400 = vmatpush1.xpose.msra.mxu0 0.0
    %3401 = vmatprep.subr.mxu0 0.0
    %3402 = vmatpush1.xpose.msra.mxu0 0.0
    %3403 = vmatprep.subr.mxu0 0.0
    %3404 = vmatpush1.xpose.msra.mxu0 0.0
    %3405 = vmatprep.subr.mxu0 0.0
    %3406 = vmatpush1.xpose.msra.mxu0 0.0
    %3407 = vmatprep.subr.mxu0 0.0
    %3408 = vmatpush1.xpose.msra.mxu0 0.0
    %3409 = vmatprep.subr.mxu0 0.0
    %3410 = vmatpush1.xpose.msra.mxu0 0.0
    %3411 = vmatprep.subr.mxu0 0.0
    %3412 = vmatpush1.xpose.msra.mxu0 0.0
    %3413 = vmatprep.subr.mxu0 0.0
    %3414 = vmatpush1.xpose.msra.mxu0 0.0
    %3415 = vmatprep.subr.mxu0 0.0
    %3416 = vmatpush1.xpose.msra.mxu0 0.0
    %3417 = vmatprep.subr.mxu0 0.0
    %3418 = vmatpush1.xpose.msra.mxu0 0.0
    %3419 = vmatprep.subr.mxu0 0.0
    %3420 = vmatpush1.xpose.msra.mxu0 0.0
    %3421 = vmatprep.subr.mxu0 0.0
    %3422 = vmatpush1.xpose.msra.mxu0 0.0
    %3423 = vmatprep.subr.mxu0 0.0
    %3424 = vmatpush1.xpose.msra.mxu0 0.0
    %3425 = vmatprep.subr.mxu0 0.0
    %3426 = vmatpush1.xpose.msra.mxu0 0.0
    %3427 = vmatprep.subr.mxu0 0.0
    %3428 = vmatpush1.xpose.msra.mxu0 0.0
    %3429 = vmatprep.subr.mxu0 0.0
    %3430 = vmatpush1.xpose.msra.mxu0 0.0
    %3431 = vmatprep.subr.mxu0 0.0
    %3432 = vmatpush1.xpose.msra.mxu0 0.0
    %3433 = vmatprep.subr.mxu0 0.0
    %3434 = vmatpush1.xpose.msra.mxu0 0.0
    %3435 = vmatprep.mubr.f32.mxu0 0.0
    %3436 = vmatmul.mubr.f32.gmra.mrb[0].mxu0 %v3367
    %v3437 = vpop.f32.mrb[0].mxu0
    %v3438 = vadd.f32 0.0, %v3437
    %v3439 = vpop.f32.mrb[0].mxu0
    %3440 = vdwg.mxu0
    %3441 = vrot.lane.b32.xlu0 %v2032, 104
    %v3442 = vpop.permute.xlu0 %3441
    %3443 = vrot.lane.b32.xlu0 %v2117, 104
    %v3444 = vpop.permute.xlu0 %3443
    %v3445 = vsel %vm245, %v3442, 0
    %v3447 = vsel %vm245, %v3444, 0
    %3449 = vmatprep.subr.mxu0 0.0
    %3450 = vmatpush1.xpose.msra.mxu0 %v3447
    %3451 = vmatprep.subr.mxu0 0.0
    %3452 = vmatpush1.xpose.msra.mxu0 0.0
    %3453 = vmatprep.subr.mxu0 0.0
    %3454 = vmatpush1.xpose.msra.mxu0 0.0
    %3455 = vmatprep.subr.mxu0 0.0
    %3456 = vmatpush1.xpose.msra.mxu0 0.0
    %3457 = vmatprep.subr.mxu0 0.0
    %3458 = vmatpush1.xpose.msra.mxu0 0.0
    %3459 = vmatprep.subr.mxu0 0.0
    %3460 = vmatpush1.xpose.msra.mxu0 0.0
    %3461 = vmatprep.subr.mxu0 0.0
    %3462 = vmatpush1.xpose.msra.mxu0 0.0
    %3463 = vmatprep.subr.mxu0 0.0
    %3464 = vmatpush1.xpose.msra.mxu0 0.0
    %3465 = vmatprep.subr.mxu0 0.0
    %3466 = vmatpush1.xpose.msra.mxu0 0.0
    %3467 = vmatprep.subr.mxu0 0.0
    %3468 = vmatpush1.xpose.msra.mxu0 0.0
    %3469 = vmatprep.subr.mxu0 0.0
    %3470 = vmatpush1.xpose.msra.mxu0 0.0
    %3471 = vmatprep.subr.mxu0 0.0
    %3472 = vmatpush1.xpose.msra.mxu0 0.0
    %3473 = vmatprep.subr.mxu0 0.0
    %3474 = vmatpush1.xpose.msra.mxu0 0.0
    %3475 = vmatprep.subr.mxu0 0.0
    %3476 = vmatpush1.xpose.msra.mxu0 0.0
    %3477 = vmatprep.subr.mxu0 0.0
    %3478 = vmatpush1.xpose.msra.mxu0 0.0
    %3479 = vmatprep.subr.mxu0 0.0
    %3480 = vmatpush1.xpose.msra.mxu0 0.0
    %3481 = vmatprep.subr.mxu0 0.0
    %3482 = vmatpush1.xpose.msra.mxu0 0.0
    %3483 = vmatprep.subr.mxu0 0.0
    %3484 = vmatpush1.xpose.msra.mxu0 0.0
    %3485 = vmatprep.subr.mxu0 0.0
    %3486 = vmatpush1.xpose.msra.mxu0 0.0
    %3487 = vmatprep.subr.mxu0 0.0
    %3488 = vmatpush1.xpose.msra.mxu0 0.0
    %3489 = vmatprep.subr.mxu0 0.0
    %3490 = vmatpush1.xpose.msra.mxu0 0.0
    %3491 = vmatprep.subr.mxu0 0.0
    %3492 = vmatpush1.xpose.msra.mxu0 0.0
    %3493 = vmatprep.subr.mxu0 0.0
    %3494 = vmatpush1.xpose.msra.mxu0 0.0
    %3495 = vmatprep.subr.mxu0 0.0
    %3496 = vmatpush1.xpose.msra.mxu0 0.0
    %3497 = vmatprep.subr.mxu0 0.0
    %3498 = vmatpush1.xpose.msra.mxu0 0.0
    %3499 = vmatprep.subr.mxu0 0.0
    %3500 = vmatpush1.xpose.msra.mxu0 0.0
    %3501 = vmatprep.subr.mxu0 0.0
    %3502 = vmatpush1.xpose.msra.mxu0 0.0
    %3503 = vmatprep.subr.mxu0 0.0
    %3504 = vmatpush1.xpose.msra.mxu0 0.0
    %3505 = vmatprep.subr.mxu0 0.0
    %3506 = vmatpush1.xpose.msra.mxu0 0.0
    %3507 = vmatprep.subr.mxu0 0.0
    %3508 = vmatpush1.xpose.msra.mxu0 0.0
    %3509 = vmatprep.subr.mxu0 0.0
    %3510 = vmatpush1.xpose.msra.mxu0 0.0
    %3511 = vmatprep.subr.mxu0 0.0
    %3512 = vmatpush1.xpose.msra.mxu0 0.0
    %3513 = vmatprep.mubr.f32.mxu0 0.0
    %3514 = vmatmul.mubr.f32.gmra.mrb[0].mxu0 %v3445
    %v3515 = vpop.f32.mrb[0].mxu0
    %v3516 = vadd.f32 0.0, %v3515
    %v3517 = vpop.f32.mrb[0].mxu0
    %3518 = vdwg.mxu0
    %v3519 = vmul.f32 %v3438, 0.35355338
    %v3520 = vmul.f32 %v3516, 0.35355338
    %v3521 = vsel %vm245, %v3519, -inf
    %3522 = vmax.xlane.f32.xlu0 %v3521
    %v3523 = vpop.xlane.xlu0 %3522
    %v3524 = vsel %vm245, %v3520, -inf
    %3525 = vmax.xlane.f32.xlu0 %v3524
    %v3526 = vpop.xlane.xlu0 %3525
    %v3527 = vsub.f32 %v3519, %v3523
    %v3528 = vsub.f32 %v3520, %v3526
    %v3529 = vmul.f32 %v3527, 1.442695
    %v3530 = vpow.pop %v3529
    %v3531 = vmul.f32 %v3528, 1.442695
    %v3532 = vpow.pop %v3531
    %v3533 = vsel %vm245, %v3530, 0.0
    %3534 = vadd.xlane.f32.xlu0 %v3533
    %v3535 = vpop.xlane.xlu0 %3534
    %v3536 = vsel %vm245, %v3532, 0.0
    %3537 = vadd.xlane.f32.xlu0 %v3536
    %v3538 = vpop.xlane.xlu0 %3537
    %v3539 = vrcp.pop %v3535
    %v3540 = vrcp.pop %v3538
    %v3541 = vmul.f32 %v3530, %v3539
    %v3542 = vmul.f32 %v3532, %v3540
    %3543 = vrot.lane.b32.xlu0 %v2112, 72
    %v3544 = vpop.permute.xlu0 %3543
    %v3547 = vsel %vm245, %v3541, 0
    %3549 = vmatprep.subr.mxu0 0.0
    %3550 = vmatpush1.msra.mxu0 %v3544
    %3551 = vmatprep.subr.mxu0 0.0
    %3552 = vmatpush1.msra.mxu0 0.0
    %3553 = vmatprep.subr.mxu0 0.0
    %3554 = vmatpush1.msra.mxu0 0.0
    %3555 = vmatprep.subr.mxu0 0.0
    %3556 = vmatpush1.msra.mxu0 0.0
    %3557 = vmatprep.subr.mxu0 0.0
    %3558 = vmatpush1.msra.mxu0 0.0
    %3559 = vmatprep.subr.mxu0 0.0
    %3560 = vmatpush1.msra.mxu0 0.0
    %3561 = vmatprep.subr.mxu0 0.0
    %3562 = vmatpush1.msra.mxu0 0.0
    %3563 = vmatprep.subr.mxu0 0.0
    %3564 = vmatpush1.msra.mxu0 0.0
    %3565 = vmatprep.subr.mxu0 0.0
    %3566 = vmatpush1.msra.mxu0 0.0
    %3567 = vmatprep.subr.mxu0 0.0
    %3568 = vmatpush1.msra.mxu0 0.0
    %3569 = vmatprep.subr.mxu0 0.0
    %3570 = vmatpush1.msra.mxu0 0.0
    %3571 = vmatprep.subr.mxu0 0.0
    %3572 = vmatpush1.msra.mxu0 0.0
    %3573 = vmatprep.subr.mxu0 0.0
    %3574 = vmatpush1.msra.mxu0 0.0
    %3575 = vmatprep.subr.mxu0 0.0
    %3576 = vmatpush1.msra.mxu0 0.0
    %3577 = vmatprep.subr.mxu0 0.0
    %3578 = vmatpush1.msra.mxu0 0.0
    %3579 = vmatprep.subr.mxu0 0.0
    %3580 = vmatpush1.msra.mxu0 0.0
    %3581 = vmatprep.subr.mxu0 0.0
    %3582 = vmatpush1.msra.mxu0 0.0
    %3583 = vmatprep.subr.mxu0 0.0
    %3584 = vmatpush1.msra.mxu0 0.0
    %3585 = vmatprep.subr.mxu0 0.0
    %3586 = vmatpush1.msra.mxu0 0.0
    %3587 = vmatprep.subr.mxu0 0.0
    %3588 = vmatpush1.msra.mxu0 0.0
    %3589 = vmatprep.subr.mxu0 0.0
    %3590 = vmatpush1.msra.mxu0 0.0
    %3591 = vmatprep.subr.mxu0 0.0
    %3592 = vmatpush1.msra.mxu0 0.0
    %3593 = vmatprep.subr.mxu0 0.0
    %3594 = vmatpush1.msra.mxu0 0.0
    %3595 = vmatprep.subr.mxu0 0.0
    %3596 = vmatpush1.msra.mxu0 0.0
    %3597 = vmatprep.subr.mxu0 0.0
    %3598 = vmatpush1.msra.mxu0 0.0
    %3599 = vmatprep.subr.mxu0 0.0
    %3600 = vmatpush1.msra.mxu0 0.0
    %3601 = vmatprep.subr.mxu0 0.0
    %3602 = vmatpush1.msra.mxu0 0.0
    %3603 = vmatprep.subr.mxu0 0.0
    %3604 = vmatpush1.msra.mxu0 0.0
    %3605 = vmatprep.subr.mxu0 0.0
    %3606 = vmatpush1.msra.mxu0 0.0
    %3607 = vmatprep.subr.mxu0 0.0
    %3608 = vmatpush1.msra.mxu0 0.0
    %3609 = vmatprep.subr.mxu0 0.0
    %3610 = vmatpush1.msra.mxu0 0.0
    %3611 = vmatprep.subr.mxu0 0.0
    %3612 = vmatpush1.msra.mxu0 0.0
    %3613 = vmatprep.mubr.f32.mxu0 0.0
    %3614 = vmatmul.mubr.f32.gmra.mrb[0].mxu0 %v3547
    %v3615 = vpop.f32.mrb[0].mxu0
    %v3616 = vadd.f32 0.0, %v3615
    %v3617 = vpop.f32.mrb[0].mxu0
    %3618 = vdwg.mxu0
    %3619 = vrot.lane.b32.xlu0 %v2117, 72
    %v3620 = vpop.permute.xlu0 %3619
    %v3623 = vsel %vm245, %v3542, 0
    %3625 = vmatprep.subr.mxu0 0.0
    %3626 = vmatpush1.msra.mxu0 %v3620
    %3627 = vmatprep.subr.mxu0 0.0
    %3628 = vmatpush1.msra.mxu0 0.0
    %3629 = vmatprep.subr.mxu0 0.0
    %3630 = vmatpush1.msra.mxu0 0.0
    %3631 = vmatprep.subr.mxu0 0.0
    %3632 = vmatpush1.msra.mxu0 0.0
    %3633 = vmatprep.subr.mxu0 0.0
    %3634 = vmatpush1.msra.mxu0 0.0
    %3635 = vmatprep.subr.mxu0 0.0
    %3636 = vmatpush1.msra.mxu0 0.0
    %3637 = vmatprep.subr.mxu0 0.0
    %3638 = vmatpush1.msra.mxu0 0.0
    %3639 = vmatprep.subr.mxu0 0.0
    %3640 = vmatpush1.msra.mxu0 0.0
    %3641 = vmatprep.subr.mxu0 0.0
    %3642 = vmatpush1.msra.mxu0 0.0
    %3643 = vmatprep.subr.mxu0 0.0
    %3644 = vmatpush1.msra.mxu0 0.0
    %3645 = vmatprep.subr.mxu0 0.0
    %3646 = vmatpush1.msra.mxu0 0.0
    %3647 = vmatprep.subr.mxu0 0.0
    %3648 = vmatpush1.msra.mxu0 0.0
    %3649 = vmatprep.subr.mxu0 0.0
    %3650 = vmatpush1.msra.mxu0 0.0
    %3651 = vmatprep.subr.mxu0 0.0
    %3652 = vmatpush1.msra.mxu0 0.0
    %3653 = vmatprep.subr.mxu0 0.0
    %3654 = vmatpush1.msra.mxu0 0.0
    %3655 = vmatprep.subr.mxu0 0.0
    %3656 = vmatpush1.msra.mxu0 0.0
    %3657 = vmatprep.subr.mxu0 0.0
    %3658 = vmatpush1.msra.mxu0 0.0
    %3659 = vmatprep.subr.mxu0 0.0
    %3660 = vmatpush1.msra.mxu0 0.0
    %3661 = vmatprep.subr.mxu0 0.0
    %3662 = vmatpush1.msra.mxu0 0.0
    %3663 = vmatprep.subr.mxu0 0.0
    %3664 = vmatpush1.msra.mxu0 0.0
    %3665 = vmatprep.subr.mxu0 0.0
    %3666 = vmatpush1.msra.mxu0 0.0
    %3667 = vmatprep.subr.mxu0 0.0
    %3668 = vmatpush1.msra.mxu0 0.0
    %3669 = vmatprep.subr.mxu0 0.0
    %3670 = vmatpush1.msra.mxu0 0.0
    %3671 = vmatprep.subr.mxu0 0.0
    %3672 = vmatpush1.msra.mxu0 0.0
    %3673 = vmatprep.subr.mxu0 0.0
    %3674 = vmatpush1.msra.mxu0 0.0
    %3675 = vmatprep.subr.mxu0 0.0
    %3676 = vmatpush1.msra.mxu0 0.0
    %3677 = vmatprep.subr.mxu0 0.0
    %3678 = vmatpush1.msra.mxu0 0.0
    %3679 = vmatprep.subr.mxu0 0.0
    %3680 = vmatpush1.msra.mxu0 0.0
    %3681 = vmatprep.subr.mxu0 0.0
    %3682 = vmatpush1.msra.mxu0 0.0
    %3683 = vmatprep.subr.mxu0 0.0
    %3684 = vmatpush1.msra.mxu0 0.0
    %3685 = vmatprep.subr.mxu0 0.0
    %3686 = vmatpush1.msra.mxu0 0.0
    %3687 = vmatprep.subr.mxu0 0.0
    %3688 = vmatpush1.msra.mxu0 0.0
    %3689 = vmatprep.mubr.f32.mxu0 0.0
    %3690 = vmatmul.mubr.f32.gmra.mrb[0].mxu0 %v3623
    %v3691 = vpop.f32.mrb[0].mxu0
    %v3692 = vadd.f32 0.0, %v3691
    %v3693 = vpop.f32.mrb[0].mxu0
    %3694 = vdwg.mxu0
    %v3696 = vsel %vm245, %v3616, 0
    %v3699 = vsel %vm245, %v3692, 0
    %3701 = vmatprep.subr.mxu0 0.0
    %3702 = vmatpush1.msra.mxu0 %v2123
    %3703 = vmatprep.subr.mxu0 0.0
    %3704 = vmatpush1.msra.mxu0 0.0
    %3705 = vmatprep.subr.mxu0 0.0
    %3706 = vmatpush1.msra.mxu0 0.0
    %3707 = vmatprep.subr.mxu0 0.0
    %3708 = vmatpush1.msra.mxu0 0.0
    %3709 = vmatprep.subr.mxu0 0.0
    %3710 = vmatpush1.msra.mxu0 0.0
    %3711 = vmatprep.subr.mxu0 0.0
    %3712 = vmatpush1.msra.mxu0 0.0
    %3713 = vmatprep.subr.mxu0 0.0
    %3714 = vmatpush1.msra.mxu0 0.0
    %3715 = vmatprep.subr.mxu0 0.0
    %3716 = vmatpush1.msra.mxu0 0.0
    %3717 = vmatprep.subr.mxu0 0.0
    %3718 = vmatpush1.msra.mxu0 0.0
    %3719 = vmatprep.subr.mxu0 0.0
    %3720 = vmatpush1.msra.mxu0 0.0
    %3721 = vmatprep.subr.mxu0 0.0
    %3722 = vmatpush1.msra.mxu0 0.0
    %3723 = vmatprep.subr.mxu0 0.0
    %3724 = vmatpush1.msra.mxu0 0.0
    %3725 = vmatprep.subr.mxu0 0.0
    %3726 = vmatpush1.msra.mxu0 0.0
    %3727 = vmatprep.subr.mxu0 0.0
    %3728 = vmatpush1.msra.mxu0 0.0
    %3729 = vmatprep.subr.mxu0 0.0
    %3730 = vmatpush1.msra.mxu0 0.0
    %3731 = vmatprep.subr.mxu0 0.0
    %3732 = vmatpush1.msra.mxu0 0.0
    %3733 = vmatprep.subr.mxu0 0.0
    %3734 = vmatpush1.msra.mxu0 0.0
    %3735 = vmatprep.subr.mxu0 0.0
    %3736 = vmatpush1.msra.mxu0 0.0
    %3737 = vmatprep.subr.mxu0 0.0
    %3738 = vmatpush1.msra.mxu0 0.0
    %3739 = vmatprep.subr.mxu0 0.0
    %3740 = vmatpush1.msra.mxu0 0.0
    %3741 = vmatprep.subr.mxu0 0.0
    %3742 = vmatpush1.msra.mxu0 0.0
    %3743 = vmatprep.subr.mxu0 0.0
    %3744 = vmatpush1.msra.mxu0 0.0
    %3745 = vmatprep.subr.mxu0 0.0
    %3746 = vmatpush1.msra.mxu0 0.0
    %3747 = vmatprep.subr.mxu0 0.0
    %3748 = vmatpush1.msra.mxu0 0.0
    %3749 = vmatprep.subr.mxu0 0.0
    %3750 = vmatpush1.msra.mxu0 0.0
    %3751 = vmatprep.subr.mxu0 0.0
    %3752 = vmatpush1.msra.mxu0 0.0
    %3753 = vmatprep.subr.mxu0 0.0
    %3754 = vmatpush1.msra.mxu0 0.0
    %3755 = vmatprep.subr.mxu0 0.0
    %3756 = vmatpush1.msra.mxu0 0.0
    %3757 = vmatprep.subr.mxu0 0.0
    %3758 = vmatpush1.msra.mxu0 0.0
    %3759 = vmatprep.subr.mxu0 0.0
    %3760 = vmatpush1.msra.mxu0 0.0
    %3761 = vmatprep.subr.mxu0 0.0
    %3762 = vmatpush1.msra.mxu0 0.0
    %3763 = vmatprep.subr.mxu0 0.0
    %3764 = vmatpush1.msra.mxu0 0.0
    %3765 = vmatprep.mubr.f32.mxu0 0.0
    %3766 = vmatmul.mubr.f32.gmra.mrb[0].mxu0 %v3696
    %v3767 = vpop.f32.mrb[0].mxu0
    %v3768 = vadd.f32 0.0, %v3767
    %v3769 = vpop.f32.mrb[0].mxu0
    %3770 = vmatprep.mubr.f32.mxu0 0.0
    %3771 = vmatmul.mubr.f32.gmra.mrb[0].mxu0 %v3699
    %v3772 = vpop.f32.mrb[0].mxu0
    %v3773 = vadd.f32 0.0, %v3772
    %v3774 = vpop.f32.mrb[0].mxu0
    %3775 = vdwg.mxu0
    %v3776 = vadd.f32 %v3361, %v3768
    %v3777 = vadd.f32 %v3362, %v3773
    %v3778 = vadd.f32 %v3776, %v1948
    %v3779 = vadd.f32 %v3777, %v1949
    %v3780 = vsel %vm150, %v3778, 0.0
    %3781 = vadd.xlane.f32.xlu0 %v3780
    %v3782 = vpop.xlane.xlu0 %3781
    %v3783 = vsel %vm150, %v3779, 0.0
    %3784 = vadd.xlane.f32.xlu0 %v3783
    %v3785 = vpop.xlane.xlu0 %3784
    %v3786 = vmul.f32 %v3782, %v1913
    %v3787 = vmul.f32 %v3785, %v1913
    %v3788 = vsub.f32 %v3778, %v3786
    %v3789 = vsub.f32 %v3779, %v3787
    %v3790 = vmul.f32 %v3788, %v3788
    %v3791 = vmul.f32 %v3789, %v3789
    %v3792 = vsel %vm150, %v3790, 0.0
    %3793 = vadd.xlane.f32.xlu0 %v3792
    %v3794 = vpop.xlane.xlu0 %3793
    %v3795 = vsel %vm150, %v3791, 0.0
    %3796 = vadd.xlane.f32.xlu0 %v3795
    %v3797 = vpop.xlane.xlu0 %3796
    %v3798 = vmul.f32 %v3794, %v1913
    %v3799 = vmul.f32 %v3797, %v1913
    %v3800 = vadd.f32 %v3798, 1e-06
    %v3801 = vadd.f32 %v3799, 1e-06
    %v3802 = vrsqrt.pop %v3800
    %v3803 = vrsqrt.pop %v3801
    %v3804 = vmul.f32 %v3788, %v3802
    %v3805 = vmul.f32 %v3789, %v3803
    %v3807 = vlaneseq
    %v3808 = vshrl.u32 %v3807, 7
    %v3809 = vsub.s32 0, %v3808
    %v3810 = vrot.slane %v2124, %v3809
    %v3812 = vmul.f32 %v3804, %v3810
    %v3813 = vmul.f32 %v3805, %v3810
    %v3815 = vlaneseq
    %v3816 = vshrl.u32 %v3815, 7
    %v3817 = vsub.s32 0, %v3816
    %v3818 = vrot.slane %v2125, %v3817
    %v3820 = vadd.f32 %v3812, %v3818
    %v3821 = vadd.f32 %v3813, %v3818
    %v3822 = vld [vmem:[#allocation11] sm:$0xff]
    %v3823 = vld [vmem:[#allocation11 + $0x8] sm:$0xff]
    %v3824 = vld [vmem:[#allocation11 + $0x10] sm:$0xff]
    %v3825 = vld [vmem:[#allocation11 + $0x18] sm:$0xff]
    %v3826 = vld [vmem:[%s13] sm:$0x1]
    %v3828 = vlaneseq
    %v3829 = vshrl.u32 %v3828, 7
    %v3830 = vsub.s32 0, %v3829
    %v3831 = vrot.slane %v3826, %v3830
    %v3834 = vsel %vm150, %v3820, 0
    %v3837 = vsel %vm150, %v3821, 0
    %3839 = vmatprep.subr.mxu0 0.0
    %3840 = vmatpush1.msra.mxu0 %v3822
    %3841 = vmatprep.subr.mxu0 0.0
    %3842 = vmatpush1.msra.mxu0 %v3823
    %3843 = vmatprep.subr.mxu0 0.0
    %3844 = vmatpush1.msra.mxu0 %v3824
    %3845 = vmatprep.subr.mxu0 0.0
    %3846 = vmatpush1.msra.mxu0 %v3825
    %3847 = vmatprep.subr.mxu0 0.0
    %3848 = vmatpush1.msra.mxu0 0.0
    %3849 = vmatprep.subr.mxu0 0.0
    %3850 = vmatpush1.msra.mxu0 0.0
    %3851 = vmatprep.subr.mxu0 0.0
    %3852 = vmatpush1.msra.mxu0 0.0
    %3853 = vmatprep.subr.mxu0 0.0
    %3854 = vmatpush1.msra.mxu0 0.0
    %3855 = vmatprep.subr.mxu0 0.0
    %3856 = vmatpush1.msra.mxu0 0.0
    %3857 = vmatprep.subr.mxu0 0.0
    %3858 = vmatpush1.msra.mxu0 0.0
    %3859 = vmatprep.subr.mxu0 0.0
    %3860 = vmatpush1.msra.mxu0 0.0
    %3861 = vmatprep.subr.mxu0 0.0
    %3862 = vmatpush1.msra.mxu0 0.0
    %3863 = vmatprep.subr.mxu0 0.0
    %3864 = vmatpush1.msra.mxu0 0.0
    %3865 = vmatprep.subr.mxu0 0.0
    %3866 = vmatpush1.msra.mxu0 0.0
    %3867 = vmatprep.subr.mxu0 0.0
    %3868 = vmatpush1.msra.mxu0 0.0
    %3869 = vmatprep.subr.mxu0 0.0
    %3870 = vmatpush1.msra.mxu0 0.0
    %3871 = vmatprep.subr.mxu0 0.0
    %3872 = vmatpush1.msra.mxu0 0.0
    %3873 = vmatprep.subr.mxu0 0.0
    %3874 = vmatpush1.msra.mxu0 0.0
    %3875 = vmatprep.subr.mxu0 0.0
    %3876 = vmatpush1.msra.mxu0 0.0
    %3877 = vmatprep.subr.mxu0 0.0
    %3878 = vmatpush1.msra.mxu0 0.0
    %3879 = vmatprep.subr.mxu0 0.0
    %3880 = vmatpush1.msra.mxu0 0.0
    %3881 = vmatprep.subr.mxu0 0.0
    %3882 = vmatpush1.msra.mxu0 0.0
    %3883 = vmatprep.subr.mxu0 0.0
    %3884 = vmatpush1.msra.mxu0 0.0
    %3885 = vmatprep.subr.mxu0 0.0
    %3886 = vmatpush1.msra.mxu0 0.0
    %3887 = vmatprep.subr.mxu0 0.0
    %3888 = vmatpush1.msra.mxu0 0.0
    %3889 = vmatprep.subr.mxu0 0.0
    %3890 = vmatpush1.msra.mxu0 0.0
    %3891 = vmatprep.subr.mxu0 0.0
    %3892 = vmatpush1.msra.mxu0 0.0
    %3893 = vmatprep.subr.mxu0 0.0
    %3894 = vmatpush1.msra.mxu0 0.0
    %3895 = vmatprep.subr.mxu0 0.0
    %3896 = vmatpush1.msra.mxu0 0.0
    %3897 = vmatprep.subr.mxu0 0.0
    %3898 = vmatpush1.msra.mxu0 0.0
    %3899 = vmatprep.subr.mxu0 0.0
    %3900 = vmatpush1.msra.mxu0 0.0
    %3901 = vmatprep.subr.mxu0 0.0
    %3902 = vmatpush1.msra.mxu0 0.0
    %3903 = vmatprep.mubr.f32.mxu0 0.0
    %3904 = vmatmul.mubr.f32.gmra.mrb[0].mxu0 %v3834
    %v3905 = vpop.f32.mrb[0].mxu0
    %v3906 = vadd.f32 %v3831, %v3905
    %v3907 = vpop.f32.mrb[0].mxu0
    %3908 = vmatprep.mubr.f32.mxu0 0.0
    %3909 = vmatmul.mubr.f32.gmra.mrb[0].mxu0 %v3837
    %v3910 = vpop.f32.mrb[0].mxu0
    %v3911 = vadd.f32 %v3831, %v3910
    %v3912 = vpop.f32.mrb[0].mxu0
    %3913 = vdwg.mxu0
    %v3914 = vmax.f32 %v3906, 0.0
    %v3915 = vmax.f32 %v3911, 0.0
    %v3916 = vld [vmem:[%s14] sm:$0xff]
    %v3917 = vld [vmem:[%s14 + $0x8] sm:$0xff]
    %v3918 = vld [vmem:[%s14 + $0x10] sm:$0xff]
    %v3919 = vld [vmem:[%s14 + $0x18] sm:$0xff]
    %v3920 = vld [vmem:[%s14 + $0x20] sm:$0xff]
    %v3921 = vld [vmem:[%s14 + $0x28] sm:$0xff]
    %v3922 = vld [vmem:[%s14 + $0x30] sm:$0xff]
    %v3923 = vld [vmem:[%s14 + $0x38] sm:$0xff]
    %v3924 = vld [vmem:[%s15] sm:$0x1]
    %v3926 = vlaneseq
    %v3927 = vshrl.u32 %v3926, 7
    %v3928 = vsub.s32 0, %v3927
    %v3929 = vrot.slane %v3924, %v3928
    %vm3931 = vcmask 523264
    %v3933 = vsel %vm3931, %v3914, 0
    %v3936 = vsel %vm3931, %v3915, 0
    %3938 = vmatprep.subr.mxu0 0.0
    %3939 = vmatpush1.msra.mxu0 %v3916
    %3940 = vmatprep.subr.mxu0 0.0
    %3941 = vmatpush1.msra.mxu0 %v3917
    %3942 = vmatprep.subr.mxu0 0.0
    %3943 = vmatpush1.msra.mxu0 %v3918
    %3944 = vmatprep.subr.mxu0 0.0
    %3945 = vmatpush1.msra.mxu0 %v3919
    %3946 = vmatprep.subr.mxu0 0.0
    %3947 = vmatpush1.msra.mxu0 %v3920
    %3948 = vmatprep.subr.mxu0 0.0
    %3949 = vmatpush1.msra.mxu0 %v3921
    %3950 = vmatprep.subr.mxu0 0.0
    %3951 = vmatpush1.msra.mxu0 %v3922
    %3952 = vmatprep.subr.mxu0 0.0
    %3953 = vmatpush1.msra.mxu0 %v3923
    %3954 = vmatprep.subr.mxu0 0.0
    %3955 = vmatpush1.msra.mxu0 0.0
    %3956 = vmatprep.subr.mxu0 0.0
    %3957 = vmatpush1.msra.mxu0 0.0
    %3958 = vmatprep.subr.mxu0 0.0
    %3959 = vmatpush1.msra.mxu0 0.0
    %3960 = vmatprep.subr.mxu0 0.0
    %3961 = vmatpush1.msra.mxu0 0.0
    %3962 = vmatprep.subr.mxu0 0.0
    %3963 = vmatpush1.msra.mxu0 0.0
    %3964 = vmatprep.subr.mxu0 0.0
    %3965 = vmatpush1.msra.mxu0 0.0
    %3966 = vmatprep.subr.mxu0 0.0
    %3967 = vmatpush1.msra.mxu0 0.0
    %3968 = vmatprep.subr.mxu0 0.0
    %3969 = vmatpush1.msra.mxu0 0.0
    %3970 = vmatprep.subr.mxu0 0.0
    %3971 = vmatpush1.msra.mxu0 0.0
    %3972 = vmatprep.subr.mxu0 0.0
    %3973 = vmatpush1.msra.mxu0 0.0
    %3974 = vmatprep.subr.mxu0 0.0
    %3975 = vmatpush1.msra.mxu0 0.0
    %3976 = vmatprep.subr.mxu0 0.0
    %3977 = vmatpush1.msra.mxu0 0.0
    %3978 = vmatprep.subr.mxu0 0.0
    %3979 = vmatpush1.msra.mxu0 0.0
    %3980 = vmatprep.subr.mxu0 0.0
    %3981 = vmatpush1.msra.mxu0 0.0
    %3982 = vmatprep.subr.mxu0 0.0
    %3983 = vmatpush1.msra.mxu0 0.0
    %3984 = vmatprep.subr.mxu0 0.0
    %3985 = vmatpush1.msra.mxu0 0.0
    %3986 = vmatprep.subr.mxu0 0.0
    %3987 = vmatpush1.msra.mxu0 0.0
    %3988 = vmatprep.subr.mxu0 0.0
    %3989 = vmatpush1.msra.mxu0 0.0
    %3990 = vmatprep.subr.mxu0 0.0
    %3991 = vmatpush1.msra.mxu0 0.0
    %3992 = vmatprep.subr.mxu0 0.0
    %3993 = vmatpush1.msra.mxu0 0.0
    %3994 = vmatprep.subr.mxu0 0.0
    %3995 = vmatpush1.msra.mxu0 0.0
    %3996 = vmatprep.subr.mxu0 0.0
    %3997 = vmatpush1.msra.mxu0 0.0
    %3998 = vmatprep.subr.mxu0 0.0
    %3999 = vmatpush1.msra.mxu0 0.0
    %4000 = vmatprep.subr.mxu0 0.0
    %4001 = vmatpush1.msra.mxu0 0.0
    %4002 = vmatprep.mubr.f32.mxu0 0.0
    %4003 = vmatmul.mubr.f32.gmra.mrb[0].mxu0 %v3933
    %v4004 = vpop.f32.mrb[0].mxu0
    %v4005 = vadd.f32 %v3929, %v4004
    %v4006 = vpop.f32.mrb[0].mxu0
    %4007 = vmatprep.mubr.f32.mxu0 0.0
    %4008 = vmatmul.mubr.f32.gmra.mrb[0].mxu0 %v3936
    %v4009 = vpop.f32.mrb[0].mxu0
    %v4010 = vadd.f32 %v3929, %v4009
    %v4011 = vpop.f32.mrb[0].mxu0
    %4012 = vdwg.mxu0
    %v4013 = vadd.f32 %v4005, %v3820
    %v4014 = vadd.f32 %v4010, %v3821
    %v4015 = vld [vmem:[%s16] sm:$0x1]
    %v4016 = vld [vmem:[%s17] sm:$0x1]
    %v4017 = vsel %vm150, %v4013, 0.0
    %4018 = vadd.xlane.f32.xlu0 %v4017
    %v4019 = vpop.xlane.xlu0 %4018
    %v4020 = vsel %vm150, %v4014, 0.0
    %4021 = vadd.xlane.f32.xlu0 %v4020
    %v4022 = vpop.xlane.xlu0 %4021
    %v4023 = vmul.f32 %v4019, %v1913
    %v4024 = vmul.f32 %v4022, %v1913
    %v4025 = vsub.f32 %v4013, %v4023
    %v4026 = vsub.f32 %v4014, %v4024
    %v4027 = vmul.f32 %v4025, %v4025
    %v4028 = vmul.f32 %v4026, %v4026
    %v4029 = vsel %vm150, %v4027, 0.0
    %4030 = vadd.xlane.f32.xlu0 %v4029
    %v4031 = vpop.xlane.xlu0 %4030
    %v4032 = vsel %vm150, %v4028, 0.0
    %4033 = vadd.xlane.f32.xlu0 %v4032
    %v4034 = vpop.xlane.xlu0 %4033
    %v4035 = vmul.f32 %v4031, %v1913
    %v4036 = vmul.f32 %v4034, %v1913
    %v4037 = vadd.f32 %v4035, 1e-06
    %v4038 = vadd.f32 %v4036, 1e-06
    %v4039 = vrsqrt.pop %v4037
    %v4040 = vrsqrt.pop %v4038
    %v4041 = vmul.f32 %v4025, %v4039
    %v4042 = vmul.f32 %v4026, %v4040
    %v4044 = vlaneseq
    %v4045 = vshrl.u32 %v4044, 7
    %v4046 = vsub.s32 0, %v4045
    %v4047 = vrot.slane %v4015, %v4046
    %v4049 = vmul.f32 %v4041, %v4047
    %v4050 = vmul.f32 %v4042, %v4047
    %v4052 = vlaneseq
    %v4053 = vshrl.u32 %v4052, 7
    %v4054 = vsub.s32 0, %v4053
    %v4055 = vrot.slane %v4016, %v4054
    %v4057 = vadd.f32 %v4049, %v4055
    %v4058 = vadd.f32 %v4050, %v4055
    %4059 = vst.msk [vmem:[#allocation13] sm:$0xff] %vm150, %v4057
    %4060 = vst.msk [vmem:[#allocation13 + $0x8] sm:$0xff] %vm150, %v4058
    // Predicated region
    $region98: #{tpu_custom_call.1} parent=1 // pred_check
      _
    $region99: #{tpu_custom_call.1} parent=1 // pred_check_branch
      %4062 = sbr.rel (0) target = $region101
    $region100: #{tpu_custom_call.1} parent=1 // pred_region
      %s4064 = ssub.s32 256, 256
      %4065 = vsyncadd [#allocation4], %s4064
      %s4066 = sshll.u32 [#allocation13], 4
      %s4067 = int_to_ptr.vmem [resolvable:$true] %s4066
      %4072 = dma.vmem_to_hbm [thread:$0]  %s4067, 256, %s18, [#allocation4], 128, 128, 8
    $region101: #{tpu_custom_call.1} parent=1 // pred_fallthru
      _
    // Predicated region
    $region102: #{tpu_custom_call.1} parent=1 // pred_check
      _
    $region103: #{tpu_custom_call.1} parent=1 // pred_check_branch
      %4074 = sbr.rel (0) target = $region105
    $region104: #{tpu_custom_call.1} parent=1 // pred_region
      %4075 = dma.done [#allocation4], 256
    $region105: #{tpu_custom_call.1} parent=1 // pred_fallthru
      _
    %4076 = vsyncpa [#allocation3], 1
    %4077 = vsyncpa [#allocation6], 1
    %4078 = vsyncpa [#allocation9], 1
    %4079 = vsyncpa [#allocation12], 1
    %4080 = vsyncpa [#allocation4], 1

</llo_original>
